<compile_context>
chip_gen: v7x
topology: tpu7x:2x2x1
jax: 0.10.0
libtpu: 0.0.40
codegen_flags: <defaults>
</compile_context>

<pallas_src>
import math

import jax
import jax.numpy as jnp
from jax.experimental import pallas as pl
from jax.experimental.pallas import tpu as pltpu

BN_EPS = 1e-5
NUM_CLASSES = 63
PAD_CLASSES = 128  # fc output padded to a full 128-lane register for a dense store


def _cdiv(a, b):
    return -(-a // b)


# ----------------------------- in-kernel helpers ---------------------------- #
# Activation layout inside the kernel: (l, TB, C)
#   l  = spatial position (leading/major axis)  -> shifts & stride-2 are pure
#                                                  leading-axis slicing/concat
#   TB = samples in this grid block (sublanes)
#   C  = channels (lanes)                       -> lane-dense matmuls

def _shift_dn(x):
    """row l <- x[l-1]; zero padding at l == 0 (leading axis)."""
    return jnp.concatenate([jnp.zeros_like(x[:1]), x[:-1]], axis=0)


def _shift_up(x):
    """row l <- x[l+1]; zero padding at l == L-1 (leading axis)."""
    return jnp.concatenate([x[1:], jnp.zeros_like(x[:1])], axis=0)


def _even_odd(x):
    """Split even / odd spatial positions: leading-dims-only reshape + major-axis
    slice, so no lane/sublane data movement."""
    l = x.shape[0]
    xr = x.reshape((l // 2, 2) + x.shape[1:])
    return xr[:, 0], xr[:, 1]


def _dot_bias(x2d, w_ref, b_ref):
    return jnp.dot(x2d, w_ref[...], preferred_element_type=jnp.float32) + b_ref[...]


def _conv3_s1(x, w_ref, b_ref, relu):
    """Conv1d(k=3, s=1, p=1) with BN folded.  One im2col dot: (l*TB,3Cin)@(3Cin,Cout)."""
    l, tb, cin = x.shape
    cat = jnp.concatenate([_shift_dn(x), x, _shift_up(x)], axis=-1)      # (l, TB, 3Cin)
    y = _dot_bias(cat.reshape(l * tb, 3 * cin), w_ref, b_ref)
    y = y.reshape(l, tb, -1)
    return jnp.maximum(y, 0.0) if relu else y


def _conv3_s2(x, w_ref, b_ref, relu):
    """Conv1d(k=3, s=2, p=1): out[o] = sum_k w_k . x[2o + k - 1]."""
    l, tb, cin = x.shape
    xe, xo = _even_odd(x)                                               # x[2o], x[2o+1]
    cat = jnp.concatenate([_shift_dn(xo), xe, xo], axis=-1)             # (l/2, TB, 3Cin)
    y = _dot_bias(cat.reshape((l // 2) * tb, 3 * cin), w_ref, b_ref)
    y = y.reshape(l // 2, tb, -1)
    return jnp.maximum(y, 0.0) if relu else y


def _conv1_s2(x, w_ref, b_ref):
    """Conv1d(k=1, s=2) downsample: out[o] = W . x[2o]."""
    l, tb, cin = x.shape
    xe, _ = _even_odd(x)
    y = _dot_bias(xe.reshape((l // 2) * tb, cin), w_ref, b_ref)
    return y.reshape(l // 2, tb, -1)


def _maxpool_k3s2p1(x):
    """MaxPool1d(k=3, s=2, p=1).  x is post-ReLU (>= 0), so zero shift-padding
    behaves exactly like PyTorch's -inf padding."""
    xe, xo = _even_odd(x)
    return jnp.maximum(jnp.maximum(_shift_dn(xo), xe), xo)


def _basic_block_s1(x, w1, b1, w2, b2):
    out = _conv3_s1(x, w1, b1, relu=True)
    out = _conv3_s1(out, w2, b2, relu=False)
    return jnp.maximum(out + x, 0.0)


def _basic_block_s2(x, w1, b1, w2, b2, wd, bd):
    identity = _conv1_s2(x, wd, bd)
    out = _conv3_s2(x, w1, b1, relu=True)
    out = _conv3_s1(out, w2, b2, relu=False)
    return jnp.maximum(out + identity, 0.0)


# ------------------------------ fused network kernel ------------------------ #

def _resnet_kernel(x_ref, ws, bs,
                   w11, b11, w12, b12,
                   w21, b21, w22, b22, wd2, bd2,
                   w31, b31, w32, b32, wd3, bd3,
                   wf, bf, o_ref):
    xb = x_ref[...]                                # (TB, L) raw 1-channel signal block
    x = jnp.transpose(xb, (1, 0))                  # (L, TB) position-major
    # Stem Conv1d(1, 64, k=3, s=1, p=1) + folded BN + ReLU.  Cin == 1, so the conv
    # is 3 broadcasted multiplies on the VPU (no wasteful K=3 MXU matmul).
    wsv = ws[...]                                  # (3, 64)
    y = (_shift_dn(x)[:, :, None] * wsv[0:1]
         + x[:, :, None] * wsv[1:2]
         + _shift_up(x)[:, :, None] * wsv[2:3]) + bs[...]
    y = jnp.maximum(y, 0.0)                        # (L, TB, 64)
    y = _maxpool_k3s2p1(y)                         # (L/2, TB, 64)
    y = _basic_block_s1(y, w11, b11, w12, b12)              # (L/2, TB, 64)
    y = _basic_block_s2(y, w21, b21, w22, b22, wd2, bd2)    # (L/4, TB, 128)
    y = _basic_block_s2(y, w31, b31, w32, b32, wd3, bd3)    # (L/8, TB, 256)
    # AdaptiveAvgPool1d(1): full-width reduce over the few leading positions.
    feat = jnp.mean(y, axis=0)                     # (TB, 256)
    # nn.Dropout(0.5) is identity in eval mode.  Linear -> lane-dense padded logits,
    # one sample per sublane row.
    o_ref[...] = _dot_bias(feat, wf, bf)           # (TB, 128)


# ------------------------------- parameters --------------------------------- #

def _conv_weight(key, c_out, c_in, k):
    # kaiming_normal_(mode='fan_out', nonlinearity='relu'): std = sqrt(2 / (c_out * k))
    std = math.sqrt(2.0 / (c_out * k))
    return std * jax.random.normal(key, (c_out, c_in, k), jnp.float32)


def _bn_scale_shift(c):
    # eval-mode BN with gamma=1, beta=0, running_mean=0, running_var=1
    gamma = jnp.ones((c,), jnp.float32)
    beta = jnp.zeros((c,), jnp.float32)
    mean = jnp.zeros((c,), jnp.float32)
    var = jnp.ones((c,), jnp.float32)
    scale = gamma / jnp.sqrt(var + BN_EPS)
    shift = beta - mean * scale
    return scale, shift


def _fold_conv3(w, scale, shift):
    # w: (C_out, C_in, 3) -> (3*C_in, C_out), BN scale folded per output channel.
    c_out, c_in, _ = w.shape
    wf = (jnp.transpose(w, (2, 1, 0)) * scale[None, None, :]).reshape(3 * c_in, c_out)
    return wf, shift.reshape(1, -1)


def _fold_stem(w, scale, shift):
    # w: (64, 1, 3) -> (3, 64) with BN scale folded (C_in == 1 squeezed out).
    wf = jnp.transpose(w, (2, 1, 0))[:, 0, :] * scale[None, :]
    return wf, shift.reshape(1, -1)


def _fold_conv1(w, scale, shift):
    # w: (C_out, C_in, 1) -> (C_in, C_out) with BN scale folded.
    wf = w[:, :, 0].T * scale[None, :]
    return wf, shift.reshape(1, -1)


def make_resnet_params(key, num_classes=NUM_CLASSES):
    ks = jax.random.split(key, 11)
    # stem
    ws, bs = _fold_stem(_conv_weight(ks[0], 64, 1, 3), *_bn_scale_shift(64))
    # layer1: BasicBlock(64 -> 64, stride 1, no downsample)
    w11, b11 = _fold_conv3(_conv_weight(ks[1], 64, 64, 3), *_bn_scale_shift(64))
    w12, b12 = _fold_conv3(_conv_weight(ks[2], 64, 64, 3), *_bn_scale_shift(64))
    # layer2: BasicBlock(64 -> 128, stride 2, downsample conv1x1)
    w21, b21 = _fold_conv3(_conv_weight(ks[3], 128, 64, 3), *_bn_scale_shift(128))
    w22, b22 = _fold_conv3(_conv_weight(ks[4], 128, 128, 3), *_bn_scale_shift(128))
    wd2, bd2 = _fold_conv1(_conv_weight(ks[5], 128, 64, 1), *_bn_scale_shift(128))
    # layer3: BasicBlock(128 -> 256, stride 2, downsample conv1x1)
    w31, b31 = _fold_conv3(_conv_weight(ks[6], 256, 128, 3), *_bn_scale_shift(256))
    w32, b32 = _fold_conv3(_conv_weight(ks[7], 256, 256, 3), *_bn_scale_shift(256))
    wd3, bd3 = _fold_conv1(_conv_weight(ks[8], 256, 128, 1), *_bn_scale_shift(256))
    # fc: Linear(256, num_classes), zero-padded to 128 output lanes.
    bound = 1.0 / math.sqrt(256.0)
    w_fc = jax.random.uniform(ks[9], (num_classes, 256), jnp.float32, -bound, bound)
    b_fc = jax.random.uniform(ks[10], (num_classes,), jnp.float32, -bound, bound)
    wf = jnp.zeros((256, PAD_CLASSES), jnp.float32).at[:, :num_classes].set(w_fc.T)
    bf = jnp.zeros((1, PAD_CLASSES), jnp.float32).at[:, :num_classes].set(b_fc)
    return [ws, bs, w11, b11, w12, b12, w21, b21, w22, b22, wd2, bd2,
            w31, b31, w32, b32, wd3, bd3, wf, bf]


# --------------------------------- forward ----------------------------------- #

def resnet_forward(x, params, num_classes=NUM_CLASSES, tb=None):
    """x: (N, 1, L) float32 (PyTorch NCL). Whole network in ONE pallas_call."""
    N, c_in, L = x.shape
    assert c_in == 1, "stem is Conv1d(1, 64, ...)"
    assert L % 8 == 0, "need L divisible by 8 (three stride-2 stages)"

    # TB samples per grid step (multiple of 8 for sublane alignment). The default
    # keeps >= 2 grid steps once N >= 16 so v7x can shard across both TensorCores;
    # tiny batches fit in a single step.
    if tb is None:
        tb = min(128, max(8, _cdiv(_cdiv(N, 2), 8) * 8))
    else:
        tb = max(8, _cdiv(tb, 8) * 8)
    grid = max(1, _cdiv(N, tb))
    n_pad = grid * tb

    xs = x[:, 0, :].astype(jnp.float32)            # raw (N, L) signal; taps built in-kernel
    if n_pad != N:
        xs = jnp.pad(xs, ((0, n_pad - N), (0, 0)))

    args = [xs] + list(params)
    in_specs = [pl.BlockSpec((tb, L), lambda g: (g, 0))]
    # Weights (~1.9 MB f32): full-array VMEM-resident blocks with a constant index_map.
    # TODO(synk): mark these pl.Buffered(1) to drop the double-buffer copy once
    # single-buffered invariant operands are universally supported.
    in_specs += [pl.BlockSpec(p.shape, lambda g: (0, 0)) for p in params]
    out_specs = pl.BlockSpec((tb, PAD_CLASSES), lambda g: (g, 0))

    # Advisory cost estimate (conv/fc MACs).
    lp, l2, l3 = L // 2, L // 4, L // 8
    macs_per_sample = (L * 3 * 64
                       + 2 * lp * 192 * 64
                       + l2 * (192 * 128 + 384 * 128 + 64 * 128)
                       + l3 * (384 * 256 + 768 * 256 + 128 * 256)
                       + 256 * PAD_CLASSES)
    w_bytes = sum(int(p.size) * 4 for p in params)
    cost = pl.CostEstimate(
        flops=2 * n_pad * macs_per_sample,
        transcendentals=0,
        bytes_accessed=n_pad * L * 4 + n_pad * PAD_CLASSES * 4 + grid * w_bytes)

    out = pl.pallas_call(
        _resnet_kernel,
        out_shape=jax.ShapeDtypeStruct((n_pad, PAD_CLASSES), jnp.float32),
        grid=(grid,),
        in_specs=in_specs,
        out_specs=out_specs,
        compiler_params=pltpu.CompilerParams(
            dimension_semantics=("parallel",),
            vmem_limit_bytes=32 * 1024 * 1024),
        cost_estimate=cost,
    )(*args)
    return out[:N, :num_classes]


# ----------------------------------- main ------------------------------------ #

if __name__ == "__main__":
    key = jax.random.PRNGKey(0)
    kx, kp = jax.random.split(key)
    # Conv1d(1, 64, ...) => single input channel; small 1-D signal of length 16.
    x = jax.random.normal(kx, (2, 1, 16), jnp.float32)
    params = make_resnet_params(kp, num_classes=NUM_CLASSES)

    fwd = jax.jit(resnet_forward)
    out = jax.block_until_ready(fwd(x, params))
    assert out.shape == (2, NUM_CLASSES), out.shape
    assert bool(jnp.all(jnp.isfinite(out)))
    print("KERNEL_OK")
</pallas_src>

<mosaic_0001>
module attributes {stable_mosaic.version = 11 : i64} {
  func.func @_resnet_kernel(%arg0: i32, %arg1: memref<8x16xf32, #tpu.memory_space<vmem>>, %arg2: memref<3x64xf32, #tpu.memory_space<vmem>>, %arg3: memref<1x64xf32, #tpu.memory_space<vmem>>, %arg4: memref<192x64xf32, #tpu.memory_space<vmem>>, %arg5: memref<1x64xf32, #tpu.memory_space<vmem>>, %arg6: memref<192x64xf32, #tpu.memory_space<vmem>>, %arg7: memref<1x64xf32, #tpu.memory_space<vmem>>, %arg8: memref<192x128xf32, #tpu.memory_space<vmem>>, %arg9: memref<1x128xf32, #tpu.memory_space<vmem>>, %arg10: memref<384x128xf32, #tpu.memory_space<vmem>>, %arg11: memref<1x128xf32, #tpu.memory_space<vmem>>, %arg12: memref<64x128xf32, #tpu.memory_space<vmem>>, %arg13: memref<1x128xf32, #tpu.memory_space<vmem>>, %arg14: memref<384x256xf32, #tpu.memory_space<vmem>>, %arg15: memref<1x256xf32, #tpu.memory_space<vmem>>, %arg16: memref<768x256xf32, #tpu.memory_space<vmem>>, %arg17: memref<1x256xf32, #tpu.memory_space<vmem>>, %arg18: memref<128x256xf32, #tpu.memory_space<vmem>>, %arg19: memref<1x256xf32, #tpu.memory_space<vmem>>, %arg20: memref<256x128xf32, #tpu.memory_space<vmem>>, %arg21: memref<1x128xf32, #tpu.memory_space<vmem>>, %arg22: memref<8x128xf32, #tpu.memory_space<vmem>>) attributes {dimension_semantics = [#tpu.dimension_semantics<parallel>], iteration_bounds = array<i64: 1>, scalar_prefetch = 0 : i64, scratch_operands = 0 : i64, tpu.core_type = #tpu.core_type<tc>, window_params = [{transform_indices = @transform_0, window_bounds = array<i64: 8, 16>}, {pipeline_mode = #tpu.pipeline_mode<synchronous>, transform_indices = @transform_1, window_bounds = array<i64: 3, 64>}, {pipeline_mode = #tpu.pipeline_mode<synchronous>, transform_indices = @transform_2, window_bounds = array<i64: 1, 64>}, {pipeline_mode = #tpu.pipeline_mode<synchronous>, transform_indices = @transform_3, window_bounds = array<i64: 192, 64>}, {pipeline_mode = #tpu.pipeline_mode<synchronous>, transform_indices = @transform_4, window_bounds = array<i64: 1, 64>}, {pipeline_mode = #tpu.pipeline_mode<synchronous>, transform_indices = @transform_5, window_bounds = array<i64: 192, 64>}, {pipeline_mode = #tpu.pipeline_mode<synchronous>, transform_indices = @transform_6, window_bounds = array<i64: 1, 64>}, {pipeline_mode = #tpu.pipeline_mode<synchronous>, transform_indices = @transform_7, window_bounds = array<i64: 192, 128>}, {pipeline_mode = #tpu.pipeline_mode<synchronous>, transform_indices = @transform_8, window_bounds = array<i64: 1, 128>}, {pipeline_mode = #tpu.pipeline_mode<synchronous>, transform_indices = @transform_9, window_bounds = array<i64: 384, 128>}, {pipeline_mode = #tpu.pipeline_mode<synchronous>, transform_indices = @transform_10, window_bounds = array<i64: 1, 128>}, {pipeline_mode = #tpu.pipeline_mode<synchronous>, transform_indices = @transform_11, window_bounds = array<i64: 64, 128>}, {pipeline_mode = #tpu.pipeline_mode<synchronous>, transform_indices = @transform_12, window_bounds = array<i64: 1, 128>}, {pipeline_mode = #tpu.pipeline_mode<synchronous>, transform_indices = @transform_13, window_bounds = array<i64: 384, 256>}, {pipeline_mode = #tpu.pipeline_mode<synchronous>, transform_indices = @transform_14, window_bounds = array<i64: 1, 256>}, {pipeline_mode = #tpu.pipeline_mode<synchronous>, transform_indices = @transform_15, window_bounds = array<i64: 768, 256>}, {pipeline_mode = #tpu.pipeline_mode<synchronous>, transform_indices = @transform_16, window_bounds = array<i64: 1, 256>}, {pipeline_mode = #tpu.pipeline_mode<synchronous>, transform_indices = @transform_17, window_bounds = array<i64: 128, 256>}, {pipeline_mode = #tpu.pipeline_mode<synchronous>, transform_indices = @transform_18, window_bounds = array<i64: 1, 256>}, {pipeline_mode = #tpu.pipeline_mode<synchronous>, transform_indices = @transform_19, window_bounds = array<i64: 256, 128>}, {pipeline_mode = #tpu.pipeline_mode<synchronous>, transform_indices = @transform_20, window_bounds = array<i64: 1, 128>}, {transform_indices = @transform_21, window_bounds = array<i64: 8, 128>}]} {
    %c0 = arith.constant 0 : index
    %c0_0 = arith.constant 0 : index
    %0 = vector.load %arg1[%c0, %c0_0] : memref<8x16xf32, #tpu.memory_space<vmem>>, vector<8x16xf32>
    %1 = tpu.transpose %0, [1, 0] : vector<8x16xf32> -> vector<16x8xf32>
    %c0_1 = arith.constant 0 : index
    %c0_2 = arith.constant 0 : index
    %2 = vector.load %arg2[%c0_1, %c0_2] : memref<3x64xf32, #tpu.memory_space<vmem>>, vector<3x64xf32>
    %cst = arith.constant 0.000000e+00 : f32
    %3 = vector.broadcast %cst : f32 to vector<1x8xf32>
    %4 = vector.extract_strided_slice %1 {offsets = [0, 0], sizes = [15, 8], strides = [1, 1]} : vector<16x8xf32> to vector<15x8xf32>
    %5 = tpu.concatenate %3, %4 in 0 : vector<1x8xf32>, vector<15x8xf32> -> vector<16x8xf32>
    %6 = vector.shape_cast %5 : vector<16x8xf32> to vector<16x8x1xf32>
    %7 = vector.extract_strided_slice %2 {offsets = [0, 0], sizes = [1, 64], strides = [1, 1]} : vector<3x64xf32> to vector<1x64xf32>
    %8 = vector.shape_cast %7 : vector<1x64xf32> to vector<1x1x64xf32>
    %9 = vector.broadcast %6 : vector<16x8x1xf32> to vector<16x8x64xf32>
    %10 = vector.broadcast %8 : vector<1x1x64xf32> to vector<16x8x64xf32>
    %11 = arith.mulf %9, %10 : vector<16x8x64xf32>
    %12 = vector.shape_cast %1 : vector<16x8xf32> to vector<16x8x1xf32>
    %13 = vector.extract_strided_slice %2 {offsets = [1, 0], sizes = [1, 64], strides = [1, 1]} : vector<3x64xf32> to vector<1x64xf32>
    %14 = vector.shape_cast %13 : vector<1x64xf32> to vector<1x1x64xf32>
    %15 = vector.broadcast %12 : vector<16x8x1xf32> to vector<16x8x64xf32>
    %16 = vector.broadcast %14 : vector<1x1x64xf32> to vector<16x8x64xf32>
    %17 = arith.mulf %15, %16 : vector<16x8x64xf32>
    %18 = arith.addf %11, %17 : vector<16x8x64xf32>
    %19 = vector.extract_strided_slice %1 {offsets = [1, 0], sizes = [15, 8], strides = [1, 1]} : vector<16x8xf32> to vector<15x8xf32>
    %cst_3 = arith.constant 0.000000e+00 : f32
    %20 = vector.broadcast %cst_3 : f32 to vector<1x8xf32>
    %21 = tpu.concatenate %19, %20 in 0 : vector<15x8xf32>, vector<1x8xf32> -> vector<16x8xf32>
    %22 = vector.shape_cast %21 : vector<16x8xf32> to vector<16x8x1xf32>
    %23 = vector.extract_strided_slice %2 {offsets = [2, 0], sizes = [1, 64], strides = [1, 1]} : vector<3x64xf32> to vector<1x64xf32>
    %24 = vector.shape_cast %23 : vector<1x64xf32> to vector<1x1x64xf32>
    %25 = vector.broadcast %22 : vector<16x8x1xf32> to vector<16x8x64xf32>
    %26 = vector.broadcast %24 : vector<1x1x64xf32> to vector<16x8x64xf32>
    %27 = arith.mulf %25, %26 : vector<16x8x64xf32>
    %28 = arith.addf %18, %27 : vector<16x8x64xf32>
    %c0_4 = arith.constant 0 : index
    %c0_5 = arith.constant 0 : index
    %29 = vector.load %arg3[%c0_4, %c0_5] : memref<1x64xf32, #tpu.memory_space<vmem>>, vector<1x64xf32>
    %30 = vector.shape_cast %29 : vector<1x64xf32> to vector<1x1x64xf32>
    %31 = vector.broadcast %30 : vector<1x1x64xf32> to vector<16x8x64xf32>
    %32 = arith.addf %28, %31 : vector<16x8x64xf32>
    %cst_6 = arith.constant 0.000000e+00 : f32
    %33 = vector.broadcast %cst_6 : f32 to vector<16x8x64xf32>
    %34 = arith.maximumf %32, %33 : vector<16x8x64xf32>
    %35 = vector.shape_cast %34 : vector<16x8x64xf32> to vector<8x2x8x64xf32>
    %36 = vector.extract_strided_slice %35 {offsets = [0, 0, 0, 0], sizes = [8, 1, 8, 64], strides = [1, 1, 1, 1]} : vector<8x2x8x64xf32> to vector<8x1x8x64xf32>
    %37 = vector.shape_cast %36 : vector<8x1x8x64xf32> to vector<8x8x64xf32>
    %38 = vector.extract_strided_slice %35 {offsets = [0, 1, 0, 0], sizes = [8, 1, 8, 64], strides = [1, 1, 1, 1]} : vector<8x2x8x64xf32> to vector<8x1x8x64xf32>
    %39 = vector.shape_cast %38 : vector<8x1x8x64xf32> to vector<8x8x64xf32>
    %cst_7 = arith.constant 0.000000e+00 : f32
    %40 = vector.broadcast %cst_7 : f32 to vector<1x8x64xf32>
    %41 = vector.extract_strided_slice %39 {offsets = [0, 0, 0], sizes = [7, 8, 64], strides = [1, 1, 1]} : vector<8x8x64xf32> to vector<7x8x64xf32>
    %42 = tpu.concatenate %40, %41 in 0 : vector<1x8x64xf32>, vector<7x8x64xf32> -> vector<8x8x64xf32>
    %43 = arith.maximumf %42, %37 : vector<8x8x64xf32>
    %44 = arith.maximumf %43, %39 : vector<8x8x64xf32>
    %cst_8 = arith.constant 0.000000e+00 : f32
    %45 = vector.broadcast %cst_8 : f32 to vector<1x8x64xf32>
    %46 = vector.extract_strided_slice %44 {offsets = [0, 0, 0], sizes = [7, 8, 64], strides = [1, 1, 1]} : vector<8x8x64xf32> to vector<7x8x64xf32>
    %47 = tpu.concatenate %45, %46 in 0 : vector<1x8x64xf32>, vector<7x8x64xf32> -> vector<8x8x64xf32>
    %48 = vector.extract_strided_slice %44 {offsets = [1, 0, 0], sizes = [7, 8, 64], strides = [1, 1, 1]} : vector<8x8x64xf32> to vector<7x8x64xf32>
    %cst_9 = arith.constant 0.000000e+00 : f32
    %49 = vector.broadcast %cst_9 : f32 to vector<1x8x64xf32>
    %50 = tpu.concatenate %48, %49 in 0 : vector<7x8x64xf32>, vector<1x8x64xf32> -> vector<8x8x64xf32>
    %51 = tpu.concatenate %47, %44, %50 in 2 : vector<8x8x64xf32>, vector<8x8x64xf32>, vector<8x8x64xf32> -> vector<8x8x192xf32>
    %52 = vector.shape_cast %51 : vector<8x8x192xf32> to vector<64x192xf32>
    %c0_10 = arith.constant 0 : index
    %c0_11 = arith.constant 0 : index
    %53 = vector.load %arg4[%c0_10, %c0_11] : memref<192x64xf32, #tpu.memory_space<vmem>>, vector<192x64xf32>
    %cst_12 = arith.constant dense<0.000000e+00> : vector<64x64xf32>
    %54 = tpu.matmul %52, %53, %cst_12 {dimension_numbers = #tpu.dot_dimension_numbers<[1], [0], [0], [1], [0, 0, 1, 1], [], []>} : vector<64x192xf32>, vector<192x64xf32>, vector<64x64xf32> -> vector<64x64xf32>
    %c0_13 = arith.constant 0 : index
    %c0_14 = arith.constant 0 : index
    %55 = vector.load %arg5[%c0_13, %c0_14] : memref<1x64xf32, #tpu.memory_space<vmem>>, vector<1x64xf32>
    %56 = vector.broadcast %55 : vector<1x64xf32> to vector<64x64xf32>
    %57 = arith.addf %54, %56 : vector<64x64xf32>
    %58 = vector.shape_cast %57 : vector<64x64xf32> to vector<8x8x64xf32>
    %cst_15 = arith.constant 0.000000e+00 : f32
    %59 = vector.broadcast %cst_15 : f32 to vector<8x8x64xf32>
    %60 = arith.maximumf %58, %59 : vector<8x8x64xf32>
    %cst_16 = arith.constant 0.000000e+00 : f32
    %61 = vector.broadcast %cst_16 : f32 to vector<1x8x64xf32>
    %62 = vector.extract_strided_slice %60 {offsets = [0, 0, 0], sizes = [7, 8, 64], strides = [1, 1, 1]} : vector<8x8x64xf32> to vector<7x8x64xf32>
    %63 = tpu.concatenate %61, %62 in 0 : vector<1x8x64xf32>, vector<7x8x64xf32> -> vector<8x8x64xf32>
    %64 = vector.extract_strided_slice %60 {offsets = [1, 0, 0], sizes = [7, 8, 64], strides = [1, 1, 1]} : vector<8x8x64xf32> to vector<7x8x64xf32>
    %cst_17 = arith.constant 0.000000e+00 : f32
    %65 = vector.broadcast %cst_17 : f32 to vector<1x8x64xf32>
    %66 = tpu.concatenate %64, %65 in 0 : vector<7x8x64xf32>, vector<1x8x64xf32> -> vector<8x8x64xf32>
    %67 = tpu.concatenate %63, %60, %66 in 2 : vector<8x8x64xf32>, vector<8x8x64xf32>, vector<8x8x64xf32> -> vector<8x8x192xf32>
    %68 = vector.shape_cast %67 : vector<8x8x192xf32> to vector<64x192xf32>
    %c0_18 = arith.constant 0 : index
    %c0_19 = arith.constant 0 : index
    %69 = vector.load %arg6[%c0_18, %c0_19] : memref<192x64xf32, #tpu.memory_space<vmem>>, vector<192x64xf32>
    %cst_20 = arith.constant dense<0.000000e+00> : vector<64x64xf32>
    %70 = tpu.matmul %68, %69, %cst_20 {dimension_numbers = #tpu.dot_dimension_numbers<[1], [0], [0], [1], [0, 0, 1, 1], [], []>} : vector<64x192xf32>, vector<192x64xf32>, vector<64x64xf32> -> vector<64x64xf32>
    %c0_21 = arith.constant 0 : index
    %c0_22 = arith.constant 0 : index
    %71 = vector.load %arg7[%c0_21, %c0_22] : memref<1x64xf32, #tpu.memory_space<vmem>>, vector<1x64xf32>
    %72 = vector.broadcast %71 : vector<1x64xf32> to vector<64x64xf32>
    %73 = arith.addf %70, %72 : vector<64x64xf32>
    %74 = vector.shape_cast %73 : vector<64x64xf32> to vector<8x8x64xf32>
    %75 = arith.addf %74, %44 : vector<8x8x64xf32>
    %cst_23 = arith.constant 0.000000e+00 : f32
    %76 = vector.broadcast %cst_23 : f32 to vector<8x8x64xf32>
    %77 = arith.maximumf %75, %76 : vector<8x8x64xf32>
    %78 = vector.shape_cast %77 : vector<8x8x64xf32> to vector<4x2x8x64xf32>
    %79 = vector.extract_strided_slice %78 {offsets = [0, 0, 0, 0], sizes = [4, 1, 8, 64], strides = [1, 1, 1, 1]} : vector<4x2x8x64xf32> to vector<4x1x8x64xf32>
    %80 = vector.shape_cast %79 : vector<4x1x8x64xf32> to vector<4x8x64xf32>
    %81 = vector.shape_cast %80 : vector<4x8x64xf32> to vector<32x64xf32>
    %c0_24 = arith.constant 0 : index
    %c0_25 = arith.constant 0 : index
    %82 = vector.load %arg12[%c0_24, %c0_25] : memref<64x128xf32, #tpu.memory_space<vmem>>, vector<64x128xf32>
    %cst_26 = arith.constant dense<0.000000e+00> : vector<32x128xf32>
    %83 = tpu.matmul %81, %82, %cst_26 {dimension_numbers = #tpu.dot_dimension_numbers<[1], [0], [0], [1], [0, 0, 1, 1], [], []>} : vector<32x64xf32>, vector<64x128xf32>, vector<32x128xf32> -> vector<32x128xf32>
    %c0_27 = arith.constant 0 : index
    %c0_28 = arith.constant 0 : index
    %84 = vector.load %arg13[%c0_27, %c0_28] : memref<1x128xf32, #tpu.memory_space<vmem>>, vector<1x128xf32>
    %85 = vector.broadcast %84 : vector<1x128xf32> to vector<32x128xf32>
    %86 = arith.addf %83, %85 : vector<32x128xf32>
    %87 = vector.shape_cast %86 : vector<32x128xf32> to vector<4x8x128xf32>
    %88 = vector.shape_cast %77 : vector<8x8x64xf32> to vector<4x2x8x64xf32>
    %89 = vector.extract_strided_slice %88 {offsets = [0, 0, 0, 0], sizes = [4, 1, 8, 64], strides = [1, 1, 1, 1]} : vector<4x2x8x64xf32> to vector<4x1x8x64xf32>
    %90 = vector.shape_cast %89 : vector<4x1x8x64xf32> to vector<4x8x64xf32>
    %91 = vector.extract_strided_slice %88 {offsets = [0, 1, 0, 0], sizes = [4, 1, 8, 64], strides = [1, 1, 1, 1]} : vector<4x2x8x64xf32> to vector<4x1x8x64xf32>
    %92 = vector.shape_cast %91 : vector<4x1x8x64xf32> to vector<4x8x64xf32>
    %cst_29 = arith.constant 0.000000e+00 : f32
    %93 = vector.broadcast %cst_29 : f32 to vector<1x8x64xf32>
    %94 = vector.extract_strided_slice %92 {offsets = [0, 0, 0], sizes = [3, 8, 64], strides = [1, 1, 1]} : vector<4x8x64xf32> to vector<3x8x64xf32>
    %95 = tpu.concatenate %93, %94 in 0 : vector<1x8x64xf32>, vector<3x8x64xf32> -> vector<4x8x64xf32>
    %96 = tpu.concatenate %95, %90, %92 in 2 : vector<4x8x64xf32>, vector<4x8x64xf32>, vector<4x8x64xf32> -> vector<4x8x192xf32>
    %97 = vector.shape_cast %96 : vector<4x8x192xf32> to vector<32x192xf32>
    %c0_30 = arith.constant 0 : index
    %c0_31 = arith.constant 0 : index
    %98 = vector.load %arg8[%c0_30, %c0_31] : memref<192x128xf32, #tpu.memory_space<vmem>>, vector<192x128xf32>
    %cst_32 = arith.constant dense<0.000000e+00> : vector<32x128xf32>
    %99 = tpu.matmul %97, %98, %cst_32 {dimension_numbers = #tpu.dot_dimension_numbers<[1], [0], [0], [1], [0, 0, 1, 1], [], []>} : vector<32x192xf32>, vector<192x128xf32>, vector<32x128xf32> -> vector<32x128xf32>
    %c0_33 = arith.constant 0 : index
    %c0_34 = arith.constant 0 : index
    %100 = vector.load %arg9[%c0_33, %c0_34] : memref<1x128xf32, #tpu.memory_space<vmem>>, vector<1x128xf32>
    %101 = vector.broadcast %100 : vector<1x128xf32> to vector<32x128xf32>
    %102 = arith.addf %99, %101 : vector<32x128xf32>
    %103 = vector.shape_cast %102 : vector<32x128xf32> to vector<4x8x128xf32>
    %cst_35 = arith.constant 0.000000e+00 : f32
    %104 = vector.broadcast %cst_35 : f32 to vector<4x8x128xf32>
    %105 = arith.maximumf %103, %104 : vector<4x8x128xf32>
    %cst_36 = arith.constant 0.000000e+00 : f32
    %106 = vector.broadcast %cst_36 : f32 to vector<1x8x128xf32>
    %107 = vector.extract_strided_slice %105 {offsets = [0, 0, 0], sizes = [3, 8, 128], strides = [1, 1, 1]} : vector<4x8x128xf32> to vector<3x8x128xf32>
    %108 = tpu.concatenate %106, %107 in 0 : vector<1x8x128xf32>, vector<3x8x128xf32> -> vector<4x8x128xf32>
    %109 = vector.extract_strided_slice %105 {offsets = [1, 0, 0], sizes = [3, 8, 128], strides = [1, 1, 1]} : vector<4x8x128xf32> to vector<3x8x128xf32>
    %cst_37 = arith.constant 0.000000e+00 : f32
    %110 = vector.broadcast %cst_37 : f32 to vector<1x8x128xf32>
    %111 = tpu.concatenate %109, %110 in 0 : vector<3x8x128xf32>, vector<1x8x128xf32> -> vector<4x8x128xf32>
    %112 = tpu.concatenate %108, %105, %111 in 2 : vector<4x8x128xf32>, vector<4x8x128xf32>, vector<4x8x128xf32> -> vector<4x8x384xf32>
    %113 = vector.shape_cast %112 : vector<4x8x384xf32> to vector<32x384xf32>
    %c0_38 = arith.constant 0 : index
    %c0_39 = arith.constant 0 : index
    %114 = vector.load %arg10[%c0_38, %c0_39] : memref<384x128xf32, #tpu.memory_space<vmem>>, vector<384x128xf32>
    %cst_40 = arith.constant dense<0.000000e+00> : vector<32x128xf32>
    %115 = tpu.matmul %113, %114, %cst_40 {dimension_numbers = #tpu.dot_dimension_numbers<[1], [0], [0], [1], [0, 0, 1, 1], [], []>} : vector<32x384xf32>, vector<384x128xf32>, vector<32x128xf32> -> vector<32x128xf32>
    %c0_41 = arith.constant 0 : index
    %c0_42 = arith.constant 0 : index
    %116 = vector.load %arg11[%c0_41, %c0_42] : memref<1x128xf32, #tpu.memory_space<vmem>>, vector<1x128xf32>
    %117 = vector.broadcast %116 : vector<1x128xf32> to vector<32x128xf32>
    %118 = arith.addf %115, %117 : vector<32x128xf32>
    %119 = vector.shape_cast %118 : vector<32x128xf32> to vector<4x8x128xf32>
    %120 = arith.addf %119, %87 : vector<4x8x128xf32>
    %cst_43 = arith.constant 0.000000e+00 : f32
    %121 = vector.broadcast %cst_43 : f32 to vector<4x8x128xf32>
    %122 = arith.maximumf %120, %121 : vector<4x8x128xf32>
    %123 = vector.shape_cast %122 : vector<4x8x128xf32> to vector<2x2x8x128xf32>
    %124 = vector.extract_strided_slice %123 {offsets = [0, 0, 0, 0], sizes = [2, 1, 8, 128], strides = [1, 1, 1, 1]} : vector<2x2x8x128xf32> to vector<2x1x8x128xf32>
    %125 = vector.shape_cast %124 : vector<2x1x8x128xf32> to vector<2x8x128xf32>
    %126 = vector.shape_cast %125 : vector<2x8x128xf32> to vector<16x128xf32>
    %c0_44 = arith.constant 0 : index
    %c0_45 = arith.constant 0 : index
    %127 = vector.load %arg18[%c0_44, %c0_45] : memref<128x256xf32, #tpu.memory_space<vmem>>, vector<128x256xf32>
    %cst_46 = arith.constant dense<0.000000e+00> : vector<16x256xf32>
    %128 = tpu.matmul %126, %127, %cst_46 {dimension_numbers = #tpu.dot_dimension_numbers<[1], [0], [0], [1], [0, 0, 1, 1], [], []>} : vector<16x128xf32>, vector<128x256xf32>, vector<16x256xf32> -> vector<16x256xf32>
    %c0_47 = arith.constant 0 : index
    %c0_48 = arith.constant 0 : index
    %129 = vector.load %arg19[%c0_47, %c0_48] : memref<1x256xf32, #tpu.memory_space<vmem>>, vector<1x256xf32>
    %130 = vector.broadcast %129 : vector<1x256xf32> to vector<16x256xf32>
    %131 = arith.addf %128, %130 : vector<16x256xf32>
    %132 = vector.shape_cast %131 : vector<16x256xf32> to vector<2x8x256xf32>
    %133 = vector.shape_cast %122 : vector<4x8x128xf32> to vector<2x2x8x128xf32>
    %134 = vector.extract_strided_slice %133 {offsets = [0, 0, 0, 0], sizes = [2, 1, 8, 128], strides = [1, 1, 1, 1]} : vector<2x2x8x128xf32> to vector<2x1x8x128xf32>
    %135 = vector.shape_cast %134 : vector<2x1x8x128xf32> to vector<2x8x128xf32>
    %136 = vector.extract_strided_slice %133 {offsets = [0, 1, 0, 0], sizes = [2, 1, 8, 128], strides = [1, 1, 1, 1]} : vector<2x2x8x128xf32> to vector<2x1x8x128xf32>
    %137 = vector.shape_cast %136 : vector<2x1x8x128xf32> to vector<2x8x128xf32>
    %cst_49 = arith.constant 0.000000e+00 : f32
    %138 = vector.broadcast %cst_49 : f32 to vector<1x8x128xf32>
    %139 = vector.extract_strided_slice %137 {offsets = [0, 0, 0], sizes = [1, 8, 128], strides = [1, 1, 1]} : vector<2x8x128xf32> to vector<1x8x128xf32>
    %140 = tpu.concatenate %138, %139 in 0 : vector<1x8x128xf32>, vector<1x8x128xf32> -> vector<2x8x128xf32>
    %141 = tpu.concatenate %140, %135, %137 in 2 : vector<2x8x128xf32>, vector<2x8x128xf32>, vector<2x8x128xf32> -> vector<2x8x384xf32>
    %142 = vector.shape_cast %141 : vector<2x8x384xf32> to vector<16x384xf32>
    %c0_50 = arith.constant 0 : index
    %c0_51 = arith.constant 0 : index
    %143 = vector.load %arg14[%c0_50, %c0_51] : memref<384x256xf32, #tpu.memory_space<vmem>>, vector<384x256xf32>
    %cst_52 = arith.constant dense<0.000000e+00> : vector<16x256xf32>
    %144 = tpu.matmul %142, %143, %cst_52 {dimension_numbers = #tpu.dot_dimension_numbers<[1], [0], [0], [1], [0, 0, 1, 1], [], []>} : vector<16x384xf32>, vector<384x256xf32>, vector<16x256xf32> -> vector<16x256xf32>
    %c0_53 = arith.constant 0 : index
    %c0_54 = arith.constant 0 : index
    %145 = vector.load %arg15[%c0_53, %c0_54] : memref<1x256xf32, #tpu.memory_space<vmem>>, vector<1x256xf32>
    %146 = vector.broadcast %145 : vector<1x256xf32> to vector<16x256xf32>
    %147 = arith.addf %144, %146 : vector<16x256xf32>
    %148 = vector.shape_cast %147 : vector<16x256xf32> to vector<2x8x256xf32>
    %cst_55 = arith.constant 0.000000e+00 : f32
    %149 = vector.broadcast %cst_55 : f32 to vector<2x8x256xf32>
    %150 = arith.maximumf %148, %149 : vector<2x8x256xf32>
    %cst_56 = arith.constant 0.000000e+00 : f32
    %151 = vector.broadcast %cst_56 : f32 to vector<1x8x256xf32>
    %152 = vector.extract_strided_slice %150 {offsets = [0, 0, 0], sizes = [1, 8, 256], strides = [1, 1, 1]} : vector<2x8x256xf32> to vector<1x8x256xf32>
    %153 = tpu.concatenate %151, %152 in 0 : vector<1x8x256xf32>, vector<1x8x256xf32> -> vector<2x8x256xf32>
    %154 = vector.extract_strided_slice %150 {offsets = [1, 0, 0], sizes = [1, 8, 256], strides = [1, 1, 1]} : vector<2x8x256xf32> to vector<1x8x256xf32>
    %cst_57 = arith.constant 0.000000e+00 : f32
    %155 = vector.broadcast %cst_57 : f32 to vector<1x8x256xf32>
    %156 = tpu.concatenate %154, %155 in 0 : vector<1x8x256xf32>, vector<1x8x256xf32> -> vector<2x8x256xf32>
    %157 = tpu.concatenate %153, %150, %156 in 2 : vector<2x8x256xf32>, vector<2x8x256xf32>, vector<2x8x256xf32> -> vector<2x8x768xf32>
    %158 = vector.shape_cast %157 : vector<2x8x768xf32> to vector<16x768xf32>
    %c0_58 = arith.constant 0 : index
    %c0_59 = arith.constant 0 : index
    %159 = vector.load %arg16[%c0_58, %c0_59] : memref<768x256xf32, #tpu.memory_space<vmem>>, vector<768x256xf32>
    %cst_60 = arith.constant dense<0.000000e+00> : vector<16x256xf32>
    %160 = tpu.matmul %158, %159, %cst_60 {dimension_numbers = #tpu.dot_dimension_numbers<[1], [0], [0], [1], [0, 0, 1, 1], [], []>} : vector<16x768xf32>, vector<768x256xf32>, vector<16x256xf32> -> vector<16x256xf32>
    %c0_61 = arith.constant 0 : index
    %c0_62 = arith.constant 0 : index
    %161 = vector.load %arg17[%c0_61, %c0_62] : memref<1x256xf32, #tpu.memory_space<vmem>>, vector<1x256xf32>
    %162 = vector.broadcast %161 : vector<1x256xf32> to vector<16x256xf32>
    %163 = arith.addf %160, %162 : vector<16x256xf32>
    %164 = vector.shape_cast %163 : vector<16x256xf32> to vector<2x8x256xf32>
    %165 = arith.addf %164, %132 : vector<2x8x256xf32>
    %cst_63 = arith.constant 0.000000e+00 : f32
    %166 = vector.broadcast %cst_63 : f32 to vector<2x8x256xf32>
    %167 = arith.maximumf %165, %166 : vector<2x8x256xf32>
    %cst_64 = arith.constant dense<0.000000e+00> : vector<8x256xf32>
    %168 = vector.multi_reduction <add>, %167, %cst_64 [0] : vector<2x8x256xf32> to vector<8x256xf32>
    %cst_65 = arith.constant 2.000000e+00 : f32
    %169 = vector.broadcast %cst_65 : f32 to vector<8x256xf32>
    %170 = arith.divf %168, %169 : vector<8x256xf32>
    %c0_66 = arith.constant 0 : index
    %c0_67 = arith.constant 0 : index
    %171 = vector.load %arg20[%c0_66, %c0_67] : memref<256x128xf32, #tpu.memory_space<vmem>>, vector<256x128xf32>
    %cst_68 = arith.constant dense<0.000000e+00> : vector<8x128xf32>
    %172 = tpu.matmul %170, %171, %cst_68 {dimension_numbers = #tpu.dot_dimension_numbers<[1], [0], [0], [1], [0, 0, 1, 1], [], []>} : vector<8x256xf32>, vector<256x128xf32>, vector<8x128xf32> -> vector<8x128xf32>
    %c0_69 = arith.constant 0 : index
    %c0_70 = arith.constant 0 : index
    %173 = vector.load %arg21[%c0_69, %c0_70] : memref<1x128xf32, #tpu.memory_space<vmem>>, vector<1x128xf32>
    %174 = vector.broadcast %173 : vector<1x128xf32> to vector<8x128xf32>
    %175 = arith.addf %172, %174 : vector<8x128xf32>
    %c0_71 = arith.constant 0 : index
    %c0_72 = arith.constant 0 : index
    %176 = vector.load %arg22[%c0_71, %c0_72] : memref<8x128xf32, #tpu.memory_space<vmem>>, vector<8x128xf32>
    tpu.vector_store %arg22[%c0_71, %c0_72], %175 {strides = array<i32>} : memref<8x128xf32, #tpu.memory_space<vmem>>, vector<8x128xf32>,
    return
  }
  func.func @transform_0(%arg0: i32) -> (i32, i32) {
    %c0_i32 = arith.constant 0 : i32
    %c0_i32_0 = arith.constant 0 : i32
    return %arg0, %c0_i32 : i32, i32
  }
  func.func @transform_1(%arg0: i32) -> (i32, i32) {
    %c0_i32 = arith.constant 0 : i32
    %c0_i32_0 = arith.constant 0 : i32
    %c0_i32_1 = arith.constant 0 : i32
    return %c0_i32, %c0_i32_0 : i32, i32
  }
  func.func @transform_2(%arg0: i32) -> (i32, i32) {
    %c0_i32 = arith.constant 0 : i32
    %c0_i32_0 = arith.constant 0 : i32
    %c0_i32_1 = arith.constant 0 : i32
    return %c0_i32, %c0_i32_0 : i32, i32
  }
  func.func @transform_3(%arg0: i32) -> (i32, i32) {
    %c0_i32 = arith.constant 0 : i32
    %c0_i32_0 = arith.constant 0 : i32
    %c0_i32_1 = arith.constant 0 : i32
    return %c0_i32, %c0_i32_0 : i32, i32
  }
  func.func @transform_4(%arg0: i32) -> (i32, i32) {
    %c0_i32 = arith.constant 0 : i32
    %c0_i32_0 = arith.constant 0 : i32
    %c0_i32_1 = arith.constant 0 : i32
    return %c0_i32, %c0_i32_0 : i32, i32
  }
  func.func @transform_5(%arg0: i32) -> (i32, i32) {
    %c0_i32 = arith.constant 0 : i32
    %c0_i32_0 = arith.constant 0 : i32
    %c0_i32_1 = arith.constant 0 : i32
    return %c0_i32, %c0_i32_0 : i32, i32
  }
  func.func @transform_6(%arg0: i32) -> (i32, i32) {
    %c0_i32 = arith.constant 0 : i32
    %c0_i32_0 = arith.constant 0 : i32
    %c0_i32_1 = arith.constant 0 : i32
    return %c0_i32, %c0_i32_0 : i32, i32
  }
  func.func @transform_7(%arg0: i32) -> (i32, i32) {
    %c0_i32 = arith.constant 0 : i32
    %c0_i32_0 = arith.constant 0 : i32
    %c0_i32_1 = arith.constant 0 : i32
    return %c0_i32, %c0_i32_0 : i32, i32
  }
  func.func @transform_8(%arg0: i32) -> (i32, i32) {
    %c0_i32 = arith.constant 0 : i32
    %c0_i32_0 = arith.constant 0 : i32
    %c0_i32_1 = arith.constant 0 : i32
    return %c0_i32, %c0_i32_0 : i32, i32
  }
  func.func @transform_9(%arg0: i32) -> (i32, i32) {
    %c0_i32 = arith.constant 0 : i32
    %c0_i32_0 = arith.constant 0 : i32
    %c0_i32_1 = arith.constant 0 : i32
    return %c0_i32, %c0_i32_0 : i32, i32
  }
  func.func @transform_10(%arg0: i32) -> (i32, i32) {
    %c0_i32 = arith.constant 0 : i32
    %c0_i32_0 = arith.constant 0 : i32
    %c0_i32_1 = arith.constant 0 : i32
    return %c0_i32, %c0_i32_0 : i32, i32
  }
  func.func @transform_11(%arg0: i32) -> (i32, i32) {
    %c0_i32 = arith.constant 0 : i32
    %c0_i32_0 = arith.constant 0 : i32
    %c0_i32_1 = arith.constant 0 : i32
    return %c0_i32, %c0_i32_0 : i32, i32
  }
  func.func @transform_12(%arg0: i32) -> (i32, i32) {
    %c0_i32 = arith.constant 0 : i32
    %c0_i32_0 = arith.constant 0 : i32
    %c0_i32_1 = arith.constant 0 : i32
    return %c0_i32, %c0_i32_0 : i32, i32
  }
  func.func @transform_13(%arg0: i32) -> (i32, i32) {
    %c0_i32 = arith.constant 0 : i32
    %c0_i32_0 = arith.constant 0 : i32
    %c0_i32_1 = arith.constant 0 : i32
    return %c0_i32, %c0_i32_0 : i32, i32
  }
  func.func @transform_14(%arg0: i32) -> (i32, i32) {
    %c0_i32 = arith.constant 0 : i32
    %c0_i32_0 = arith.constant 0 : i32
    %c0_i32_1 = arith.constant 0 : i32
    return %c0_i32, %c0_i32_0 : i32, i32
  }
  func.func @transform_15(%arg0: i32) -> (i32, i32) {
    %c0_i32 = arith.constant 0 : i32
    %c0_i32_0 = arith.constant 0 : i32
    %c0_i32_1 = arith.constant 0 : i32
    return %c0_i32, %c0_i32_0 : i32, i32
  }
  func.func @transform_16(%arg0: i32) -> (i32, i32) {
    %c0_i32 = arith.constant 0 : i32
    %c0_i32_0 = arith.constant 0 : i32
    %c0_i32_1 = arith.constant 0 : i32
    return %c0_i32, %c0_i32_0 : i32, i32
  }
  func.func @transform_17(%arg0: i32) -> (i32, i32) {
    %c0_i32 = arith.constant 0 : i32
    %c0_i32_0 = arith.constant 0 : i32
    %c0_i32_1 = arith.constant 0 : i32
    return %c0_i32, %c0_i32_0 : i32, i32
  }
  func.func @transform_18(%arg0: i32) -> (i32, i32) {
    %c0_i32 = arith.constant 0 : i32
    %c0_i32_0 = arith.constant 0 : i32
    %c0_i32_1 = arith.constant 0 : i32
    return %c0_i32, %c0_i32_0 : i32, i32
  }
  func.func @transform_19(%arg0: i32) -> (i32, i32) {
    %c0_i32 = arith.constant 0 : i32
    %c0_i32_0 = arith.constant 0 : i32
    %c0_i32_1 = arith.constant 0 : i32
    return %c0_i32, %c0_i32_0 : i32, i32
  }
  func.func @transform_20(%arg0: i32) -> (i32, i32) {
    %c0_i32 = arith.constant 0 : i32
    %c0_i32_0 = arith.constant 0 : i32
    %c0_i32_1 = arith.constant 0 : i32
    return %c0_i32, %c0_i32_0 : i32, i32
  }
  func.func @transform_21(%arg0: i32) -> (i32, i32) {
    %c0_i32 = arith.constant 0 : i32
    %c0_i32_0 = arith.constant 0 : i32
    return %arg0, %c0_i32 : i32, i32
  }
}

</mosaic_0001>

<llo_original>
// kernel: resnet_forward.1
$region0: #{resnet_forward.1}
  #allocation0 [shape = 'u32[]', space=smem, size = 0x4, offset = 0x4, fixed_abs, tag = 'smem constant byte address 0x4 - core index']
  #allocation1 [shape = 'u32[144,128]{1,0:T(1,128)}', space=vmem, size = 0x12000, scoped, tag = 'internal scratch']
  %s0 = inlined_call_operand.vmem [shape: f32[8,16], index: 0, kind: input, shape index: {}]
  %s1 = inlined_call_operand.vmem [shape: f32[3,64], index: 1, kind: input, shape index: {}]
  %s2 = inlined_call_operand.vmem [shape: f32[1,64], index: 2, kind: input, shape index: {}]
  %s3 = inlined_call_operand.vmem [shape: f32[192,64], index: 3, kind: input, shape index: {}]
  %s4 = inlined_call_operand.vmem [shape: f32[1,64], index: 4, kind: input, shape index: {}]
  %s5 = inlined_call_operand.vmem [shape: f32[192,64], index: 5, kind: input, shape index: {}]
  %s6 = inlined_call_operand.vmem [shape: f32[1,64], index: 6, kind: input, shape index: {}]
  %s7 = inlined_call_operand.hbm [shape: f32[192,128], index: 7, kind: input, shape index: {}]
  %s8 = inlined_call_operand.vmem [shape: f32[1,128], index: 8, kind: input, shape index: {}]
  %s9 = inlined_call_operand.vmem [shape: f32[384,128], index: 9, kind: input, shape index: {}]
  %s10 = inlined_call_operand.vmem [shape: f32[1,128], index: 10, kind: input, shape index: {}]
  %s11 = inlined_call_operand.hbm [shape: f32[64,128], index: 11, kind: input, shape index: {}]
  %s12 = inlined_call_operand.vmem [shape: f32[1,128], index: 12, kind: input, shape index: {}]
  %s13 = inlined_call_operand.hbm [shape: f32[384,256], index: 13, kind: input, shape index: {}]
  %s14 = inlined_call_operand.vmem [shape: f32[1,256], index: 14, kind: input, shape index: {}]
  %s15 = inlined_call_operand.hbm [shape: f32[768,256], index: 15, kind: input, shape index: {}]
  %s16 = inlined_call_operand.vmem [shape: f32[1,256], index: 16, kind: input, shape index: {}]
  %s17 = inlined_call_operand.vmem [shape: f32[128,256], index: 17, kind: input, shape index: {}]
  %s18 = inlined_call_operand.vmem [shape: f32[1,256], index: 18, kind: input, shape index: {}]
  %s19 = inlined_call_operand.hbm [shape: f32[256,128], index: 19, kind: input, shape index: {}]
  %s20 = inlined_call_operand.vmem [shape: f32[1,128], index: 20, kind: input, shape index: {}]
  %s21 = inlined_call_operand.vmem [shape: f32[8,128], index: 21, kind: output, shape index: {}]
  %s22 = sld [smem:[#allocation0]]
  $region114: #{resnet_forward.1} parent=0
    _
  %s24 = ssub.s32 1, %s22
  %s25 = scalar_select 0, %s24, %s22
  $region1: #{resnet_forward.1} parent=0
    #allocation2 [shape = 'u8[98304]{0}', space=vmem, size = 0x18000, scoped, tag = 'input window, operand 7, single buffered']
    #allocation3 [shape = 's32[1]{0}', space=sflag, size = 0x4, scoped, tag = 'scoped memory for resnet_forward.1']
    #allocation4 [shape = 'u8[32768]{0}', space=vmem, size = 0x8000, scoped, tag = 'input window, operand 11, single buffered']
    #allocation5 [shape = 's32[1]{0}', space=sflag, size = 0x4, scoped, tag = 'scoped memory for resnet_forward.1']
    #allocation6 [shape = 'u8[393216]{0}', space=vmem, size = 0x60000, scoped, tag = 'input window, operand 13, single buffered']
    #allocation7 [shape = 'u8[786432]{0}', space=vmem, size = 0xc0000, scoped, tag = 'input window, operand 15, single buffered']
    #allocation8 [shape = 's32[1]{0}', space=sflag, size = 0x4, scoped, tag = 'scoped memory for resnet_forward.1']
    #allocation9 [shape = 'u8[131072]{0}', space=vmem, size = 0x20000, scoped, tag = 'input window, operand 19, single buffered']
    %26 = vsyncpa [#allocation3], 0
    %27 = vsyncpa [#allocation5], 0
    %28 = vsyncpa [#allocation8], 0
    // Predicated region
    $region2: #{resnet_forward.1} parent=1 // pred_check
      _
    $region3: #{resnet_forward.1} parent=1 // pred_check_branch
      %30 = sbr.rel (0) target = $region5
    $region4: #{resnet_forward.1} parent=1 // pred_region
      _
    $region5: #{resnet_forward.1} parent=1 // pred_fallthru
      _
    // Predicated region
    $region6: #{resnet_forward.1} parent=1 // pred_check
      _
    $region7: #{resnet_forward.1} parent=1 // pred_check_branch
      %32 = sbr.rel (0) target = $region9
    $region8: #{resnet_forward.1} parent=1 // pred_region
      _
    $region9: #{resnet_forward.1} parent=1 // pred_fallthru
      _
    // Predicated region
    $region10: #{resnet_forward.1} parent=1 // pred_check
      _
    $region11: #{resnet_forward.1} parent=1 // pred_check_branch
      %34 = sbr.rel (0) target = $region13
    $region12: #{resnet_forward.1} parent=1 // pred_region
      _
    $region13: #{resnet_forward.1} parent=1 // pred_fallthru
      _
    // Predicated region
    $region14: #{resnet_forward.1} parent=1 // pred_check
      _
    $region15: #{resnet_forward.1} parent=1 // pred_check_branch
      %36 = sbr.rel (0) target = $region17
    $region16: #{resnet_forward.1} parent=1 // pred_region
      _
    $region17: #{resnet_forward.1} parent=1 // pred_fallthru
      _
    // Predicated region
    $region18: #{resnet_forward.1} parent=1 // pred_check
      _
    $region19: #{resnet_forward.1} parent=1 // pred_check_branch
      %38 = sbr.rel (0) target = $region21
    $region20: #{resnet_forward.1} parent=1 // pred_region
      _
    $region21: #{resnet_forward.1} parent=1 // pred_fallthru
      _
    // Predicated region
    $region22: #{resnet_forward.1} parent=1 // pred_check
      _
    $region23: #{resnet_forward.1} parent=1 // pred_check_branch
      %40 = sbr.rel (0) target = $region25
    $region24: #{resnet_forward.1} parent=1 // pred_region
      _
    $region25: #{resnet_forward.1} parent=1 // pred_fallthru
      _
    // Predicated region
    $region26: #{resnet_forward.1} parent=1 // pred_check
      _
    $region27: #{resnet_forward.1} parent=1 // pred_check_branch
      %42 = sbr.rel (0) target = $region29
    $region28: #{resnet_forward.1} parent=1 // pred_region
      _
    $region29: #{resnet_forward.1} parent=1 // pred_fallthru
      _
    // Predicated region
    $region30: #{resnet_forward.1} parent=1 // pred_check
      _
    $region31: #{resnet_forward.1} parent=1 // pred_check_branch
      %44 = sbr.rel (0) target = $region33
    $region32: #{resnet_forward.1} parent=1 // pred_region
      %s46 = ssub.s32 3072, 3072
      %47 = vsyncadd [#allocation3], %s46
      %s48 = sshll.u32 [#allocation2], 4
      %s49 = int_to_ptr.vmem [resolvable:$true] %s48
      %54 = dma.hbm_to_vmem [thread:$0]  %s7, 3072, %s49, [#allocation3], 128, 128, 8
    $region33: #{resnet_forward.1} parent=1 // pred_fallthru
      _
    // Predicated region
    $region34: #{resnet_forward.1} parent=1 // pred_check
      _
    $region35: #{resnet_forward.1} parent=1 // pred_check_branch
      %56 = sbr.rel (0) target = $region37
    $region36: #{resnet_forward.1} parent=1 // pred_region
      _
    $region37: #{resnet_forward.1} parent=1 // pred_fallthru
      _
    // Predicated region
    $region38: #{resnet_forward.1} parent=1 // pred_check
      _
    $region39: #{resnet_forward.1} parent=1 // pred_check_branch
      %58 = sbr.rel (0) target = $region41
    $region40: #{resnet_forward.1} parent=1 // pred_region
      _
    $region41: #{resnet_forward.1} parent=1 // pred_fallthru
      _
    // Predicated region
    $region42: #{resnet_forward.1} parent=1 // pred_check
      _
    $region43: #{resnet_forward.1} parent=1 // pred_check_branch
      %60 = sbr.rel (0) target = $region45
    $region44: #{resnet_forward.1} parent=1 // pred_region
      _
    $region45: #{resnet_forward.1} parent=1 // pred_fallthru
      _
    // Predicated region
    $region46: #{resnet_forward.1} parent=1 // pred_check
      _
    $region47: #{resnet_forward.1} parent=1 // pred_check_branch
      %62 = sbr.rel (0) target = $region49
    $region48: #{resnet_forward.1} parent=1 // pred_region
      %s64 = ssub.s32 1024, 1024
      %65 = vsyncadd [#allocation5], %s64
      %s66 = sshll.u32 [#allocation4], 4
      %s67 = int_to_ptr.vmem [resolvable:$true] %s66
      %72 = dma.hbm_to_vmem [thread:$0]  %s11, 1024, %s67, [#allocation5], 128, 128, 8
    $region49: #{resnet_forward.1} parent=1 // pred_fallthru
      _
    // Predicated region
    $region50: #{resnet_forward.1} parent=1 // pred_check
      _
    $region51: #{resnet_forward.1} parent=1 // pred_check_branch
      %74 = sbr.rel (0) target = $region53
    $region52: #{resnet_forward.1} parent=1 // pred_region
      _
    $region53: #{resnet_forward.1} parent=1 // pred_fallthru
      _
    // Predicated region
    $region54: #{resnet_forward.1} parent=1 // pred_check
      _
    $region55: #{resnet_forward.1} parent=1 // pred_check_branch
      %76 = sbr.rel (0) target = $region57
    $region56: #{resnet_forward.1} parent=1 // pred_region
      %s78 = ssub.s32 12288, 12288
      %79 = vsyncadd [#allocation5], %s78
      %s80 = sshll.u32 [#allocation6], 4
      %s81 = int_to_ptr.vmem [resolvable:$true] %s80
      %86 = dma.hbm_to_vmem [thread:$0]  %s13, 12288, %s81, [#allocation5], 256, 256, 16
    $region57: #{resnet_forward.1} parent=1 // pred_fallthru
      _
    // Predicated region
    $region58: #{resnet_forward.1} parent=1 // pred_check
      _
    $region59: #{resnet_forward.1} parent=1 // pred_check_branch
      %88 = sbr.rel (0) target = $region61
    $region60: #{resnet_forward.1} parent=1 // pred_region
      _
    $region61: #{resnet_forward.1} parent=1 // pred_fallthru
      _
    // Predicated region
    $region62: #{resnet_forward.1} parent=1 // pred_check
      _
    $region63: #{resnet_forward.1} parent=1 // pred_check_branch
      %90 = sbr.rel (0) target = $region65
    $region64: #{resnet_forward.1} parent=1 // pred_region
      %s92 = ssub.s32 24576, 24576
      %93 = vsyncadd [#allocation8], %s92
      %s94 = sshll.u32 [#allocation7], 4
      %s95 = int_to_ptr.vmem [resolvable:$true] %s94
      %100 = dma.hbm_to_vmem [thread:$0]  %s15, 24576, %s95, [#allocation8], 256, 256, 16
    $region65: #{resnet_forward.1} parent=1 // pred_fallthru
      _
    // Predicated region
    $region66: #{resnet_forward.1} parent=1 // pred_check
      _
    $region67: #{resnet_forward.1} parent=1 // pred_check_branch
      %102 = sbr.rel (0) target = $region69
    $region68: #{resnet_forward.1} parent=1 // pred_region
      _
    $region69: #{resnet_forward.1} parent=1 // pred_fallthru
      _
    // Predicated region
    $region70: #{resnet_forward.1} parent=1 // pred_check
      _
    $region71: #{resnet_forward.1} parent=1 // pred_check_branch
      %104 = sbr.rel (0) target = $region73
    $region72: #{resnet_forward.1} parent=1 // pred_region
      _
    $region73: #{resnet_forward.1} parent=1 // pred_fallthru
      _
    // Predicated region
    $region74: #{resnet_forward.1} parent=1 // pred_check
      _
    $region75: #{resnet_forward.1} parent=1 // pred_check_branch
      %106 = sbr.rel (0) target = $region77
    $region76: #{resnet_forward.1} parent=1 // pred_region
      _
    $region77: #{resnet_forward.1} parent=1 // pred_fallthru
      _
    // Predicated region
    $region78: #{resnet_forward.1} parent=1 // pred_check
      _
    $region79: #{resnet_forward.1} parent=1 // pred_check_branch
      %108 = sbr.rel (0) target = $region81
    $region80: #{resnet_forward.1} parent=1 // pred_region
      %s110 = ssub.s32 4096, 4096
      %111 = vsyncadd [#allocation8], %s110
      %s112 = sshll.u32 [#allocation9], 4
      %s113 = int_to_ptr.vmem [resolvable:$true] %s112
      %118 = dma.hbm_to_vmem [thread:$0]  %s19, 4096, %s113, [#allocation8], 128, 128, 8
    $region81: #{resnet_forward.1} parent=1 // pred_fallthru
      _
    // Predicated region
    $region82: #{resnet_forward.1} parent=1 // pred_check
      _
    $region83: #{resnet_forward.1} parent=1 // pred_check_branch
      %120 = sbr.rel (0) target = $region85
    $region84: #{resnet_forward.1} parent=1 // pred_region
      _
    $region85: #{resnet_forward.1} parent=1 // pred_fallthru
      _
    // Predicated region
    $region86: #{resnet_forward.1} parent=1 // pred_check
      _
    $region87: #{resnet_forward.1} parent=1 // pred_check_branch
      %122 = sbr.rel (0) target = $region89
    $region88: #{resnet_forward.1} parent=1 // pred_region
      %123 = dma.done [#allocation3], 3072
    $region89: #{resnet_forward.1} parent=1 // pred_fallthru
      _
    // Predicated region
    $region90: #{resnet_forward.1} parent=1 // pred_check
      _
    $region91: #{resnet_forward.1} parent=1 // pred_check_branch
      %125 = sbr.rel (0) target = $region93
    $region92: #{resnet_forward.1} parent=1 // pred_region
      %126 = dma.done [#allocation5], 1024
    $region93: #{resnet_forward.1} parent=1 // pred_fallthru
      _
    // Predicated region
    $region94: #{resnet_forward.1} parent=1 // pred_check
      _
    $region95: #{resnet_forward.1} parent=1 // pred_check_branch
      %128 = sbr.rel (0) target = $region97
    $region96: #{resnet_forward.1} parent=1 // pred_region
      %129 = dma.done [#allocation5], 12288
    $region97: #{resnet_forward.1} parent=1 // pred_fallthru
      _
    // Predicated region
    $region98: #{resnet_forward.1} parent=1 // pred_check
      _
    $region99: #{resnet_forward.1} parent=1 // pred_check_branch
      %131 = sbr.rel (0) target = $region101
    $region100: #{resnet_forward.1} parent=1 // pred_region
      %132 = dma.done [#allocation8], 24576
    $region101: #{resnet_forward.1} parent=1 // pred_fallthru
      _
    // Predicated region
    $region102: #{resnet_forward.1} parent=1 // pred_check
      _
    $region103: #{resnet_forward.1} parent=1 // pred_check_branch
      %134 = sbr.rel (0) target = $region105
    $region104: #{resnet_forward.1} parent=1 // pred_region
      %135 = dma.done [#allocation8], 4096
    $region105: #{resnet_forward.1} parent=1 // pred_fallthru
      _
    %v136 = vld [vmem:[%s0] sm:$0xff]
    %137 = vxpose.xlu0.b32.start [1/16] %v136, 128
    %138 = vxpose.xlu0.b32.cont [2/16] 0.0, 128
    %139 = vxpose.xlu0.b32.cont [3/16] 0.0, 128
    %140 = vxpose.xlu0.b32.cont [4/16] 0.0, 128
    %141 = vxpose.xlu0.b32.cont [5/16] 0.0, 128
    %142 = vxpose.xlu0.b32.cont [6/16] 0.0, 128
    %143 = vxpose.xlu0.b32.cont [7/16] 0.0, 128
    %144 = vxpose.xlu0.b32.cont [8/16] 0.0, 128
    %145 = vxpose.xlu0.b32.cont [9/16] 0.0, 128
    %146 = vxpose.xlu0.b32.cont [10/16] 0.0, 128
    %147 = vxpose.xlu0.b32.cont [11/16] 0.0, 128
    %148 = vxpose.xlu0.b32.cont [12/16] 0.0, 128
    %149 = vxpose.xlu0.b32.cont [13/16] 0.0, 128
    %150 = vxpose.xlu0.b32.cont [14/16] 0.0, 128
    %151 = vxpose.xlu0.b32.cont [15/16] 0.0, 128
    %152 = vxpose.xlu0.b32.end [16/16] 0.0, 128
    %v153 = vpop.trf.xlu0
    %v154 = vpop.trf.xlu0
    %v155 = vpop.trf.xlu0
    %v156 = vpop.trf.xlu0
    %v157 = vpop.trf.xlu0
    %v158 = vpop.trf.xlu0
    %v159 = vpop.trf.xlu0
    %v160 = vpop.trf.xlu0
    %v161 = vpop.trf.xlu0
    %v162 = vpop.trf.xlu0
    %v163 = vpop.trf.xlu0
    %v164 = vpop.trf.xlu0
    %v165 = vpop.trf.xlu0
    %v166 = vpop.trf.xlu0
    %v167 = vpop.trf.xlu0
    %v168 = vpop.trf.xlu0
    %v169 = vld [vmem:[%s1] sm:$0x7]
    %vm172 = vcmask 1040384
    %v173 = vrot.slane %v153, 7
    %v174 = vrot.slane %v154, 7
    %v175 = vsel %vm172, %v173, %v174
    %v178 = vsel %vm172, 0.0, %v173
    %v179 = vlaneseq
    %v180 = vshrl.u32 %v179, 7
    %v181 = vsub.s32 0, %v180
    %v182 = vrot.slane %v178, %v181
    %184 = vbcast.lane.b32.xlu0 %v182, 256
    %v185 = vpop.permute.xlu0 %184
    %v186 = vlaneseq
    %v187 = vshrl.u32 %v186, 7
    %v188 = vsub.s32 1, %v187
    %v189 = vrot.slane %v178, %v188
    %191 = vbcast.lane.b32.xlu0 %v189, 256
    %v192 = vpop.permute.xlu0 %191
    %v193 = vlaneseq
    %v194 = vshrl.u32 %v193, 7
    %v195 = vsub.s32 2, %v194
    %v196 = vrot.slane %v178, %v195
    %198 = vbcast.lane.b32.xlu0 %v196, 256
    %v199 = vpop.permute.xlu0 %198
    %v200 = vlaneseq
    %v201 = vshrl.u32 %v200, 7
    %v202 = vsub.s32 3, %v201
    %v203 = vrot.slane %v178, %v202
    %205 = vbcast.lane.b32.xlu0 %v203, 256
    %v206 = vpop.permute.xlu0 %205
    %v207 = vlaneseq
    %v208 = vshrl.u32 %v207, 7
    %v209 = vsub.s32 4, %v208
    %v210 = vrot.slane %v178, %v209
    %212 = vbcast.lane.b32.xlu0 %v210, 256
    %v213 = vpop.permute.xlu0 %212
    %v214 = vlaneseq
    %v215 = vshrl.u32 %v214, 7
    %v216 = vsub.s32 5, %v215
    %v217 = vrot.slane %v178, %v216
    %219 = vbcast.lane.b32.xlu0 %v217, 256
    %v220 = vpop.permute.xlu0 %219
    %v221 = vlaneseq
    %v222 = vshrl.u32 %v221, 7
    %v223 = vsub.s32 6, %v222
    %v224 = vrot.slane %v178, %v223
    %226 = vbcast.lane.b32.xlu0 %v224, 256
    %v227 = vpop.permute.xlu0 %226
    %v228 = vlaneseq
    %v229 = vshrl.u32 %v228, 7
    %v230 = vsub.s32 7, %v229
    %v231 = vrot.slane %v178, %v230
    %233 = vbcast.lane.b32.xlu0 %v231, 256
    %v234 = vpop.permute.xlu0 %233
    %v235 = vlaneseq
    %v236 = vshrl.u32 %v235, 7
    %v237 = vsub.s32 0, %v236
    %v238 = vrot.slane %v175, %v237
    %240 = vbcast.lane.b32.xlu0 %v238, 256
    %v241 = vpop.permute.xlu0 %240
    %v242 = vlaneseq
    %v243 = vshrl.u32 %v242, 7
    %v244 = vsub.s32 1, %v243
    %v245 = vrot.slane %v175, %v244
    %247 = vbcast.lane.b32.xlu0 %v245, 256
    %v248 = vpop.permute.xlu0 %247
    %v249 = vlaneseq
    %v250 = vshrl.u32 %v249, 7
    %v251 = vsub.s32 2, %v250
    %v252 = vrot.slane %v175, %v251
    %254 = vbcast.lane.b32.xlu0 %v252, 256
    %v255 = vpop.permute.xlu0 %254
    %v256 = vlaneseq
    %v257 = vshrl.u32 %v256, 7
    %v258 = vsub.s32 3, %v257
    %v259 = vrot.slane %v175, %v258
    %261 = vbcast.lane.b32.xlu0 %v259, 256
    %v262 = vpop.permute.xlu0 %261
    %v263 = vlaneseq
    %v264 = vshrl.u32 %v263, 7
    %v265 = vsub.s32 4, %v264
    %v266 = vrot.slane %v175, %v265
    %268 = vbcast.lane.b32.xlu0 %v266, 256
    %v269 = vpop.permute.xlu0 %268
    %v270 = vlaneseq
    %v271 = vshrl.u32 %v270, 7
    %v272 = vsub.s32 5, %v271
    %v273 = vrot.slane %v175, %v272
    %275 = vbcast.lane.b32.xlu0 %v273, 256
    %v276 = vpop.permute.xlu0 %275
    %v277 = vlaneseq
    %v278 = vshrl.u32 %v277, 7
    %v279 = vsub.s32 6, %v278
    %v280 = vrot.slane %v175, %v279
    %282 = vbcast.lane.b32.xlu0 %v280, 256
    %v283 = vpop.permute.xlu0 %282
    %v284 = vlaneseq
    %v285 = vshrl.u32 %v284, 7
    %v286 = vsub.s32 7, %v285
    %v287 = vrot.slane %v175, %v286
    %289 = vbcast.lane.b32.xlu0 %v287, 256
    %v290 = vpop.permute.xlu0 %289
    %v291 = vlaneseq
    %v292 = vshrl.u32 %v291, 7
    %v293 = vsub.s32 0, %v292
    %v294 = vrot.slane %v169, %v293
    %v295 = vmul.f32 %v185, %v294
    %v296 = vmul.f32 %v192, %v294
    %v297 = vmul.f32 %v199, %v294
    %v298 = vmul.f32 %v206, %v294
    %v299 = vmul.f32 %v213, %v294
    %v300 = vmul.f32 %v220, %v294
    %v301 = vmul.f32 %v227, %v294
    %v302 = vmul.f32 %v234, %v294
    %v303 = vmul.f32 %v241, %v294
    %v304 = vmul.f32 %v248, %v294
    %v305 = vmul.f32 %v255, %v294
    %v306 = vmul.f32 %v262, %v294
    %v307 = vmul.f32 %v269, %v294
    %v308 = vmul.f32 %v276, %v294
    %v309 = vmul.f32 %v283, %v294
    %v310 = vmul.f32 %v290, %v294
    %v311 = vlaneseq
    %v312 = vshrl.u32 %v311, 7
    %v313 = vsub.s32 0, %v312
    %v314 = vrot.slane %v153, %v313
    %316 = vbcast.lane.b32.xlu0 %v314, 256
    %v317 = vpop.permute.xlu0 %316
    %v318 = vlaneseq
    %v319 = vshrl.u32 %v318, 7
    %v320 = vsub.s32 1, %v319
    %v321 = vrot.slane %v153, %v320
    %323 = vbcast.lane.b32.xlu0 %v321, 256
    %v324 = vpop.permute.xlu0 %323
    %v325 = vlaneseq
    %v326 = vshrl.u32 %v325, 7
    %v327 = vsub.s32 2, %v326
    %v328 = vrot.slane %v153, %v327
    %330 = vbcast.lane.b32.xlu0 %v328, 256
    %v331 = vpop.permute.xlu0 %330
    %v332 = vlaneseq
    %v333 = vshrl.u32 %v332, 7
    %v334 = vsub.s32 3, %v333
    %v335 = vrot.slane %v153, %v334
    %337 = vbcast.lane.b32.xlu0 %v335, 256
    %v338 = vpop.permute.xlu0 %337
    %v339 = vlaneseq
    %v340 = vshrl.u32 %v339, 7
    %v341 = vsub.s32 4, %v340
    %v342 = vrot.slane %v153, %v341
    %344 = vbcast.lane.b32.xlu0 %v342, 256
    %v345 = vpop.permute.xlu0 %344
    %v346 = vlaneseq
    %v347 = vshrl.u32 %v346, 7
    %v348 = vsub.s32 5, %v347
    %v349 = vrot.slane %v153, %v348
    %351 = vbcast.lane.b32.xlu0 %v349, 256
    %v352 = vpop.permute.xlu0 %351
    %v353 = vlaneseq
    %v354 = vshrl.u32 %v353, 7
    %v355 = vsub.s32 6, %v354
    %v356 = vrot.slane %v153, %v355
    %358 = vbcast.lane.b32.xlu0 %v356, 256
    %v359 = vpop.permute.xlu0 %358
    %v360 = vlaneseq
    %v361 = vshrl.u32 %v360, 7
    %v362 = vsub.s32 7, %v361
    %v363 = vrot.slane %v153, %v362
    %365 = vbcast.lane.b32.xlu0 %v363, 256
    %v366 = vpop.permute.xlu0 %365
    %v367 = vlaneseq
    %v368 = vshrl.u32 %v367, 7
    %v369 = vsub.s32 0, %v368
    %v370 = vrot.slane %v154, %v369
    %372 = vbcast.lane.b32.xlu0 %v370, 256
    %v373 = vpop.permute.xlu0 %372
    %v374 = vlaneseq
    %v375 = vshrl.u32 %v374, 7
    %v376 = vsub.s32 1, %v375
    %v377 = vrot.slane %v154, %v376
    %379 = vbcast.lane.b32.xlu0 %v377, 256
    %v380 = vpop.permute.xlu0 %379
    %v381 = vlaneseq
    %v382 = vshrl.u32 %v381, 7
    %v383 = vsub.s32 2, %v382
    %v384 = vrot.slane %v154, %v383
    %386 = vbcast.lane.b32.xlu0 %v384, 256
    %v387 = vpop.permute.xlu0 %386
    %v388 = vlaneseq
    %v389 = vshrl.u32 %v388, 7
    %v390 = vsub.s32 3, %v389
    %v391 = vrot.slane %v154, %v390
    %393 = vbcast.lane.b32.xlu0 %v391, 256
    %v394 = vpop.permute.xlu0 %393
    %v395 = vlaneseq
    %v396 = vshrl.u32 %v395, 7
    %v397 = vsub.s32 4, %v396
    %v398 = vrot.slane %v154, %v397
    %400 = vbcast.lane.b32.xlu0 %v398, 256
    %v401 = vpop.permute.xlu0 %400
    %v402 = vlaneseq
    %v403 = vshrl.u32 %v402, 7
    %v404 = vsub.s32 5, %v403
    %v405 = vrot.slane %v154, %v404
    %407 = vbcast.lane.b32.xlu0 %v405, 256
    %v408 = vpop.permute.xlu0 %407
    %v409 = vlaneseq
    %v410 = vshrl.u32 %v409, 7
    %v411 = vsub.s32 6, %v410
    %v412 = vrot.slane %v154, %v411
    %414 = vbcast.lane.b32.xlu0 %v412, 256
    %v415 = vpop.permute.xlu0 %414
    %v416 = vlaneseq
    %v417 = vshrl.u32 %v416, 7
    %v418 = vsub.s32 7, %v417
    %v419 = vrot.slane %v154, %v418
    %421 = vbcast.lane.b32.xlu0 %v419, 256
    %v422 = vpop.permute.xlu0 %421
    %v423 = vlaneseq
    %v424 = vshrl.u32 %v423, 7
    %v425 = vsub.s32 1, %v424
    %v426 = vrot.slane %v169, %v425
    %v427 = vmul.f32 %v317, %v426
    %v428 = vmul.f32 %v324, %v426
    %v429 = vmul.f32 %v331, %v426
    %v430 = vmul.f32 %v338, %v426
    %v431 = vmul.f32 %v345, %v426
    %v432 = vmul.f32 %v352, %v426
    %v433 = vmul.f32 %v359, %v426
    %v434 = vmul.f32 %v366, %v426
    %v435 = vmul.f32 %v373, %v426
    %v436 = vmul.f32 %v380, %v426
    %v437 = vmul.f32 %v387, %v426
    %v438 = vmul.f32 %v394, %v426
    %v439 = vmul.f32 %v401, %v426
    %v440 = vmul.f32 %v408, %v426
    %v441 = vmul.f32 %v415, %v426
    %v442 = vmul.f32 %v422, %v426
    %v443 = vadd.f32 %v295, %v427
    %v444 = vadd.f32 %v296, %v428
    %v445 = vadd.f32 %v297, %v429
    %v446 = vadd.f32 %v298, %v430
    %v447 = vadd.f32 %v299, %v431
    %v448 = vadd.f32 %v300, %v432
    %v449 = vadd.f32 %v301, %v433
    %v450 = vadd.f32 %v302, %v434
    %v451 = vadd.f32 %v303, %v435
    %v452 = vadd.f32 %v304, %v436
    %v453 = vadd.f32 %v305, %v437
    %v454 = vadd.f32 %v306, %v438
    %v455 = vadd.f32 %v307, %v439
    %v456 = vadd.f32 %v308, %v440
    %v457 = vadd.f32 %v309, %v441
    %v458 = vadd.f32 %v310, %v442
    %vm459 = vcmask 1046528
    %v460 = vrot.slane %v153, 1
    %v461 = vrot.slane %v154, 1
    %v462 = vsel %vm459, %v460, %v461
    %v465 = vsel %vm459, %v461, 0.0
    %v466 = vlaneseq
    %v467 = vshrl.u32 %v466, 7
    %v468 = vsub.s32 0, %v467
    %v469 = vrot.slane %v462, %v468
    %471 = vbcast.lane.b32.xlu0 %v469, 256
    %v472 = vpop.permute.xlu0 %471
    %v473 = vlaneseq
    %v474 = vshrl.u32 %v473, 7
    %v475 = vsub.s32 1, %v474
    %v476 = vrot.slane %v462, %v475
    %478 = vbcast.lane.b32.xlu0 %v476, 256
    %v479 = vpop.permute.xlu0 %478
    %v480 = vlaneseq
    %v481 = vshrl.u32 %v480, 7
    %v482 = vsub.s32 2, %v481
    %v483 = vrot.slane %v462, %v482
    %485 = vbcast.lane.b32.xlu0 %v483, 256
    %v486 = vpop.permute.xlu0 %485
    %v487 = vlaneseq
    %v488 = vshrl.u32 %v487, 7
    %v489 = vsub.s32 3, %v488
    %v490 = vrot.slane %v462, %v489
    %492 = vbcast.lane.b32.xlu0 %v490, 256
    %v493 = vpop.permute.xlu0 %492
    %v494 = vlaneseq
    %v495 = vshrl.u32 %v494, 7
    %v496 = vsub.s32 4, %v495
    %v497 = vrot.slane %v462, %v496
    %499 = vbcast.lane.b32.xlu0 %v497, 256
    %v500 = vpop.permute.xlu0 %499
    %v501 = vlaneseq
    %v502 = vshrl.u32 %v501, 7
    %v503 = vsub.s32 5, %v502
    %v504 = vrot.slane %v462, %v503
    %506 = vbcast.lane.b32.xlu0 %v504, 256
    %v507 = vpop.permute.xlu0 %506
    %v508 = vlaneseq
    %v509 = vshrl.u32 %v508, 7
    %v510 = vsub.s32 6, %v509
    %v511 = vrot.slane %v462, %v510
    %513 = vbcast.lane.b32.xlu0 %v511, 256
    %v514 = vpop.permute.xlu0 %513
    %v515 = vlaneseq
    %v516 = vshrl.u32 %v515, 7
    %v517 = vsub.s32 7, %v516
    %v518 = vrot.slane %v462, %v517
    %520 = vbcast.lane.b32.xlu0 %v518, 256
    %v521 = vpop.permute.xlu0 %520
    %v522 = vlaneseq
    %v523 = vshrl.u32 %v522, 7
    %v524 = vsub.s32 0, %v523
    %v525 = vrot.slane %v465, %v524
    %527 = vbcast.lane.b32.xlu0 %v525, 256
    %v528 = vpop.permute.xlu0 %527
    %v529 = vlaneseq
    %v530 = vshrl.u32 %v529, 7
    %v531 = vsub.s32 1, %v530
    %v532 = vrot.slane %v465, %v531
    %534 = vbcast.lane.b32.xlu0 %v532, 256
    %v535 = vpop.permute.xlu0 %534
    %v536 = vlaneseq
    %v537 = vshrl.u32 %v536, 7
    %v538 = vsub.s32 2, %v537
    %v539 = vrot.slane %v465, %v538
    %541 = vbcast.lane.b32.xlu0 %v539, 256
    %v542 = vpop.permute.xlu0 %541
    %v543 = vlaneseq
    %v544 = vshrl.u32 %v543, 7
    %v545 = vsub.s32 3, %v544
    %v546 = vrot.slane %v465, %v545
    %548 = vbcast.lane.b32.xlu0 %v546, 256
    %v549 = vpop.permute.xlu0 %548
    %v550 = vlaneseq
    %v551 = vshrl.u32 %v550, 7
    %v552 = vsub.s32 4, %v551
    %v553 = vrot.slane %v465, %v552
    %555 = vbcast.lane.b32.xlu0 %v553, 256
    %v556 = vpop.permute.xlu0 %555
    %v557 = vlaneseq
    %v558 = vshrl.u32 %v557, 7
    %v559 = vsub.s32 5, %v558
    %v560 = vrot.slane %v465, %v559
    %562 = vbcast.lane.b32.xlu0 %v560, 256
    %v563 = vpop.permute.xlu0 %562
    %v564 = vlaneseq
    %v565 = vshrl.u32 %v564, 7
    %v566 = vsub.s32 6, %v565
    %v567 = vrot.slane %v465, %v566
    %569 = vbcast.lane.b32.xlu0 %v567, 256
    %v570 = vpop.permute.xlu0 %569
    %v571 = vlaneseq
    %v572 = vshrl.u32 %v571, 7
    %v573 = vsub.s32 7, %v572
    %v574 = vrot.slane %v465, %v573
    %576 = vbcast.lane.b32.xlu0 %v574, 256
    %v577 = vpop.permute.xlu0 %576
    %v578 = vlaneseq
    %v579 = vshrl.u32 %v578, 7
    %v580 = vsub.s32 2, %v579
    %v581 = vrot.slane %v169, %v580
    %v582 = vmul.f32 %v472, %v581
    %v583 = vmul.f32 %v479, %v581
    %v584 = vmul.f32 %v486, %v581
    %v585 = vmul.f32 %v493, %v581
    %v586 = vmul.f32 %v500, %v581
    %v587 = vmul.f32 %v507, %v581
    %v588 = vmul.f32 %v514, %v581
    %v589 = vmul.f32 %v521, %v581
    %v590 = vmul.f32 %v528, %v581
    %v591 = vmul.f32 %v535, %v581
    %v592 = vmul.f32 %v542, %v581
    %v593 = vmul.f32 %v549, %v581
    %v594 = vmul.f32 %v556, %v581
    %v595 = vmul.f32 %v563, %v581
    %v596 = vmul.f32 %v570, %v581
    %v597 = vmul.f32 %v577, %v581
    %v598 = vadd.f32 %v443, %v582
    %v599 = vadd.f32 %v444, %v583
    %v600 = vadd.f32 %v445, %v584
    %v601 = vadd.f32 %v446, %v585
    %v602 = vadd.f32 %v447, %v586
    %v603 = vadd.f32 %v448, %v587
    %v604 = vadd.f32 %v449, %v588
    %v605 = vadd.f32 %v450, %v589
    %v606 = vadd.f32 %v451, %v590
    %v607 = vadd.f32 %v452, %v591
    %v608 = vadd.f32 %v453, %v592
    %v609 = vadd.f32 %v454, %v593
    %v610 = vadd.f32 %v455, %v594
    %v611 = vadd.f32 %v456, %v595
    %v612 = vadd.f32 %v457, %v596
    %v613 = vadd.f32 %v458, %v597
    %v614 = vld [vmem:[%s2] sm:$0x1]
    %v616 = vlaneseq
    %v617 = vshrl.u32 %v616, 7
    %v618 = vsub.s32 0, %v617
    %v619 = vrot.slane %v614, %v618
    %v621 = vadd.f32 %v598, %v619
    %v622 = vadd.f32 %v599, %v619
    %v623 = vadd.f32 %v600, %v619
    %v624 = vadd.f32 %v601, %v619
    %v625 = vadd.f32 %v602, %v619
    %v626 = vadd.f32 %v603, %v619
    %v627 = vadd.f32 %v604, %v619
    %v628 = vadd.f32 %v605, %v619
    %v629 = vadd.f32 %v606, %v619
    %v630 = vadd.f32 %v607, %v619
    %v631 = vadd.f32 %v608, %v619
    %v632 = vadd.f32 %v609, %v619
    %v633 = vadd.f32 %v610, %v619
    %v634 = vadd.f32 %v611, %v619
    %v635 = vadd.f32 %v612, %v619
    %v636 = vadd.f32 %v613, %v619
    %v637 = vmax.f32 %v621, 0.0
    %v638 = vmax.f32 %v622, 0.0
    %v639 = vmax.f32 %v623, 0.0
    %v640 = vmax.f32 %v624, 0.0
    %v641 = vmax.f32 %v625, 0.0
    %v642 = vmax.f32 %v626, 0.0
    %v643 = vmax.f32 %v627, 0.0
    %v644 = vmax.f32 %v628, 0.0
    %v645 = vmax.f32 %v629, 0.0
    %v646 = vmax.f32 %v630, 0.0
    %v647 = vmax.f32 %v631, 0.0
    %v648 = vmax.f32 %v632, 0.0
    %v649 = vmax.f32 %v633, 0.0
    %v650 = vmax.f32 %v634, 0.0
    %v651 = vmax.f32 %v635, 0.0
    %v652 = vmax.f32 %v636, 0.0
    %v653 = vmax.f32 %v637, 0.0
    %v654 = vmax.f32 %v638, %v639
    %v655 = vmax.f32 %v640, %v641
    %v656 = vmax.f32 %v642, %v643
    %v657 = vmax.f32 %v644, %v645
    %v658 = vmax.f32 %v646, %v647
    %v659 = vmax.f32 %v648, %v649
    %v660 = vmax.f32 %v650, %v651
    %v661 = vmax.f32 %v653, %v638
    %v662 = vmax.f32 %v654, %v640
    %v663 = vmax.f32 %v655, %v642
    %v664 = vmax.f32 %v656, %v644
    %v665 = vmax.f32 %v657, %v646
    %v666 = vmax.f32 %v658, %v648
    %v667 = vmax.f32 %v659, %v650
    %v668 = vmax.f32 %v660, %v652
    %677 = vrot.lane.b32.xlu0 %v661, 64
    %v678 = vpop.permute.xlu0 %677
    %679 = vrot.lane.b32.xlu0 %v662, 64
    %v680 = vpop.permute.xlu0 %679
    %681 = vrot.lane.b32.xlu0 %v663, 64
    %v682 = vpop.permute.xlu0 %681
    %683 = vrot.lane.b32.xlu0 %v664, 64
    %v684 = vpop.permute.xlu0 %683
    %685 = vrot.lane.b32.xlu0 %v665, 64
    %v686 = vpop.permute.xlu0 %685
    %687 = vrot.lane.b32.xlu0 %v666, 64
    %v688 = vpop.permute.xlu0 %687
    %689 = vrot.lane.b32.xlu0 %v667, 64
    %v690 = vpop.permute.xlu0 %689
    %691 = vrot.lane.b32.xlu0 %v668, 64
    %v692 = vpop.permute.xlu0 %691
    %vm701 = vcmask 523264
    %v702 = vsel %vm701, 0.0, %v678
    %v703 = vsel %vm701, %v661, %v680
    %v704 = vsel %vm701, %v662, %v682
    %v705 = vsel %vm701, %v663, %v684
    %v706 = vsel %vm701, %v664, %v686
    %v707 = vsel %vm701, %v665, %v688
    %v708 = vsel %vm701, %v666, %v690
    %v709 = vsel %vm701, %v667, %v692
    %v710 = vld [vmem:[%s3] sm:$0xff]
    %v711 = vld [vmem:[%s3 + $0x8] sm:$0xff]
    %v712 = vld [vmem:[%s3 + $0x10] sm:$0xff]
    %v713 = vld [vmem:[%s3 + $0x18] sm:$0xff]
    %v714 = vld [vmem:[%s3 + $0x20] sm:$0xff]
    %v715 = vld [vmem:[%s3 + $0x28] sm:$0xff]
    %v716 = vld [vmem:[%s3 + $0x30] sm:$0xff]
    %v717 = vld [vmem:[%s3 + $0x38] sm:$0xff]
    %v718 = vld [vmem:[%s3 + $0x40] sm:$0xff]
    %v719 = vld [vmem:[%s3 + $0x48] sm:$0xff]
    %v720 = vld [vmem:[%s3 + $0x50] sm:$0xff]
    %v721 = vld [vmem:[%s3 + $0x58] sm:$0xff]
    %v722 = vld [vmem:[%s3 + $0x60] sm:$0xff]
    %v723 = vld [vmem:[%s3 + $0x68] sm:$0xff]
    %v724 = vld [vmem:[%s3 + $0x70] sm:$0xff]
    %v725 = vld [vmem:[%s3 + $0x78] sm:$0xff]
    %v726 = vld [vmem:[%s3 + $0x80] sm:$0xff]
    %v727 = vld [vmem:[%s3 + $0x88] sm:$0xff]
    %v728 = vld [vmem:[%s3 + $0x90] sm:$0xff]
    %v729 = vld [vmem:[%s3 + $0x98] sm:$0xff]
    %v730 = vld [vmem:[%s3 + $0xa0] sm:$0xff]
    %v731 = vld [vmem:[%s3 + $0xa8] sm:$0xff]
    %v732 = vld [vmem:[%s3 + $0xb0] sm:$0xff]
    %v733 = vld [vmem:[%s3 + $0xb8] sm:$0xff]
    %v734 = vld [vmem:[%s4] sm:$0x1]
    %v736 = vlaneseq
    %v737 = vshrl.u32 %v736, 7
    %v738 = vsub.s32 0, %v737
    %v739 = vrot.slane %v734, %v738
    %v741 = vsel %vm701, %v662, 0
    %v743 = vsel %vm701, %v663, 0
    %v745 = vsel %vm701, %v664, 0
    %v747 = vsel %vm701, %v665, 0
    %v749 = vsel %vm701, %v666, 0
    %v751 = vsel %vm701, %v667, 0
    %v753 = vsel %vm701, %v668, 0
    %v756 = vsel %vm701, 0.0, 0
    %758 = vmatprep.subr.mxu0 0.0
    %759 = vmatpush1.msra.mxu0 %v710
    %760 = vmatprep.subr.mxu0 0.0
    %761 = vmatpush1.msra.mxu0 %v711
    %762 = vmatprep.subr.mxu0 0.0
    %763 = vmatpush1.msra.mxu0 %v712
    %764 = vmatprep.subr.mxu0 0.0
    %765 = vmatpush1.msra.mxu0 %v713
    %766 = vmatprep.subr.mxu0 0.0
    %767 = vmatpush1.msra.mxu0 %v714
    %768 = vmatprep.subr.mxu0 0.0
    %769 = vmatpush1.msra.mxu0 %v715
    %770 = vmatprep.subr.mxu0 0.0
    %771 = vmatpush1.msra.mxu0 %v716
    %772 = vmatprep.subr.mxu0 0.0
    %773 = vmatpush1.msra.mxu0 %v717
    %774 = vmatprep.subr.mxu0 0.0
    %775 = vmatpush1.msra.mxu0 %v718
    %776 = vmatprep.subr.mxu0 0.0
    %777 = vmatpush1.msra.mxu0 %v719
    %778 = vmatprep.subr.mxu0 0.0
    %779 = vmatpush1.msra.mxu0 %v720
    %780 = vmatprep.subr.mxu0 0.0
    %781 = vmatpush1.msra.mxu0 %v721
    %782 = vmatprep.subr.mxu0 0.0
    %783 = vmatpush1.msra.mxu0 %v722
    %784 = vmatprep.subr.mxu0 0.0
    %785 = vmatpush1.msra.mxu0 %v723
    %786 = vmatprep.subr.mxu0 0.0
    %787 = vmatpush1.msra.mxu0 %v724
    %788 = vmatprep.subr.mxu0 0.0
    %789 = vmatpush1.msra.mxu0 %v725
    %790 = vmatprep.subr.mxu0 0.0
    %791 = vmatpush1.msra.mxu0 %v726
    %792 = vmatprep.subr.mxu0 0.0
    %793 = vmatpush1.msra.mxu0 %v727
    %794 = vmatprep.subr.mxu0 0.0
    %795 = vmatpush1.msra.mxu0 %v728
    %796 = vmatprep.subr.mxu0 0.0
    %797 = vmatpush1.msra.mxu0 %v729
    %798 = vmatprep.subr.mxu0 0.0
    %799 = vmatpush1.msra.mxu0 %v730
    %800 = vmatprep.subr.mxu0 0.0
    %801 = vmatpush1.msra.mxu0 %v731
    %802 = vmatprep.subr.mxu0 0.0
    %803 = vmatpush1.msra.mxu0 %v732
    %804 = vmatprep.subr.mxu0 0.0
    %805 = vmatpush1.msra.mxu0 %v733
    %806 = vmatprep.subr.mxu0 0.0
    %807 = vmatpush1.msra.mxu0 0.0
    %808 = vmatprep.subr.mxu0 0.0
    %809 = vmatpush1.msra.mxu0 0.0
    %810 = vmatprep.subr.mxu0 0.0
    %811 = vmatpush1.msra.mxu0 0.0
    %812 = vmatprep.subr.mxu0 0.0
    %813 = vmatpush1.msra.mxu0 0.0
    %814 = vmatprep.subr.mxu0 0.0
    %815 = vmatpush1.msra.mxu0 0.0
    %816 = vmatprep.subr.mxu0 0.0
    %817 = vmatpush1.msra.mxu0 0.0
    %818 = vmatprep.subr.mxu0 0.0
    %819 = vmatpush1.msra.mxu0 0.0
    %820 = vmatprep.subr.mxu0 0.0
    %821 = vmatpush1.msra.mxu0 0.0
    %822 = vmatprep.mubr.f32.mxu0 %v741
    %823 = vmatmul.mubr.f32.gmra.mrb[0].mxu0 %v702
    %v824 = vpop.f32.mrb[0].mxu0
    %v825 = vadd.f32 %v739, %v824
    %v826 = vpop.f32.mrb[0].mxu0
    %827 = vmatprep.mubr.f32.mxu0 %v743
    %828 = vmatmul.mubr.f32.gmra.mrb[0].mxu0 %v703
    %v829 = vpop.f32.mrb[0].mxu0
    %v830 = vadd.f32 %v739, %v829
    %v831 = vpop.f32.mrb[0].mxu0
    %832 = vmatprep.mubr.f32.mxu0 %v745
    %833 = vmatmul.mubr.f32.gmra.mrb[0].mxu0 %v704
    %v834 = vpop.f32.mrb[0].mxu0
    %v835 = vadd.f32 %v739, %v834
    %v836 = vpop.f32.mrb[0].mxu0
    %837 = vmatprep.mubr.f32.mxu0 %v747
    %838 = vmatmul.mubr.f32.gmra.mrb[0].mxu0 %v705
    %v839 = vpop.f32.mrb[0].mxu0
    %v840 = vadd.f32 %v739, %v839
    %v841 = vpop.f32.mrb[0].mxu0
    %842 = vmatprep.mubr.f32.mxu0 %v749
    %843 = vmatmul.mubr.f32.gmra.mrb[0].mxu0 %v706
    %v844 = vpop.f32.mrb[0].mxu0
    %v845 = vadd.f32 %v739, %v844
    %v846 = vpop.f32.mrb[0].mxu0
    %847 = vmatprep.mubr.f32.mxu0 %v751
    %848 = vmatmul.mubr.f32.gmra.mrb[0].mxu0 %v707
    %v849 = vpop.f32.mrb[0].mxu0
    %v850 = vadd.f32 %v739, %v849
    %v851 = vpop.f32.mrb[0].mxu0
    %852 = vmatprep.mubr.f32.mxu0 %v753
    %853 = vmatmul.mubr.f32.gmra.mrb[0].mxu0 %v708
    %v854 = vpop.f32.mrb[0].mxu0
    %v855 = vadd.f32 %v739, %v854
    %v856 = vpop.f32.mrb[0].mxu0
    %857 = vmatprep.mubr.f32.mxu0 %v756
    %858 = vmatmul.mubr.f32.gmra.mrb[0].mxu0 %v709
    %v859 = vpop.f32.mrb[0].mxu0
    %v860 = vadd.f32 %v739, %v859
    %v861 = vpop.f32.mrb[0].mxu0
    %862 = vdwg.mxu0
    %v863 = vmax.f32 %v825, 0.0
    %v864 = vmax.f32 %v830, 0.0
    %v865 = vmax.f32 %v835, 0.0
    %v866 = vmax.f32 %v840, 0.0
    %v867 = vmax.f32 %v845, 0.0
    %v868 = vmax.f32 %v850, 0.0
    %v869 = vmax.f32 %v855, 0.0
    %v870 = vmax.f32 %v860, 0.0
    %879 = vrot.lane.b32.xlu0 %v863, 64
    %v880 = vpop.permute.xlu0 %879
    %881 = vrot.lane.b32.xlu0 %v864, 64
    %v882 = vpop.permute.xlu0 %881
    %883 = vrot.lane.b32.xlu0 %v865, 64
    %v884 = vpop.permute.xlu0 %883
    %885 = vrot.lane.b32.xlu0 %v866, 64
    %v886 = vpop.permute.xlu0 %885
    %887 = vrot.lane.b32.xlu0 %v867, 64
    %v888 = vpop.permute.xlu0 %887
    %889 = vrot.lane.b32.xlu0 %v868, 64
    %v890 = vpop.permute.xlu0 %889
    %891 = vrot.lane.b32.xlu0 %v869, 64
    %v892 = vpop.permute.xlu0 %891
    %893 = vrot.lane.b32.xlu0 %v870, 64
    %v894 = vpop.permute.xlu0 %893
    %v903 = vsel %vm701, 0.0, %v880
    %v904 = vsel %vm701, %v863, %v882
    %v905 = vsel %vm701, %v864, %v884
    %v906 = vsel %vm701, %v865, %v886
    %v907 = vsel %vm701, %v866, %v888
    %v908 = vsel %vm701, %v867, %v890
    %v909 = vsel %vm701, %v868, %v892
    %v910 = vsel %vm701, %v869, %v894
    %v911 = vld [vmem:[%s5] sm:$0xff]
    %v912 = vld [vmem:[%s5 + $0x8] sm:$0xff]
    %v913 = vld [vmem:[%s5 + $0x10] sm:$0xff]
    %v914 = vld [vmem:[%s5 + $0x18] sm:$0xff]
    %v915 = vld [vmem:[%s5 + $0x20] sm:$0xff]
    %v916 = vld [vmem:[%s5 + $0x28] sm:$0xff]
    %v917 = vld [vmem:[%s5 + $0x30] sm:$0xff]
    %v918 = vld [vmem:[%s5 + $0x38] sm:$0xff]
    %v919 = vld [vmem:[%s5 + $0x40] sm:$0xff]
    %v920 = vld [vmem:[%s5 + $0x48] sm:$0xff]
    %v921 = vld [vmem:[%s5 + $0x50] sm:$0xff]
    %v922 = vld [vmem:[%s5 + $0x58] sm:$0xff]
    %v923 = vld [vmem:[%s5 + $0x60] sm:$0xff]
    %v924 = vld [vmem:[%s5 + $0x68] sm:$0xff]
    %v925 = vld [vmem:[%s5 + $0x70] sm:$0xff]
    %v926 = vld [vmem:[%s5 + $0x78] sm:$0xff]
    %v927 = vld [vmem:[%s5 + $0x80] sm:$0xff]
    %v928 = vld [vmem:[%s5 + $0x88] sm:$0xff]
    %v929 = vld [vmem:[%s5 + $0x90] sm:$0xff]
    %v930 = vld [vmem:[%s5 + $0x98] sm:$0xff]
    %v931 = vld [vmem:[%s5 + $0xa0] sm:$0xff]
    %v932 = vld [vmem:[%s5 + $0xa8] sm:$0xff]
    %v933 = vld [vmem:[%s5 + $0xb0] sm:$0xff]
    %v934 = vld [vmem:[%s5 + $0xb8] sm:$0xff]
    %v935 = vld [vmem:[%s6] sm:$0x1]
    %v937 = vlaneseq
    %v938 = vshrl.u32 %v937, 7
    %v939 = vsub.s32 0, %v938
    %v940 = vrot.slane %v935, %v939
    %v942 = vsel %vm701, %v864, 0
    %v944 = vsel %vm701, %v865, 0
    %v946 = vsel %vm701, %v866, 0
    %v948 = vsel %vm701, %v867, 0
    %v950 = vsel %vm701, %v868, 0
    %v952 = vsel %vm701, %v869, 0
    %v954 = vsel %vm701, %v870, 0
    %956 = vmatprep.subr.mxu0 0.0
    %957 = vmatpush1.msra.mxu0 %v911
    %958 = vmatprep.subr.mxu0 0.0
    %959 = vmatpush1.msra.mxu0 %v912
    %960 = vmatprep.subr.mxu0 0.0
    %961 = vmatpush1.msra.mxu0 %v913
    %962 = vmatprep.subr.mxu0 0.0
    %963 = vmatpush1.msra.mxu0 %v914
    %964 = vmatprep.subr.mxu0 0.0
    %965 = vmatpush1.msra.mxu0 %v915
    %966 = vmatprep.subr.mxu0 0.0
    %967 = vmatpush1.msra.mxu0 %v916
    %968 = vmatprep.subr.mxu0 0.0
    %969 = vmatpush1.msra.mxu0 %v917
    %970 = vmatprep.subr.mxu0 0.0
    %971 = vmatpush1.msra.mxu0 %v918
    %972 = vmatprep.subr.mxu0 0.0
    %973 = vmatpush1.msra.mxu0 %v919
    %974 = vmatprep.subr.mxu0 0.0
    %975 = vmatpush1.msra.mxu0 %v920
    %976 = vmatprep.subr.mxu0 0.0
    %977 = vmatpush1.msra.mxu0 %v921
    %978 = vmatprep.subr.mxu0 0.0
    %979 = vmatpush1.msra.mxu0 %v922
    %980 = vmatprep.subr.mxu0 0.0
    %981 = vmatpush1.msra.mxu0 %v923
    %982 = vmatprep.subr.mxu0 0.0
    %983 = vmatpush1.msra.mxu0 %v924
    %984 = vmatprep.subr.mxu0 0.0
    %985 = vmatpush1.msra.mxu0 %v925
    %986 = vmatprep.subr.mxu0 0.0
    %987 = vmatpush1.msra.mxu0 %v926
    %988 = vmatprep.subr.mxu0 0.0
    %989 = vmatpush1.msra.mxu0 %v927
    %990 = vmatprep.subr.mxu0 0.0
    %991 = vmatpush1.msra.mxu0 %v928
    %992 = vmatprep.subr.mxu0 0.0
    %993 = vmatpush1.msra.mxu0 %v929
    %994 = vmatprep.subr.mxu0 0.0
    %995 = vmatpush1.msra.mxu0 %v930
    %996 = vmatprep.subr.mxu0 0.0
    %997 = vmatpush1.msra.mxu0 %v931
    %998 = vmatprep.subr.mxu0 0.0
    %999 = vmatpush1.msra.mxu0 %v932
    %1000 = vmatprep.subr.mxu0 0.0
    %1001 = vmatpush1.msra.mxu0 %v933
    %1002 = vmatprep.subr.mxu0 0.0
    %1003 = vmatpush1.msra.mxu0 %v934
    %1004 = vmatprep.subr.mxu0 0.0
    %1005 = vmatpush1.msra.mxu0 0.0
    %1006 = vmatprep.subr.mxu0 0.0
    %1007 = vmatpush1.msra.mxu0 0.0
    %1008 = vmatprep.subr.mxu0 0.0
    %1009 = vmatpush1.msra.mxu0 0.0
    %1010 = vmatprep.subr.mxu0 0.0
    %1011 = vmatpush1.msra.mxu0 0.0
    %1012 = vmatprep.subr.mxu0 0.0
    %1013 = vmatpush1.msra.mxu0 0.0
    %1014 = vmatprep.subr.mxu0 0.0
    %1015 = vmatpush1.msra.mxu0 0.0
    %1016 = vmatprep.subr.mxu0 0.0
    %1017 = vmatpush1.msra.mxu0 0.0
    %1018 = vmatprep.subr.mxu0 0.0
    %1019 = vmatpush1.msra.mxu0 0.0
    %1020 = vmatprep.mubr.f32.mxu0 %v942
    %1021 = vmatmul.mubr.f32.gmra.mrb[0].mxu0 %v903
    %v1022 = vpop.f32.mrb[0].mxu0
    %v1023 = vadd.f32 %v940, %v1022
    %v1024 = vpop.f32.mrb[0].mxu0
    %1025 = vmatprep.mubr.f32.mxu0 %v944
    %1026 = vmatmul.mubr.f32.gmra.mrb[0].mxu0 %v904
    %v1027 = vpop.f32.mrb[0].mxu0
    %v1028 = vadd.f32 %v940, %v1027
    %v1029 = vpop.f32.mrb[0].mxu0
    %1030 = vmatprep.mubr.f32.mxu0 %v946
    %1031 = vmatmul.mubr.f32.gmra.mrb[0].mxu0 %v905
    %v1032 = vpop.f32.mrb[0].mxu0
    %v1033 = vadd.f32 %v940, %v1032
    %v1034 = vpop.f32.mrb[0].mxu0
    %1035 = vmatprep.mubr.f32.mxu0 %v948
    %1036 = vmatmul.mubr.f32.gmra.mrb[0].mxu0 %v906
    %v1037 = vpop.f32.mrb[0].mxu0
    %v1038 = vadd.f32 %v940, %v1037
    %v1039 = vpop.f32.mrb[0].mxu0
    %1040 = vmatprep.mubr.f32.mxu0 %v950
    %1041 = vmatmul.mubr.f32.gmra.mrb[0].mxu0 %v907
    %v1042 = vpop.f32.mrb[0].mxu0
    %v1043 = vadd.f32 %v940, %v1042
    %v1044 = vpop.f32.mrb[0].mxu0
    %1045 = vmatprep.mubr.f32.mxu0 %v952
    %1046 = vmatmul.mubr.f32.gmra.mrb[0].mxu0 %v908
    %v1047 = vpop.f32.mrb[0].mxu0
    %v1048 = vadd.f32 %v940, %v1047
    %v1049 = vpop.f32.mrb[0].mxu0
    %1050 = vmatprep.mubr.f32.mxu0 %v954
    %1051 = vmatmul.mubr.f32.gmra.mrb[0].mxu0 %v909
    %v1052 = vpop.f32.mrb[0].mxu0
    %v1053 = vadd.f32 %v940, %v1052
    %v1054 = vpop.f32.mrb[0].mxu0
    %1055 = vmatprep.mubr.f32.mxu0 %v756
    %1056 = vmatmul.mubr.f32.gmra.mrb[0].mxu0 %v910
    %v1057 = vpop.f32.mrb[0].mxu0
    %v1058 = vadd.f32 %v940, %v1057
    %v1059 = vpop.f32.mrb[0].mxu0
    %1060 = vdwg.mxu0
    %v1061 = vadd.f32 %v1023, %v661
    %v1062 = vadd.f32 %v1028, %v662
    %v1063 = vadd.f32 %v1033, %v663
    %v1064 = vadd.f32 %v1038, %v664
    %v1065 = vadd.f32 %v1043, %v665
    %v1066 = vadd.f32 %v1048, %v666
    %v1067 = vadd.f32 %v1053, %v667
    %v1068 = vadd.f32 %v1058, %v668
    %v1069 = vmax.f32 %v1061, 0.0
    %v1070 = vmax.f32 %v1062, 0.0
    %v1071 = vmax.f32 %v1063, 0.0
    %v1072 = vmax.f32 %v1064, 0.0
    %v1073 = vmax.f32 %v1065, 0.0
    %v1074 = vmax.f32 %v1066, 0.0
    %v1075 = vmax.f32 %v1067, 0.0
    %v1076 = vmax.f32 %v1068, 0.0
    %v1077 = vld [vmem:[#allocation4] sm:$0xff]
    %v1078 = vld [vmem:[#allocation4 + $0x8] sm:$0xff]
    %v1079 = vld [vmem:[#allocation4 + $0x10] sm:$0xff]
    %v1080 = vld [vmem:[#allocation4 + $0x18] sm:$0xff]
    %v1081 = vld [vmem:[#allocation4 + $0x20] sm:$0xff]
    %v1082 = vld [vmem:[#allocation4 + $0x28] sm:$0xff]
    %v1083 = vld [vmem:[#allocation4 + $0x30] sm:$0xff]
    %v1084 = vld [vmem:[#allocation4 + $0x38] sm:$0xff]
    %v1085 = vld [vmem:[%s12] sm:$0x1]
    %v1087 = vlaneseq
    %v1088 = vshrl.u32 %v1087, 7
    %v1089 = vsub.s32 0, %v1088
    %v1090 = vrot.slane %v1085, %v1089
    %v1093 = vsel %vm701, %v1069, 0
    %v1096 = vsel %vm701, %v1071, 0
    %v1099 = vsel %vm701, %v1073, 0
    %v1102 = vsel %vm701, %v1075, 0
    %1104 = vmatprep.subr.mxu0 0.0
    %1105 = vmatpush1.msra.mxu0 %v1077
    %1106 = vmatprep.subr.mxu0 0.0
    %1107 = vmatpush1.msra.mxu0 %v1078
    %1108 = vmatprep.subr.mxu0 0.0
    %1109 = vmatpush1.msra.mxu0 %v1079
    %1110 = vmatprep.subr.mxu0 0.0
    %1111 = vmatpush1.msra.mxu0 %v1080
    %1112 = vmatprep.subr.mxu0 0.0
    %1113 = vmatpush1.msra.mxu0 %v1081
    %1114 = vmatprep.subr.mxu0 0.0
    %1115 = vmatpush1.msra.mxu0 %v1082
    %1116 = vmatprep.subr.mxu0 0.0
    %1117 = vmatpush1.msra.mxu0 %v1083
    %1118 = vmatprep.subr.mxu0 0.0
    %1119 = vmatpush1.msra.mxu0 %v1084
    %1120 = vmatprep.subr.mxu0 0.0
    %1121 = vmatpush1.msra.mxu0 0.0
    %1122 = vmatprep.subr.mxu0 0.0
    %1123 = vmatpush1.msra.mxu0 0.0
    %1124 = vmatprep.subr.mxu0 0.0
    %1125 = vmatpush1.msra.mxu0 0.0
    %1126 = vmatprep.subr.mxu0 0.0
    %1127 = vmatpush1.msra.mxu0 0.0
    %1128 = vmatprep.subr.mxu0 0.0
    %1129 = vmatpush1.msra.mxu0 0.0
    %1130 = vmatprep.subr.mxu0 0.0
    %1131 = vmatpush1.msra.mxu0 0.0
    %1132 = vmatprep.subr.mxu0 0.0
    %1133 = vmatpush1.msra.mxu0 0.0
    %1134 = vmatprep.subr.mxu0 0.0
    %1135 = vmatpush1.msra.mxu0 0.0
    %1136 = vmatprep.subr.mxu0 0.0
    %1137 = vmatpush1.msra.mxu0 0.0
    %1138 = vmatprep.subr.mxu0 0.0
    %1139 = vmatpush1.msra.mxu0 0.0
    %1140 = vmatprep.subr.mxu0 0.0
    %1141 = vmatpush1.msra.mxu0 0.0
    %1142 = vmatprep.subr.mxu0 0.0
    %1143 = vmatpush1.msra.mxu0 0.0
    %1144 = vmatprep.subr.mxu0 0.0
    %1145 = vmatpush1.msra.mxu0 0.0
    %1146 = vmatprep.subr.mxu0 0.0
    %1147 = vmatpush1.msra.mxu0 0.0
    %1148 = vmatprep.subr.mxu0 0.0
    %1149 = vmatpush1.msra.mxu0 0.0
    %1150 = vmatprep.subr.mxu0 0.0
    %1151 = vmatpush1.msra.mxu0 0.0
    %1152 = vmatprep.subr.mxu0 0.0
    %1153 = vmatpush1.msra.mxu0 0.0
    %1154 = vmatprep.subr.mxu0 0.0
    %1155 = vmatpush1.msra.mxu0 0.0
    %1156 = vmatprep.subr.mxu0 0.0
    %1157 = vmatpush1.msra.mxu0 0.0
    %1158 = vmatprep.subr.mxu0 0.0
    %1159 = vmatpush1.msra.mxu0 0.0
    %1160 = vmatprep.subr.mxu0 0.0
    %1161 = vmatpush1.msra.mxu0 0.0
    %1162 = vmatprep.subr.mxu0 0.0
    %1163 = vmatpush1.msra.mxu0 0.0
    %1164 = vmatprep.subr.mxu0 0.0
    %1165 = vmatpush1.msra.mxu0 0.0
    %1166 = vmatprep.subr.mxu0 0.0
    %1167 = vmatpush1.msra.mxu0 0.0
    %1168 = vmatprep.mubr.f32.mxu0 0.0
    %1169 = vmatmul.mubr.f32.gmra.mrb[0].mxu0 %v1093
    %v1170 = vpop.f32.mrb[0].mxu0
    %v1171 = vadd.f32 %v1090, %v1170
    %v1172 = vpop.f32.mrb[0].mxu0
    %1173 = vmatprep.mubr.f32.mxu0 0.0
    %1174 = vmatmul.mubr.f32.gmra.mrb[0].mxu0 %v1096
    %v1175 = vpop.f32.mrb[0].mxu0
    %v1176 = vadd.f32 %v1090, %v1175
    %v1177 = vpop.f32.mrb[0].mxu0
    %1178 = vmatprep.mubr.f32.mxu0 0.0
    %1179 = vmatmul.mubr.f32.gmra.mrb[0].mxu0 %v1099
    %v1180 = vpop.f32.mrb[0].mxu0
    %v1181 = vadd.f32 %v1090, %v1180
    %v1182 = vpop.f32.mrb[0].mxu0
    %1183 = vmatprep.mubr.f32.mxu0 0.0
    %1184 = vmatmul.mubr.f32.gmra.mrb[0].mxu0 %v1102
    %v1185 = vpop.f32.mrb[0].mxu0
    %v1186 = vadd.f32 %v1090, %v1185
    %v1187 = vpop.f32.mrb[0].mxu0
    %1188 = vdwg.mxu0
    %1189 = vrot.lane.b32.xlu0 %v1069, 64
    %v1190 = vpop.permute.xlu0 %1189
    %1191 = vrot.lane.b32.xlu0 %v1071, 64
    %v1192 = vpop.permute.xlu0 %1191
    %1193 = vrot.lane.b32.xlu0 %v1073, 64
    %v1194 = vpop.permute.xlu0 %1193
    %1195 = vrot.lane.b32.xlu0 %v1075, 64
    %v1196 = vpop.permute.xlu0 %1195
    %v1201 = vsel %vm701, 0.0, %v1190
    %v1202 = vsel %vm701, %v1070, %v1192
    %v1203 = vsel %vm701, %v1072, %v1194
    %v1204 = vsel %vm701, %v1074, %v1196
    %v1205 = vld [vmem:[#allocation2] sm:$0xff]
    %v1206 = vld [vmem:[#allocation2 + $0x8] sm:$0xff]
    %v1207 = vld [vmem:[#allocation2 + $0x10] sm:$0xff]
    %v1208 = vld [vmem:[#allocation2 + $0x18] sm:$0xff]
    %v1209 = vld [vmem:[#allocation2 + $0x20] sm:$0xff]
    %v1210 = vld [vmem:[#allocation2 + $0x28] sm:$0xff]
    %v1211 = vld [vmem:[#allocation2 + $0x30] sm:$0xff]
    %v1212 = vld [vmem:[#allocation2 + $0x38] sm:$0xff]
    %v1213 = vld [vmem:[#allocation2 + $0x40] sm:$0xff]
    %v1214 = vld [vmem:[#allocation2 + $0x48] sm:$0xff]
    %v1215 = vld [vmem:[#allocation2 + $0x50] sm:$0xff]
    %v1216 = vld [vmem:[#allocation2 + $0x58] sm:$0xff]
    %v1217 = vld [vmem:[#allocation2 + $0x60] sm:$0xff]
    %v1218 = vld [vmem:[#allocation2 + $0x68] sm:$0xff]
    %v1219 = vld [vmem:[#allocation2 + $0x70] sm:$0xff]
    %v1220 = vld [vmem:[#allocation2 + $0x78] sm:$0xff]
    %v1221 = vld [vmem:[#allocation2 + $0x80] sm:$0xff]
    %v1222 = vld [vmem:[#allocation2 + $0x88] sm:$0xff]
    %v1223 = vld [vmem:[#allocation2 + $0x90] sm:$0xff]
    %v1224 = vld [vmem:[#allocation2 + $0x98] sm:$0xff]
    %v1225 = vld [vmem:[#allocation2 + $0xa0] sm:$0xff]
    %v1226 = vld [vmem:[#allocation2 + $0xa8] sm:$0xff]
    %v1227 = vld [vmem:[#allocation2 + $0xb0] sm:$0xff]
    %v1228 = vld [vmem:[#allocation2 + $0xb8] sm:$0xff]
    %v1229 = vld [vmem:[%s8] sm:$0x1]
    %v1231 = vlaneseq
    %v1232 = vshrl.u32 %v1231, 7
    %v1233 = vsub.s32 0, %v1232
    %v1234 = vrot.slane %v1229, %v1233
    %v1237 = vsel %vm701, %v1070, 0
    %v1240 = vsel %vm701, %v1072, 0
    %v1243 = vsel %vm701, %v1074, 0
    %v1246 = vsel %vm701, %v1076, 0
    %1248 = vmatprep.subr.mxu0 0.0
    %1249 = vmatpush1.msra.mxu0 %v1205
    %1250 = vmatprep.subr.mxu0 0.0
    %1251 = vmatpush1.msra.mxu0 %v1206
    %1252 = vmatprep.subr.mxu0 0.0
    %1253 = vmatpush1.msra.mxu0 %v1207
    %1254 = vmatprep.subr.mxu0 0.0
    %1255 = vmatpush1.msra.mxu0 %v1208
    %1256 = vmatprep.subr.mxu0 0.0
    %1257 = vmatpush1.msra.mxu0 %v1209
    %1258 = vmatprep.subr.mxu0 0.0
    %1259 = vmatpush1.msra.mxu0 %v1210
    %1260 = vmatprep.subr.mxu0 0.0
    %1261 = vmatpush1.msra.mxu0 %v1211
    %1262 = vmatprep.subr.mxu0 0.0
    %1263 = vmatpush1.msra.mxu0 %v1212
    %1264 = vmatprep.subr.mxu0 0.0
    %1265 = vmatpush1.msra.mxu0 %v1213
    %1266 = vmatprep.subr.mxu0 0.0
    %1267 = vmatpush1.msra.mxu0 %v1214
    %1268 = vmatprep.subr.mxu0 0.0
    %1269 = vmatpush1.msra.mxu0 %v1215
    %1270 = vmatprep.subr.mxu0 0.0
    %1271 = vmatpush1.msra.mxu0 %v1216
    %1272 = vmatprep.subr.mxu0 0.0
    %1273 = vmatpush1.msra.mxu0 %v1217
    %1274 = vmatprep.subr.mxu0 0.0
    %1275 = vmatpush1.msra.mxu0 %v1218
    %1276 = vmatprep.subr.mxu0 0.0
    %1277 = vmatpush1.msra.mxu0 %v1219
    %1278 = vmatprep.subr.mxu0 0.0
    %1279 = vmatpush1.msra.mxu0 %v1220
    %1280 = vmatprep.subr.mxu0 0.0
    %1281 = vmatpush1.msra.mxu0 %v1221
    %1282 = vmatprep.subr.mxu0 0.0
    %1283 = vmatpush1.msra.mxu0 %v1222
    %1284 = vmatprep.subr.mxu0 0.0
    %1285 = vmatpush1.msra.mxu0 %v1223
    %1286 = vmatprep.subr.mxu0 0.0
    %1287 = vmatpush1.msra.mxu0 %v1224
    %1288 = vmatprep.subr.mxu0 0.0
    %1289 = vmatpush1.msra.mxu0 %v1225
    %1290 = vmatprep.subr.mxu0 0.0
    %1291 = vmatpush1.msra.mxu0 %v1226
    %1292 = vmatprep.subr.mxu0 0.0
    %1293 = vmatpush1.msra.mxu0 %v1227
    %1294 = vmatprep.subr.mxu0 0.0
    %1295 = vmatpush1.msra.mxu0 %v1228
    %1296 = vmatprep.subr.mxu0 0.0
    %1297 = vmatpush1.msra.mxu0 0.0
    %1298 = vmatprep.subr.mxu0 0.0
    %1299 = vmatpush1.msra.mxu0 0.0
    %1300 = vmatprep.subr.mxu0 0.0
    %1301 = vmatpush1.msra.mxu0 0.0
    %1302 = vmatprep.subr.mxu0 0.0
    %1303 = vmatpush1.msra.mxu0 0.0
    %1304 = vmatprep.subr.mxu0 0.0
    %1305 = vmatpush1.msra.mxu0 0.0
    %1306 = vmatprep.subr.mxu0 0.0
    %1307 = vmatpush1.msra.mxu0 0.0
    %1308 = vmatprep.subr.mxu0 0.0
    %1309 = vmatpush1.msra.mxu0 0.0
    %1310 = vmatprep.subr.mxu0 0.0
    %1311 = vmatpush1.msra.mxu0 0.0
    %1312 = vmatprep.mubr.f32.mxu0 %v1237
    %1313 = vmatmul.mubr.f32.gmra.mrb[0].mxu0 %v1201
    %v1314 = vpop.f32.mrb[0].mxu0
    %v1315 = vadd.f32 %v1234, %v1314
    %v1316 = vpop.f32.mrb[0].mxu0
    %1317 = vmatprep.mubr.f32.mxu0 %v1240
    %1318 = vmatmul.mubr.f32.gmra.mrb[0].mxu0 %v1202
    %v1319 = vpop.f32.mrb[0].mxu0
    %v1320 = vadd.f32 %v1234, %v1319
    %v1321 = vpop.f32.mrb[0].mxu0
    %1322 = vmatprep.mubr.f32.mxu0 %v1243
    %1323 = vmatmul.mubr.f32.gmra.mrb[0].mxu0 %v1203
    %v1324 = vpop.f32.mrb[0].mxu0
    %v1325 = vadd.f32 %v1234, %v1324
    %v1326 = vpop.f32.mrb[0].mxu0
    %1327 = vmatprep.mubr.f32.mxu0 %v1246
    %1328 = vmatmul.mubr.f32.gmra.mrb[0].mxu0 %v1204
    %v1329 = vpop.f32.mrb[0].mxu0
    %v1330 = vadd.f32 %v1234, %v1329
    %v1331 = vpop.f32.mrb[0].mxu0
    %1332 = vdwg.mxu0
    %v1333 = vmax.f32 %v1315, 0.0
    %v1334 = vmax.f32 %v1320, 0.0
    %v1335 = vmax.f32 %v1325, 0.0
    %v1336 = vmax.f32 %v1330, 0.0
    %v1337 = vld [vmem:[%s9] sm:$0xff]
    %v1338 = vld [vmem:[%s9 + $0x8] sm:$0xff]
    %v1339 = vld [vmem:[%s9 + $0x10] sm:$0xff]
    %v1340 = vld [vmem:[%s9 + $0x18] sm:$0xff]
    %v1341 = vld [vmem:[%s9 + $0x20] sm:$0xff]
    %v1342 = vld [vmem:[%s9 + $0x28] sm:$0xff]
    %v1343 = vld [vmem:[%s9 + $0x30] sm:$0xff]
    %v1344 = vld [vmem:[%s9 + $0x38] sm:$0xff]
    %v1345 = vld [vmem:[%s9 + $0x40] sm:$0xff]
    %v1346 = vld [vmem:[%s9 + $0x48] sm:$0xff]
    %v1347 = vld [vmem:[%s9 + $0x50] sm:$0xff]
    %v1348 = vld [vmem:[%s9 + $0x58] sm:$0xff]
    %v1349 = vld [vmem:[%s9 + $0x60] sm:$0xff]
    %v1350 = vld [vmem:[%s9 + $0x68] sm:$0xff]
    %v1351 = vld [vmem:[%s9 + $0x70] sm:$0xff]
    %v1352 = vld [vmem:[%s9 + $0x78] sm:$0xff]
    %v1353 = vld [vmem:[%s9 + $0x80] sm:$0xff]
    %v1354 = vld [vmem:[%s9 + $0x88] sm:$0xff]
    %v1355 = vld [vmem:[%s9 + $0x90] sm:$0xff]
    %v1356 = vld [vmem:[%s9 + $0x98] sm:$0xff]
    %v1357 = vld [vmem:[%s9 + $0xa0] sm:$0xff]
    %v1358 = vld [vmem:[%s9 + $0xa8] sm:$0xff]
    %v1359 = vld [vmem:[%s9 + $0xb0] sm:$0xff]
    %v1360 = vld [vmem:[%s9 + $0xb8] sm:$0xff]
    %v1361 = vld [vmem:[%s9 + $0xc0] sm:$0xff]
    %v1362 = vld [vmem:[%s9 + $0xc8] sm:$0xff]
    %v1363 = vld [vmem:[%s9 + $0xd0] sm:$0xff]
    %v1364 = vld [vmem:[%s9 + $0xd8] sm:$0xff]
    %v1365 = vld [vmem:[%s9 + $0xe0] sm:$0xff]
    %v1366 = vld [vmem:[%s9 + $0xe8] sm:$0xff]
    %v1367 = vld [vmem:[%s9 + $0xf0] sm:$0xff]
    %v1368 = vld [vmem:[%s9 + $0xf8] sm:$0xff]
    %v1369 = vld [vmem:[%s9 + $0x100] sm:$0xff]
    %v1370 = vld [vmem:[%s9 + $0x108] sm:$0xff]
    %v1371 = vld [vmem:[%s9 + $0x110] sm:$0xff]
    %v1372 = vld [vmem:[%s9 + $0x118] sm:$0xff]
    %v1373 = vld [vmem:[%s9 + $0x120] sm:$0xff]
    %v1374 = vld [vmem:[%s9 + $0x128] sm:$0xff]
    %v1375 = vld [vmem:[%s9 + $0x130] sm:$0xff]
    %v1376 = vld [vmem:[%s9 + $0x138] sm:$0xff]
    %v1377 = vld [vmem:[%s9 + $0x140] sm:$0xff]
    %v1378 = vld [vmem:[%s9 + $0x148] sm:$0xff]
    %v1379 = vld [vmem:[%s9 + $0x150] sm:$0xff]
    %v1380 = vld [vmem:[%s9 + $0x158] sm:$0xff]
    %v1381 = vld [vmem:[%s9 + $0x160] sm:$0xff]
    %v1382 = vld [vmem:[%s9 + $0x168] sm:$0xff]
    %v1383 = vld [vmem:[%s9 + $0x170] sm:$0xff]
    %v1384 = vld [vmem:[%s9 + $0x178] sm:$0xff]
    %v1385 = vld [vmem:[%s10] sm:$0x1]
    %v1387 = vlaneseq
    %v1388 = vshrl.u32 %v1387, 7
    %v1389 = vsub.s32 0, %v1388
    %v1390 = vrot.slane %v1385, %v1389
    %1392 = vmatprep.subr.mxu0 0.0
    %1393 = vmatpush1.msra.mxu0 %v1337
    %1394 = vmatprep.subr.mxu0 0.0
    %1395 = vmatpush1.msra.mxu0 %v1338
    %1396 = vmatprep.subr.mxu0 0.0
    %1397 = vmatpush1.msra.mxu0 %v1339
    %1398 = vmatprep.subr.mxu0 0.0
    %1399 = vmatpush1.msra.mxu0 %v1340
    %1400 = vmatprep.subr.mxu0 0.0
    %1401 = vmatpush1.msra.mxu0 %v1341
    %1402 = vmatprep.subr.mxu0 0.0
    %1403 = vmatpush1.msra.mxu0 %v1342
    %1404 = vmatprep.subr.mxu0 0.0
    %1405 = vmatpush1.msra.mxu0 %v1343
    %1406 = vmatprep.subr.mxu0 0.0
    %1407 = vmatpush1.msra.mxu0 %v1344
    %1408 = vmatprep.subr.mxu0 0.0
    %1409 = vmatpush1.msra.mxu0 %v1345
    %1410 = vmatprep.subr.mxu0 0.0
    %1411 = vmatpush1.msra.mxu0 %v1346
    %1412 = vmatprep.subr.mxu0 0.0
    %1413 = vmatpush1.msra.mxu0 %v1347
    %1414 = vmatprep.subr.mxu0 0.0
    %1415 = vmatpush1.msra.mxu0 %v1348
    %1416 = vmatprep.subr.mxu0 0.0
    %1417 = vmatpush1.msra.mxu0 %v1349
    %1418 = vmatprep.subr.mxu0 0.0
    %1419 = vmatpush1.msra.mxu0 %v1350
    %1420 = vmatprep.subr.mxu0 0.0
    %1421 = vmatpush1.msra.mxu0 %v1351
    %1422 = vmatprep.subr.mxu0 0.0
    %1423 = vmatpush1.msra.mxu0 %v1352
    %1424 = vmatprep.subr.mxu0 0.0
    %1425 = vmatpush1.msra.mxu0 %v1353
    %1426 = vmatprep.subr.mxu0 0.0
    %1427 = vmatpush1.msra.mxu0 %v1354
    %1428 = vmatprep.subr.mxu0 0.0
    %1429 = vmatpush1.msra.mxu0 %v1355
    %1430 = vmatprep.subr.mxu0 0.0
    %1431 = vmatpush1.msra.mxu0 %v1356
    %1432 = vmatprep.subr.mxu0 0.0
    %1433 = vmatpush1.msra.mxu0 %v1357
    %1434 = vmatprep.subr.mxu0 0.0
    %1435 = vmatpush1.msra.mxu0 %v1358
    %1436 = vmatprep.subr.mxu0 0.0
    %1437 = vmatpush1.msra.mxu0 %v1359
    %1438 = vmatprep.subr.mxu0 0.0
    %1439 = vmatpush1.msra.mxu0 %v1360
    %1440 = vmatprep.subr.mxu0 0.0
    %1441 = vmatpush1.msra.mxu0 %v1361
    %1442 = vmatprep.subr.mxu0 0.0
    %1443 = vmatpush1.msra.mxu0 %v1362
    %1444 = vmatprep.subr.mxu0 0.0
    %1445 = vmatpush1.msra.mxu0 %v1363
    %1446 = vmatprep.subr.mxu0 0.0
    %1447 = vmatpush1.msra.mxu0 %v1364
    %1448 = vmatprep.subr.mxu0 0.0
    %1449 = vmatpush1.msra.mxu0 %v1365
    %1450 = vmatprep.subr.mxu0 0.0
    %1451 = vmatpush1.msra.mxu0 %v1366
    %1452 = vmatprep.subr.mxu0 0.0
    %1453 = vmatpush1.msra.mxu0 %v1367
    %1454 = vmatprep.subr.mxu0 0.0
    %1455 = vmatpush1.msra.mxu0 %v1368
    %1456 = vmatprep.mubr.f32.mxu0 %v1333
    %1457 = vmatmul.mubr.f32.gmra.mrb[0].mxu0 0.0
    %v1458 = vpop.f32.mrb[0].mxu0
    %v1459 = vadd.f32 %v1390, %v1458
    %v1460 = vpop.f32.mrb[0].mxu0
    %1461 = vmatprep.mubr.f32.mxu0 %v1334
    %1462 = vmatmul.mubr.f32.gmra.mrb[0].mxu0 %v1333
    %v1463 = vpop.f32.mrb[0].mxu0
    %v1464 = vadd.f32 %v1390, %v1463
    %v1465 = vpop.f32.mrb[0].mxu0
    %1466 = vmatprep.mubr.f32.mxu0 %v1335
    %1467 = vmatmul.mubr.f32.gmra.mrb[0].mxu0 %v1334
    %v1468 = vpop.f32.mrb[0].mxu0
    %v1469 = vadd.f32 %v1390, %v1468
    %v1470 = vpop.f32.mrb[0].mxu0
    %1471 = vmatprep.mubr.f32.mxu0 %v1336
    %1472 = vmatmul.mubr.f32.gmra.mrb[0].mxu0 %v1335
    %v1473 = vpop.f32.mrb[0].mxu0
    %v1474 = vadd.f32 %v1390, %v1473
    %v1475 = vpop.f32.mrb[0].mxu0
    %1476 = vdwg.mxu0
    %1477 = vmatprep.subr.mxu0 0.0
    %1478 = vmatpush1.msra.mxu0 %v1369
    %1479 = vmatprep.subr.mxu0 0.0
    %1480 = vmatpush1.msra.mxu0 %v1370
    %1481 = vmatprep.subr.mxu0 0.0
    %1482 = vmatpush1.msra.mxu0 %v1371
    %1483 = vmatprep.subr.mxu0 0.0
    %1484 = vmatpush1.msra.mxu0 %v1372
    %1485 = vmatprep.subr.mxu0 0.0
    %1486 = vmatpush1.msra.mxu0 %v1373
    %1487 = vmatprep.subr.mxu0 0.0
    %1488 = vmatpush1.msra.mxu0 %v1374
    %1489 = vmatprep.subr.mxu0 0.0
    %1490 = vmatpush1.msra.mxu0 %v1375
    %1491 = vmatprep.subr.mxu0 0.0
    %1492 = vmatpush1.msra.mxu0 %v1376
    %1493 = vmatprep.subr.mxu0 0.0
    %1494 = vmatpush1.msra.mxu0 %v1377
    %1495 = vmatprep.subr.mxu0 0.0
    %1496 = vmatpush1.msra.mxu0 %v1378
    %1497 = vmatprep.subr.mxu0 0.0
    %1498 = vmatpush1.msra.mxu0 %v1379
    %1499 = vmatprep.subr.mxu0 0.0
    %1500 = vmatpush1.msra.mxu0 %v1380
    %1501 = vmatprep.subr.mxu0 0.0
    %1502 = vmatpush1.msra.mxu0 %v1381
    %1503 = vmatprep.subr.mxu0 0.0
    %1504 = vmatpush1.msra.mxu0 %v1382
    %1505 = vmatprep.subr.mxu0 0.0
    %1506 = vmatpush1.msra.mxu0 %v1383
    %1507 = vmatprep.subr.mxu0 0.0
    %1508 = vmatpush1.msra.mxu0 %v1384
    %1509 = vmatprep.subr.mxu0 0.0
    %1510 = vmatpush1.msra.mxu0 0.0
    %1511 = vmatprep.subr.mxu0 0.0
    %1512 = vmatpush1.msra.mxu0 0.0
    %1513 = vmatprep.subr.mxu0 0.0
    %1514 = vmatpush1.msra.mxu0 0.0
    %1515 = vmatprep.subr.mxu0 0.0
    %1516 = vmatpush1.msra.mxu0 0.0
    %1517 = vmatprep.subr.mxu0 0.0
    %1518 = vmatpush1.msra.mxu0 0.0
    %1519 = vmatprep.subr.mxu0 0.0
    %1520 = vmatpush1.msra.mxu0 0.0
    %1521 = vmatprep.subr.mxu0 0.0
    %1522 = vmatpush1.msra.mxu0 0.0
    %1523 = vmatprep.subr.mxu0 0.0
    %1524 = vmatpush1.msra.mxu0 0.0
    %1525 = vmatprep.subr.mxu0 0.0
    %1526 = vmatpush1.msra.mxu0 0.0
    %1527 = vmatprep.subr.mxu0 0.0
    %1528 = vmatpush1.msra.mxu0 0.0
    %1529 = vmatprep.subr.mxu0 0.0
    %1530 = vmatpush1.msra.mxu0 0.0
    %1531 = vmatprep.subr.mxu0 0.0
    %1532 = vmatpush1.msra.mxu0 0.0
    %1533 = vmatprep.subr.mxu0 0.0
    %1534 = vmatpush1.msra.mxu0 0.0
    %1535 = vmatprep.subr.mxu0 0.0
    %1536 = vmatpush1.msra.mxu0 0.0
    %1537 = vmatprep.subr.mxu0 0.0
    %1538 = vmatpush1.msra.mxu0 0.0
    %1539 = vmatprep.subr.mxu0 0.0
    %1540 = vmatpush1.msra.mxu0 0.0
    %1541 = vmatprep.mubr.f32.mxu0 0.0
    %1542 = vmatmul.mubr.f32.gmra.mrb[0].mxu0 %v1334
    %v1543 = vpop.f32.mrb[0].mxu0
    %v1544 = vadd.f32 %v1459, %v1543
    %v1545 = vpop.f32.mrb[0].mxu0
    %1546 = vmatprep.mubr.f32.mxu0 0.0
    %1547 = vmatmul.mubr.f32.gmra.mrb[0].mxu0 %v1335
    %v1548 = vpop.f32.mrb[0].mxu0
    %v1549 = vadd.f32 %v1464, %v1548
    %v1550 = vpop.f32.mrb[0].mxu0
    %1551 = vmatprep.mubr.f32.mxu0 0.0
    %1552 = vmatmul.mubr.f32.gmra.mrb[0].mxu0 %v1336
    %v1553 = vpop.f32.mrb[0].mxu0
    %v1554 = vadd.f32 %v1469, %v1553
    %v1555 = vpop.f32.mrb[0].mxu0
    %1556 = vmatprep.mubr.f32.mxu0 0.0
    %1557 = vmatmul.mubr.f32.gmra.mrb[0].mxu0 0.0
    %v1558 = vpop.f32.mrb[0].mxu0
    %v1559 = vadd.f32 %v1474, %v1558
    %v1560 = vpop.f32.mrb[0].mxu0
    %1561 = vdwg.mxu0
    %v1562 = vadd.f32 %v1544, %v1171
    %v1563 = vadd.f32 %v1549, %v1176
    %v1564 = vadd.f32 %v1554, %v1181
    %v1565 = vadd.f32 %v1559, %v1186
    %v1566 = vmax.f32 %v1562, 0.0
    %v1567 = vmax.f32 %v1563, 0.0
    %v1568 = vmax.f32 %v1564, 0.0
    %v1569 = vmax.f32 %v1565, 0.0
    %v1570 = vld [vmem:[%s17] sm:$0xff]
    %v1571 = vld [vmem:[%s17 + $0x8] sm:$0xff]
    %v1572 = vld [vmem:[%s17 + $0x10] sm:$0xff]
    %v1573 = vld [vmem:[%s17 + $0x18] sm:$0xff]
    %v1574 = vld [vmem:[%s17 + $0x20] sm:$0xff]
    %v1575 = vld [vmem:[%s17 + $0x28] sm:$0xff]
    %v1576 = vld [vmem:[%s17 + $0x30] sm:$0xff]
    %v1577 = vld [vmem:[%s17 + $0x38] sm:$0xff]
    %v1578 = vld [vmem:[%s17 + $0x40] sm:$0xff]
    %v1579 = vld [vmem:[%s17 + $0x48] sm:$0xff]
    %v1580 = vld [vmem:[%s17 + $0x50] sm:$0xff]
    %v1581 = vld [vmem:[%s17 + $0x58] sm:$0xff]
    %v1582 = vld [vmem:[%s17 + $0x60] sm:$0xff]
    %v1583 = vld [vmem:[%s17 + $0x68] sm:$0xff]
    %v1584 = vld [vmem:[%s17 + $0x70] sm:$0xff]
    %v1585 = vld [vmem:[%s17 + $0x78] sm:$0xff]
    %v1586 = vld [vmem:[%s17 + $0x80] sm:$0xff]
    %v1587 = vld [vmem:[%s17 + $0x88] sm:$0xff]
    %v1588 = vld [vmem:[%s17 + $0x90] sm:$0xff]
    %v1589 = vld [vmem:[%s17 + $0x98] sm:$0xff]
    %v1590 = vld [vmem:[%s17 + $0xa0] sm:$0xff]
    %v1591 = vld [vmem:[%s17 + $0xa8] sm:$0xff]
    %v1592 = vld [vmem:[%s17 + $0xb0] sm:$0xff]
    %v1593 = vld [vmem:[%s17 + $0xb8] sm:$0xff]
    %v1594 = vld [vmem:[%s17 + $0xc0] sm:$0xff]
    %v1595 = vld [vmem:[%s17 + $0xc8] sm:$0xff]
    %v1596 = vld [vmem:[%s17 + $0xd0] sm:$0xff]
    %v1597 = vld [vmem:[%s17 + $0xd8] sm:$0xff]
    %v1598 = vld [vmem:[%s17 + $0xe0] sm:$0xff]
    %v1599 = vld [vmem:[%s17 + $0xe8] sm:$0xff]
    %v1600 = vld [vmem:[%s17 + $0xf0] sm:$0xff]
    %v1601 = vld [vmem:[%s17 + $0xf8] sm:$0xff]
    %v1602 = vld [vmem:[%s18] sm:$0x3]
    %v1604 = vlaneseq
    %v1605 = vshrl.u32 %v1604, 7
    %v1606 = vsub.s32 0, %v1605
    %v1607 = vrot.slane %v1602, %v1606
    %v1608 = vlaneseq
    %v1609 = vshrl.u32 %v1608, 7
    %v1610 = vsub.s32 1, %v1609
    %v1611 = vrot.slane %v1602, %v1610
    %1614 = vmatprep.subr.mxu0 %v1571
    %1615 = vmatpush1.msra.mxu0 %v1570
    %1616 = vmatprep.subr.mxu0 %v1573
    %1617 = vmatpush1.msra.mxu0 %v1572
    %1618 = vmatprep.subr.mxu0 %v1575
    %1619 = vmatpush1.msra.mxu0 %v1574
    %1620 = vmatprep.subr.mxu0 %v1577
    %1621 = vmatpush1.msra.mxu0 %v1576
    %1622 = vmatprep.subr.mxu0 %v1579
    %1623 = vmatpush1.msra.mxu0 %v1578
    %1624 = vmatprep.subr.mxu0 %v1581
    %1625 = vmatpush1.msra.mxu0 %v1580
    %1626 = vmatprep.subr.mxu0 %v1583
    %1627 = vmatpush1.msra.mxu0 %v1582
    %1628 = vmatprep.subr.mxu0 %v1585
    %1629 = vmatpush1.msra.mxu0 %v1584
    %1630 = vmatprep.subr.mxu0 %v1587
    %1631 = vmatpush1.msra.mxu0 %v1586
    %1632 = vmatprep.subr.mxu0 %v1589
    %1633 = vmatpush1.msra.mxu0 %v1588
    %1634 = vmatprep.subr.mxu0 %v1591
    %1635 = vmatpush1.msra.mxu0 %v1590
    %1636 = vmatprep.subr.mxu0 %v1593
    %1637 = vmatpush1.msra.mxu0 %v1592
    %1638 = vmatprep.subr.mxu0 %v1595
    %1639 = vmatpush1.msra.mxu0 %v1594
    %1640 = vmatprep.subr.mxu0 %v1597
    %1641 = vmatpush1.msra.mxu0 %v1596
    %1642 = vmatprep.subr.mxu0 %v1599
    %1643 = vmatpush1.msra.mxu0 %v1598
    %1644 = vmatprep.subr.mxu0 %v1601
    %1645 = vmatpush1.msra.mxu0 %v1600
    %1646 = vmatprep.subr.mxu0 0.0
    %1647 = vmatpush1.msra.mxu0 0.0
    %1648 = vmatprep.subr.mxu0 0.0
    %1649 = vmatpush1.msra.mxu0 0.0
    %1650 = vmatprep.subr.mxu0 0.0
    %1651 = vmatpush1.msra.mxu0 0.0
    %1652 = vmatprep.subr.mxu0 0.0
    %1653 = vmatpush1.msra.mxu0 0.0
    %1654 = vmatprep.subr.mxu0 0.0
    %1655 = vmatpush1.msra.mxu0 0.0
    %1656 = vmatprep.subr.mxu0 0.0
    %1657 = vmatpush1.msra.mxu0 0.0
    %1658 = vmatprep.subr.mxu0 0.0
    %1659 = vmatpush1.msra.mxu0 0.0
    %1660 = vmatprep.subr.mxu0 0.0
    %1661 = vmatpush1.msra.mxu0 0.0
    %1662 = vmatprep.subr.mxu0 0.0
    %1663 = vmatpush1.msra.mxu0 0.0
    %1664 = vmatprep.subr.mxu0 0.0
    %1665 = vmatpush1.msra.mxu0 0.0
    %1666 = vmatprep.subr.mxu0 0.0
    %1667 = vmatpush1.msra.mxu0 0.0
    %1668 = vmatprep.subr.mxu0 0.0
    %1669 = vmatpush1.msra.mxu0 0.0
    %1670 = vmatprep.subr.mxu0 0.0
    %1671 = vmatpush1.msra.mxu0 0.0
    %1672 = vmatprep.subr.mxu0 0.0
    %1673 = vmatpush1.msra.mxu0 0.0
    %1674 = vmatprep.subr.mxu0 0.0
    %1675 = vmatpush1.msra.mxu0 0.0
    %1676 = vmatprep.subr.mxu0 0.0
    %1677 = vmatpush1.msra.mxu0 0.0
    %1678 = vmatprep.mubr.f32.mxu0 0.0
    %1679 = vmatmul.mubr.f32.gmra.mrb[0].mxu0 %v1566
    %v1680 = vpop.f32.mrb[0].mxu0
    %v1681 = vadd.f32 %v1607, %v1680
    %v1682 = vpop.f32.mrb[0].mxu0
    %v1683 = vadd.f32 %v1611, %v1682
    %1684 = vmatprep.mubr.f32.mxu0 0.0
    %1685 = vmatmul.mubr.f32.gmra.mrb[0].mxu0 %v1568
    %v1686 = vpop.f32.mrb[0].mxu0
    %v1687 = vadd.f32 %v1607, %v1686
    %v1688 = vpop.f32.mrb[0].mxu0
    %v1689 = vadd.f32 %v1611, %v1688
    %1690 = vdwg.mxu0
    %v1691 = vld [vmem:[#allocation6] sm:$0xff]
    %v1692 = vld [vmem:[#allocation6 + $0x8] sm:$0xff]
    %v1693 = vld [vmem:[#allocation6 + $0x10] sm:$0xff]
    %v1694 = vld [vmem:[#allocation6 + $0x18] sm:$0xff]
    %v1695 = vld [vmem:[#allocation6 + $0x20] sm:$0xff]
    %v1696 = vld [vmem:[#allocation6 + $0x28] sm:$0xff]
    %v1697 = vld [vmem:[#allocation6 + $0x30] sm:$0xff]
    %v1698 = vld [vmem:[#allocation6 + $0x38] sm:$0xff]
    %v1699 = vld [vmem:[#allocation6 + $0x40] sm:$0xff]
    %v1700 = vld [vmem:[#allocation6 + $0x48] sm:$0xff]
    %v1701 = vld [vmem:[#allocation6 + $0x50] sm:$0xff]
    %v1702 = vld [vmem:[#allocation6 + $0x58] sm:$0xff]
    %v1703 = vld [vmem:[#allocation6 + $0x60] sm:$0xff]
    %v1704 = vld [vmem:[#allocation6 + $0x68] sm:$0xff]
    %v1705 = vld [vmem:[#allocation6 + $0x70] sm:$0xff]
    %v1706 = vld [vmem:[#allocation6 + $0x78] sm:$0xff]
    %v1707 = vld [vmem:[#allocation6 + $0x80] sm:$0xff]
    %v1708 = vld [vmem:[#allocation6 + $0x88] sm:$0xff]
    %v1709 = vld [vmem:[#allocation6 + $0x90] sm:$0xff]
    %v1710 = vld [vmem:[#allocation6 + $0x98] sm:$0xff]
    %v1711 = vld [vmem:[#allocation6 + $0xa0] sm:$0xff]
    %v1712 = vld [vmem:[#allocation6 + $0xa8] sm:$0xff]
    %v1713 = vld [vmem:[#allocation6 + $0xb0] sm:$0xff]
    %v1714 = vld [vmem:[#allocation6 + $0xb8] sm:$0xff]
    %v1715 = vld [vmem:[#allocation6 + $0xc0] sm:$0xff]
    %v1716 = vld [vmem:[#allocation6 + $0xc8] sm:$0xff]
    %v1717 = vld [vmem:[#allocation6 + $0xd0] sm:$0xff]
    %v1718 = vld [vmem:[#allocation6 + $0xd8] sm:$0xff]
    %v1719 = vld [vmem:[#allocation6 + $0xe0] sm:$0xff]
    %v1720 = vld [vmem:[#allocation6 + $0xe8] sm:$0xff]
    %v1721 = vld [vmem:[#allocation6 + $0xf0] sm:$0xff]
    %v1722 = vld [vmem:[#allocation6 + $0xf8] sm:$0xff]
    %v1723 = vld [vmem:[#allocation6 + $0x100] sm:$0xff]
    %v1724 = vld [vmem:[#allocation6 + $0x108] sm:$0xff]
    %v1725 = vld [vmem:[#allocation6 + $0x110] sm:$0xff]
    %v1726 = vld [vmem:[#allocation6 + $0x118] sm:$0xff]
    %v1727 = vld [vmem:[#allocation6 + $0x120] sm:$0xff]
    %v1728 = vld [vmem:[#allocation6 + $0x128] sm:$0xff]
    %v1729 = vld [vmem:[#allocation6 + $0x130] sm:$0xff]
    %v1730 = vld [vmem:[#allocation6 + $0x138] sm:$0xff]
    %v1731 = vld [vmem:[#allocation6 + $0x140] sm:$0xff]
    %v1732 = vld [vmem:[#allocation6 + $0x148] sm:$0xff]
    %v1733 = vld [vmem:[#allocation6 + $0x150] sm:$0xff]
    %v1734 = vld [vmem:[#allocation6 + $0x158] sm:$0xff]
    %v1735 = vld [vmem:[#allocation6 + $0x160] sm:$0xff]
    %v1736 = vld [vmem:[#allocation6 + $0x168] sm:$0xff]
    %v1737 = vld [vmem:[#allocation6 + $0x170] sm:$0xff]
    %v1738 = vld [vmem:[#allocation6 + $0x178] sm:$0xff]
    %v1739 = vld [vmem:[#allocation6 + $0x180] sm:$0xff]
    %v1740 = vld [vmem:[#allocation6 + $0x188] sm:$0xff]
    %v1741 = vld [vmem:[#allocation6 + $0x190] sm:$0xff]
    %v1742 = vld [vmem:[#allocation6 + $0x198] sm:$0xff]
    %v1743 = vld [vmem:[#allocation6 + $0x1a0] sm:$0xff]
    %v1744 = vld [vmem:[#allocation6 + $0x1a8] sm:$0xff]
    %v1745 = vld [vmem:[#allocation6 + $0x1b0] sm:$0xff]
    %v1746 = vld [vmem:[#allocation6 + $0x1b8] sm:$0xff]
    %v1747 = vld [vmem:[#allocation6 + $0x1c0] sm:$0xff]
    %v1748 = vld [vmem:[#allocation6 + $0x1c8] sm:$0xff]
    %v1749 = vld [vmem:[#allocation6 + $0x1d0] sm:$0xff]
    %v1750 = vld [vmem:[#allocation6 + $0x1d8] sm:$0xff]
    %v1751 = vld [vmem:[#allocation6 + $0x1e0] sm:$0xff]
    %v1752 = vld [vmem:[#allocation6 + $0x1e8] sm:$0xff]
    %v1753 = vld [vmem:[#allocation6 + $0x1f0] sm:$0xff]
    %v1754 = vld [vmem:[#allocation6 + $0x1f8] sm:$0xff]
    %v1755 = vld [vmem:[#allocation6 + $0x200] sm:$0xff]
    %v1756 = vld [vmem:[#allocation6 + $0x208] sm:$0xff]
    %v1757 = vld [vmem:[#allocation6 + $0x210] sm:$0xff]
    %v1758 = vld [vmem:[#allocation6 + $0x218] sm:$0xff]
    %v1759 = vld [vmem:[#allocation6 + $0x220] sm:$0xff]
    %v1760 = vld [vmem:[#allocation6 + $0x228] sm:$0xff]
    %v1761 = vld [vmem:[#allocation6 + $0x230] sm:$0xff]
    %v1762 = vld [vmem:[#allocation6 + $0x238] sm:$0xff]
    %v1763 = vld [vmem:[#allocation6 + $0x240] sm:$0xff]
    %v1764 = vld [vmem:[#allocation6 + $0x248] sm:$0xff]
    %v1765 = vld [vmem:[#allocation6 + $0x250] sm:$0xff]
    %v1766 = vld [vmem:[#allocation6 + $0x258] sm:$0xff]
    %v1767 = vld [vmem:[#allocation6 + $0x260] sm:$0xff]
    %v1768 = vld [vmem:[#allocation6 + $0x268] sm:$0xff]
    %v1769 = vld [vmem:[#allocation6 + $0x270] sm:$0xff]
    %v1770 = vld [vmem:[#allocation6 + $0x278] sm:$0xff]
    %v1771 = vld [vmem:[#allocation6 + $0x280] sm:$0xff]
    %v1772 = vld [vmem:[#allocation6 + $0x288] sm:$0xff]
    %v1773 = vld [vmem:[#allocation6 + $0x290] sm:$0xff]
    %v1774 = vld [vmem:[#allocation6 + $0x298] sm:$0xff]
    %v1775 = vld [vmem:[#allocation6 + $0x2a0] sm:$0xff]
    %v1776 = vld [vmem:[#allocation6 + $0x2a8] sm:$0xff]
    %v1777 = vld [vmem:[#allocation6 + $0x2b0] sm:$0xff]
    %v1778 = vld [vmem:[#allocation6 + $0x2b8] sm:$0xff]
    %v1779 = vld [vmem:[#allocation6 + $0x2c0] sm:$0xff]
    %v1780 = vld [vmem:[#allocation6 + $0x2c8] sm:$0xff]
    %v1781 = vld [vmem:[#allocation6 + $0x2d0] sm:$0xff]
    %v1782 = vld [vmem:[#allocation6 + $0x2d8] sm:$0xff]
    %v1783 = vld [vmem:[#allocation6 + $0x2e0] sm:$0xff]
    %v1784 = vld [vmem:[#allocation6 + $0x2e8] sm:$0xff]
    %v1785 = vld [vmem:[#allocation6 + $0x2f0] sm:$0xff]
    %v1786 = vld [vmem:[#allocation6 + $0x2f8] sm:$0xff]
    %v1787 = vld [vmem:[%s14] sm:$0x3]
    %v1789 = vlaneseq
    %v1790 = vshrl.u32 %v1789, 7
    %v1791 = vsub.s32 0, %v1790
    %v1792 = vrot.slane %v1787, %v1791
    %v1793 = vlaneseq
    %v1794 = vshrl.u32 %v1793, 7
    %v1795 = vsub.s32 1, %v1794
    %v1796 = vrot.slane %v1787, %v1795
    %1799 = vmatprep.subr.mxu0 %v1692
    %1800 = vmatpush1.msra.mxu0 %v1691
    %1801 = vmatprep.subr.mxu0 %v1694
    %1802 = vmatpush1.msra.mxu0 %v1693
    %1803 = vmatprep.subr.mxu0 %v1696
    %1804 = vmatpush1.msra.mxu0 %v1695
    %1805 = vmatprep.subr.mxu0 %v1698
    %1806 = vmatpush1.msra.mxu0 %v1697
    %1807 = vmatprep.subr.mxu0 %v1700
    %1808 = vmatpush1.msra.mxu0 %v1699
    %1809 = vmatprep.subr.mxu0 %v1702
    %1810 = vmatpush1.msra.mxu0 %v1701
    %1811 = vmatprep.subr.mxu0 %v1704
    %1812 = vmatpush1.msra.mxu0 %v1703
    %1813 = vmatprep.subr.mxu0 %v1706
    %1814 = vmatpush1.msra.mxu0 %v1705
    %1815 = vmatprep.subr.mxu0 %v1708
    %1816 = vmatpush1.msra.mxu0 %v1707
    %1817 = vmatprep.subr.mxu0 %v1710
    %1818 = vmatpush1.msra.mxu0 %v1709
    %1819 = vmatprep.subr.mxu0 %v1712
    %1820 = vmatpush1.msra.mxu0 %v1711
    %1821 = vmatprep.subr.mxu0 %v1714
    %1822 = vmatpush1.msra.mxu0 %v1713
    %1823 = vmatprep.subr.mxu0 %v1716
    %1824 = vmatpush1.msra.mxu0 %v1715
    %1825 = vmatprep.subr.mxu0 %v1718
    %1826 = vmatpush1.msra.mxu0 %v1717
    %1827 = vmatprep.subr.mxu0 %v1720
    %1828 = vmatpush1.msra.mxu0 %v1719
    %1829 = vmatprep.subr.mxu0 %v1722
    %1830 = vmatpush1.msra.mxu0 %v1721
    %1831 = vmatprep.subr.mxu0 %v1724
    %1832 = vmatpush1.msra.mxu0 %v1723
    %1833 = vmatprep.subr.mxu0 %v1726
    %1834 = vmatpush1.msra.mxu0 %v1725
    %1835 = vmatprep.subr.mxu0 %v1728
    %1836 = vmatpush1.msra.mxu0 %v1727
    %1837 = vmatprep.subr.mxu0 %v1730
    %1838 = vmatpush1.msra.mxu0 %v1729
    %1839 = vmatprep.subr.mxu0 %v1732
    %1840 = vmatpush1.msra.mxu0 %v1731
    %1841 = vmatprep.subr.mxu0 %v1734
    %1842 = vmatpush1.msra.mxu0 %v1733
    %1843 = vmatprep.subr.mxu0 %v1736
    %1844 = vmatpush1.msra.mxu0 %v1735
    %1845 = vmatprep.subr.mxu0 %v1738
    %1846 = vmatpush1.msra.mxu0 %v1737
    %1847 = vmatprep.subr.mxu0 %v1740
    %1848 = vmatpush1.msra.mxu0 %v1739
    %1849 = vmatprep.subr.mxu0 %v1742
    %1850 = vmatpush1.msra.mxu0 %v1741
    %1851 = vmatprep.subr.mxu0 %v1744
    %1852 = vmatpush1.msra.mxu0 %v1743
    %1853 = vmatprep.subr.mxu0 %v1746
    %1854 = vmatpush1.msra.mxu0 %v1745
    %1855 = vmatprep.subr.mxu0 %v1748
    %1856 = vmatpush1.msra.mxu0 %v1747
    %1857 = vmatprep.subr.mxu0 %v1750
    %1858 = vmatpush1.msra.mxu0 %v1749
    %1859 = vmatprep.subr.mxu0 %v1752
    %1860 = vmatpush1.msra.mxu0 %v1751
    %1861 = vmatprep.subr.mxu0 %v1754
    %1862 = vmatpush1.msra.mxu0 %v1753
    %1863 = vmatprep.mubr.f32.mxu0 %v1566
    %1864 = vmatmul.mubr.f32.gmra.mrb[0].mxu0 0.0
    %v1865 = vpop.f32.mrb[0].mxu0
    %v1866 = vadd.f32 %v1792, %v1865
    %v1867 = vpop.f32.mrb[0].mxu0
    %v1868 = vadd.f32 %v1796, %v1867
    %1869 = vmatprep.mubr.f32.mxu0 %v1568
    %1870 = vmatmul.mubr.f32.gmra.mrb[0].mxu0 %v1567
    %v1871 = vpop.f32.mrb[0].mxu0
    %v1872 = vadd.f32 %v1792, %v1871
    %v1873 = vpop.f32.mrb[0].mxu0
    %v1874 = vadd.f32 %v1796, %v1873
    %1875 = vdwg.mxu0
    %1876 = vmatprep.subr.mxu0 %v1756
    %1877 = vmatpush1.msra.mxu0 %v1755
    %1878 = vmatprep.subr.mxu0 %v1758
    %1879 = vmatpush1.msra.mxu0 %v1757
    %1880 = vmatprep.subr.mxu0 %v1760
    %1881 = vmatpush1.msra.mxu0 %v1759
    %1882 = vmatprep.subr.mxu0 %v1762
    %1883 = vmatpush1.msra.mxu0 %v1761
    %1884 = vmatprep.subr.mxu0 %v1764
    %1885 = vmatpush1.msra.mxu0 %v1763
    %1886 = vmatprep.subr.mxu0 %v1766
    %1887 = vmatpush1.msra.mxu0 %v1765
    %1888 = vmatprep.subr.mxu0 %v1768
    %1889 = vmatpush1.msra.mxu0 %v1767
    %1890 = vmatprep.subr.mxu0 %v1770
    %1891 = vmatpush1.msra.mxu0 %v1769
    %1892 = vmatprep.subr.mxu0 %v1772
    %1893 = vmatpush1.msra.mxu0 %v1771
    %1894 = vmatprep.subr.mxu0 %v1774
    %1895 = vmatpush1.msra.mxu0 %v1773
    %1896 = vmatprep.subr.mxu0 %v1776
    %1897 = vmatpush1.msra.mxu0 %v1775
    %1898 = vmatprep.subr.mxu0 %v1778
    %1899 = vmatpush1.msra.mxu0 %v1777
    %1900 = vmatprep.subr.mxu0 %v1780
    %1901 = vmatpush1.msra.mxu0 %v1779
    %1902 = vmatprep.subr.mxu0 %v1782
    %1903 = vmatpush1.msra.mxu0 %v1781
    %1904 = vmatprep.subr.mxu0 %v1784
    %1905 = vmatpush1.msra.mxu0 %v1783
    %1906 = vmatprep.subr.mxu0 %v1786
    %1907 = vmatpush1.msra.mxu0 %v1785
    %1908 = vmatprep.subr.mxu0 0.0
    %1909 = vmatpush1.msra.mxu0 0.0
    %1910 = vmatprep.subr.mxu0 0.0
    %1911 = vmatpush1.msra.mxu0 0.0
    %1912 = vmatprep.subr.mxu0 0.0
    %1913 = vmatpush1.msra.mxu0 0.0
    %1914 = vmatprep.subr.mxu0 0.0
    %1915 = vmatpush1.msra.mxu0 0.0
    %1916 = vmatprep.subr.mxu0 0.0
    %1917 = vmatpush1.msra.mxu0 0.0
    %1918 = vmatprep.subr.mxu0 0.0
    %1919 = vmatpush1.msra.mxu0 0.0
    %1920 = vmatprep.subr.mxu0 0.0
    %1921 = vmatpush1.msra.mxu0 0.0
    %1922 = vmatprep.subr.mxu0 0.0
    %1923 = vmatpush1.msra.mxu0 0.0
    %1924 = vmatprep.subr.mxu0 0.0
    %1925 = vmatpush1.msra.mxu0 0.0
    %1926 = vmatprep.subr.mxu0 0.0
    %1927 = vmatpush1.msra.mxu0 0.0
    %1928 = vmatprep.subr.mxu0 0.0
    %1929 = vmatpush1.msra.mxu0 0.0
    %1930 = vmatprep.subr.mxu0 0.0
    %1931 = vmatpush1.msra.mxu0 0.0
    %1932 = vmatprep.subr.mxu0 0.0
    %1933 = vmatpush1.msra.mxu0 0.0
    %1934 = vmatprep.subr.mxu0 0.0
    %1935 = vmatpush1.msra.mxu0 0.0
    %1936 = vmatprep.subr.mxu0 0.0
    %1937 = vmatpush1.msra.mxu0 0.0
    %1938 = vmatprep.subr.mxu0 0.0
    %1939 = vmatpush1.msra.mxu0 0.0
    %1940 = vmatprep.mubr.f32.mxu0 0.0
    %1941 = vmatmul.mubr.f32.gmra.mrb[0].mxu0 %v1567
    %v1942 = vpop.f32.mrb[0].mxu0
    %v1943 = vadd.f32 %v1866, %v1942
    %v1944 = vpop.f32.mrb[0].mxu0
    %v1945 = vadd.f32 %v1868, %v1944
    %1946 = vmatprep.mubr.f32.mxu0 0.0
    %1947 = vmatmul.mubr.f32.gmra.mrb[0].mxu0 %v1569
    %v1948 = vpop.f32.mrb[0].mxu0
    %v1949 = vadd.f32 %v1872, %v1948
    %v1950 = vpop.f32.mrb[0].mxu0
    %v1951 = vadd.f32 %v1874, %v1950
    %1952 = vdwg.mxu0
    %v1953 = vmax.f32 %v1943, 0.0
    %v1954 = vmax.f32 %v1945, 0.0
    %v1955 = vmax.f32 %v1949, 0.0
    %v1956 = vmax.f32 %v1951, 0.0
    %v1957 = vld [vmem:[#allocation7] sm:$0xff]
    %v1958 = vld [vmem:[#allocation7 + $0x8] sm:$0xff]
    %v1959 = vld [vmem:[#allocation7 + $0x10] sm:$0xff]
    %v1960 = vld [vmem:[#allocation7 + $0x18] sm:$0xff]
    %v1961 = vld [vmem:[#allocation7 + $0x20] sm:$0xff]
    %v1962 = vld [vmem:[#allocation7 + $0x28] sm:$0xff]
    %v1963 = vld [vmem:[#allocation7 + $0x30] sm:$0xff]
    %v1964 = vld [vmem:[#allocation7 + $0x38] sm:$0xff]
    %v1965 = vld [vmem:[#allocation7 + $0x40] sm:$0xff]
    %v1966 = vld [vmem:[#allocation7 + $0x48] sm:$0xff]
    %v1967 = vld [vmem:[#allocation7 + $0x50] sm:$0xff]
    %v1968 = vld [vmem:[#allocation7 + $0x58] sm:$0xff]
    %v1969 = vld [vmem:[#allocation7 + $0x60] sm:$0xff]
    %v1970 = vld [vmem:[#allocation7 + $0x68] sm:$0xff]
    %v1971 = vld [vmem:[#allocation7 + $0x70] sm:$0xff]
    %v1972 = vld [vmem:[#allocation7 + $0x78] sm:$0xff]
    %v1973 = vld [vmem:[#allocation7 + $0x80] sm:$0xff]
    %v1974 = vld [vmem:[#allocation7 + $0x88] sm:$0xff]
    %v1975 = vld [vmem:[#allocation7 + $0x90] sm:$0xff]
    %v1976 = vld [vmem:[#allocation7 + $0x98] sm:$0xff]
    %v1977 = vld [vmem:[#allocation7 + $0xa0] sm:$0xff]
    %v1978 = vld [vmem:[#allocation7 + $0xa8] sm:$0xff]
    %v1979 = vld [vmem:[#allocation7 + $0xb0] sm:$0xff]
    %v1980 = vld [vmem:[#allocation7 + $0xb8] sm:$0xff]
    %v1981 = vld [vmem:[#allocation7 + $0xc0] sm:$0xff]
    %v1982 = vld [vmem:[#allocation7 + $0xc8] sm:$0xff]
    %v1983 = vld [vmem:[#allocation7 + $0xd0] sm:$0xff]
    %v1984 = vld [vmem:[#allocation7 + $0xd8] sm:$0xff]
    %v1985 = vld [vmem:[#allocation7 + $0xe0] sm:$0xff]
    %v1986 = vld [vmem:[#allocation7 + $0xe8] sm:$0xff]
    %v1987 = vld [vmem:[#allocation7 + $0xf0] sm:$0xff]
    %v1988 = vld [vmem:[#allocation7 + $0xf8] sm:$0xff]
    %v1989 = vld [vmem:[#allocation7 + $0x100] sm:$0xff]
    %v1990 = vld [vmem:[#allocation7 + $0x108] sm:$0xff]
    %v1991 = vld [vmem:[#allocation7 + $0x110] sm:$0xff]
    %v1992 = vld [vmem:[#allocation7 + $0x118] sm:$0xff]
    %v1993 = vld [vmem:[#allocation7 + $0x120] sm:$0xff]
    %v1994 = vld [vmem:[#allocation7 + $0x128] sm:$0xff]
    %v1995 = vld [vmem:[#allocation7 + $0x130] sm:$0xff]
    %v1996 = vld [vmem:[#allocation7 + $0x138] sm:$0xff]
    %v1997 = vld [vmem:[#allocation7 + $0x140] sm:$0xff]
    %v1998 = vld [vmem:[#allocation7 + $0x148] sm:$0xff]
    %v1999 = vld [vmem:[#allocation7 + $0x150] sm:$0xff]
    %v2000 = vld [vmem:[#allocation7 + $0x158] sm:$0xff]
    %v2001 = vld [vmem:[#allocation7 + $0x160] sm:$0xff]
    %v2002 = vld [vmem:[#allocation7 + $0x168] sm:$0xff]
    %v2003 = vld [vmem:[#allocation7 + $0x170] sm:$0xff]
    %v2004 = vld [vmem:[#allocation7 + $0x178] sm:$0xff]
    %v2005 = vld [vmem:[#allocation7 + $0x180] sm:$0xff]
    %v2006 = vld [vmem:[#allocation7 + $0x188] sm:$0xff]
    %v2007 = vld [vmem:[#allocation7 + $0x190] sm:$0xff]
    %v2008 = vld [vmem:[#allocation7 + $0x198] sm:$0xff]
    %v2009 = vld [vmem:[#allocation7 + $0x1a0] sm:$0xff]
    %v2010 = vld [vmem:[#allocation7 + $0x1a8] sm:$0xff]
    %v2011 = vld [vmem:[#allocation7 + $0x1b0] sm:$0xff]
    %v2012 = vld [vmem:[#allocation7 + $0x1b8] sm:$0xff]
    %v2013 = vld [vmem:[#allocation7 + $0x1c0] sm:$0xff]
    %v2014 = vld [vmem:[#allocation7 + $0x1c8] sm:$0xff]
    %v2015 = vld [vmem:[#allocation7 + $0x1d0] sm:$0xff]
    %v2016 = vld [vmem:[#allocation7 + $0x1d8] sm:$0xff]
    %v2017 = vld [vmem:[#allocation7 + $0x1e0] sm:$0xff]
    %v2018 = vld [vmem:[#allocation7 + $0x1e8] sm:$0xff]
    %v2019 = vld [vmem:[#allocation7 + $0x1f0] sm:$0xff]
    %v2020 = vld [vmem:[#allocation7 + $0x1f8] sm:$0xff]
    %v2021 = vld [vmem:[#allocation7 + $0x200] sm:$0xff]
    %v2022 = vld [vmem:[#allocation7 + $0x208] sm:$0xff]
    %v2023 = vld [vmem:[#allocation7 + $0x210] sm:$0xff]
    %v2024 = vld [vmem:[#allocation7 + $0x218] sm:$0xff]
    %v2025 = vld [vmem:[#allocation7 + $0x220] sm:$0xff]
    %v2026 = vld [vmem:[#allocation7 + $0x228] sm:$0xff]
    %v2027 = vld [vmem:[#allocation7 + $0x230] sm:$0xff]
    %v2028 = vld [vmem:[#allocation7 + $0x238] sm:$0xff]
    %v2029 = vld [vmem:[#allocation7 + $0x240] sm:$0xff]
    %v2030 = vld [vmem:[#allocation7 + $0x248] sm:$0xff]
    %v2031 = vld [vmem:[#allocation7 + $0x250] sm:$0xff]
    %v2032 = vld [vmem:[#allocation7 + $0x258] sm:$0xff]
    %v2033 = vld [vmem:[#allocation7 + $0x260] sm:$0xff]
    %v2034 = vld [vmem:[#allocation7 + $0x268] sm:$0xff]
    %v2035 = vld [vmem:[#allocation7 + $0x270] sm:$0xff]
    %v2036 = vld [vmem:[#allocation7 + $0x278] sm:$0xff]
    %v2037 = vld [vmem:[#allocation7 + $0x280] sm:$0xff]
    %v2038 = vld [vmem:[#allocation7 + $0x288] sm:$0xff]
    %v2039 = vld [vmem:[#allocation7 + $0x290] sm:$0xff]
    %v2040 = vld [vmem:[#allocation7 + $0x298] sm:$0xff]
    %v2041 = vld [vmem:[#allocation7 + $0x2a0] sm:$0xff]
    %v2042 = vld [vmem:[#allocation7 + $0x2a8] sm:$0xff]
    %v2043 = vld [vmem:[#allocation7 + $0x2b0] sm:$0xff]
    %v2044 = vld [vmem:[#allocation7 + $0x2b8] sm:$0xff]
    %v2045 = vld [vmem:[#allocation7 + $0x2c0] sm:$0xff]
    %v2046 = vld [vmem:[#allocation7 + $0x2c8] sm:$0xff]
    %v2047 = vld [vmem:[#allocation7 + $0x2d0] sm:$0xff]
    %v2048 = vld [vmem:[#allocation7 + $0x2d8] sm:$0xff]
    %v2049 = vld [vmem:[#allocation7 + $0x2e0] sm:$0xff]
    %v2050 = vld [vmem:[#allocation7 + $0x2e8] sm:$0xff]
    %v2051 = vld [vmem:[#allocation7 + $0x2f0] sm:$0xff]
    %v2052 = vld [vmem:[#allocation7 + $0x2f8] sm:$0xff]
    %v2053 = vld [vmem:[#allocation7 + $0x300] sm:$0xff]
    %v2054 = vld [vmem:[#allocation7 + $0x308] sm:$0xff]
    %v2055 = vld [vmem:[#allocation7 + $0x310] sm:$0xff]
    %v2056 = vld [vmem:[#allocation7 + $0x318] sm:$0xff]
    %v2057 = vld [vmem:[#allocation7 + $0x320] sm:$0xff]
    %v2058 = vld [vmem:[#allocation7 + $0x328] sm:$0xff]
    %v2059 = vld [vmem:[#allocation7 + $0x330] sm:$0xff]
    %v2060 = vld [vmem:[#allocation7 + $0x338] sm:$0xff]
    %v2061 = vld [vmem:[#allocation7 + $0x340] sm:$0xff]
    %v2062 = vld [vmem:[#allocation7 + $0x348] sm:$0xff]
    %v2063 = vld [vmem:[#allocation7 + $0x350] sm:$0xff]
    %v2064 = vld [vmem:[#allocation7 + $0x358] sm:$0xff]
    %v2065 = vld [vmem:[#allocation7 + $0x360] sm:$0xff]
    %v2066 = vld [vmem:[#allocation7 + $0x368] sm:$0xff]
    %v2067 = vld [vmem:[#allocation7 + $0x370] sm:$0xff]
    %v2068 = vld [vmem:[#allocation7 + $0x378] sm:$0xff]
    %v2069 = vld [vmem:[#allocation7 + $0x380] sm:$0xff]
    %v2070 = vld [vmem:[#allocation7 + $0x388] sm:$0xff]
    %v2071 = vld [vmem:[#allocation7 + $0x390] sm:$0xff]
    %v2072 = vld [vmem:[#allocation7 + $0x398] sm:$0xff]
    %v2073 = vld [vmem:[#allocation7 + $0x3a0] sm:$0xff]
    %v2074 = vld [vmem:[#allocation7 + $0x3a8] sm:$0xff]
    %v2075 = vld [vmem:[#allocation7 + $0x3b0] sm:$0xff]
    %v2076 = vld [vmem:[#allocation7 + $0x3b8] sm:$0xff]
    %v2077 = vld [vmem:[#allocation7 + $0x3c0] sm:$0xff]
    %v2078 = vld [vmem:[#allocation7 + $0x3c8] sm:$0xff]
    %v2079 = vld [vmem:[#allocation7 + $0x3d0] sm:$0xff]
    %v2080 = vld [vmem:[#allocation7 + $0x3d8] sm:$0xff]
    %v2081 = vld [vmem:[#allocation7 + $0x3e0] sm:$0xff]
    %v2082 = vld [vmem:[#allocation7 + $0x3e8] sm:$0xff]
    %v2083 = vld [vmem:[#allocation7 + $0x3f0] sm:$0xff]
    %v2084 = vld [vmem:[#allocation7 + $0x3f8] sm:$0xff]
    %v2085 = vld [vmem:[#allocation7 + $0x400] sm:$0xff]
    %v2086 = vld [vmem:[#allocation7 + $0x408] sm:$0xff]
    %v2087 = vld [vmem:[#allocation7 + $0x410] sm:$0xff]
    %v2088 = vld [vmem:[#allocation7 + $0x418] sm:$0xff]
    %v2089 = vld [vmem:[#allocation7 + $0x420] sm:$0xff]
    %v2090 = vld [vmem:[#allocation7 + $0x428] sm:$0xff]
    %v2091 = vld [vmem:[#allocation7 + $0x430] sm:$0xff]
    %v2092 = vld [vmem:[#allocation7 + $0x438] sm:$0xff]
    %v2093 = vld [vmem:[#allocation7 + $0x440] sm:$0xff]
    %v2094 = vld [vmem:[#allocation7 + $0x448] sm:$0xff]
    %v2095 = vld [vmem:[#allocation7 + $0x450] sm:$0xff]
    %v2096 = vld [vmem:[#allocation7 + $0x458] sm:$0xff]
    %v2097 = vld [vmem:[#allocation7 + $0x460] sm:$0xff]
    %v2098 = vld [vmem:[#allocation7 + $0x468] sm:$0xff]
    %v2099 = vld [vmem:[#allocation7 + $0x470] sm:$0xff]
    %v2100 = vld [vmem:[#allocation7 + $0x478] sm:$0xff]
    %v2101 = vld [vmem:[#allocation7 + $0x480] sm:$0xff]
    %v2102 = vld [vmem:[#allocation7 + $0x488] sm:$0xff]
    %v2103 = vld [vmem:[#allocation7 + $0x490] sm:$0xff]
    %v2104 = vld [vmem:[#allocation7 + $0x498] sm:$0xff]
    %v2105 = vld [vmem:[#allocation7 + $0x4a0] sm:$0xff]
    %v2106 = vld [vmem:[#allocation7 + $0x4a8] sm:$0xff]
    %v2107 = vld [vmem:[#allocation7 + $0x4b0] sm:$0xff]
    %v2108 = vld [vmem:[#allocation7 + $0x4b8] sm:$0xff]
    %v2109 = vld [vmem:[#allocation7 + $0x4c0] sm:$0xff]
    %v2110 = vld [vmem:[#allocation7 + $0x4c8] sm:$0xff]
    %v2111 = vld [vmem:[#allocation7 + $0x4d0] sm:$0xff]
    %v2112 = vld [vmem:[#allocation7 + $0x4d8] sm:$0xff]
    %v2113 = vld [vmem:[#allocation7 + $0x4e0] sm:$0xff]
    %v2114 = vld [vmem:[#allocation7 + $0x4e8] sm:$0xff]
    %v2115 = vld [vmem:[#allocation7 + $0x4f0] sm:$0xff]
    %v2116 = vld [vmem:[#allocation7 + $0x4f8] sm:$0xff]
    %v2117 = vld [vmem:[#allocation7 + $0x500] sm:$0xff]
    %v2118 = vld [vmem:[#allocation7 + $0x508] sm:$0xff]
    %v2119 = vld [vmem:[#allocation7 + $0x510] sm:$0xff]
    %v2120 = vld [vmem:[#allocation7 + $0x518] sm:$0xff]
    %v2121 = vld [vmem:[#allocation7 + $0x520] sm:$0xff]
    %v2122 = vld [vmem:[#allocation7 + $0x528] sm:$0xff]
    %v2123 = vld [vmem:[#allocation7 + $0x530] sm:$0xff]
    %v2124 = vld [vmem:[#allocation7 + $0x538] sm:$0xff]
    %v2125 = vld [vmem:[#allocation7 + $0x540] sm:$0xff]
    %v2126 = vld [vmem:[#allocation7 + $0x548] sm:$0xff]
    %v2127 = vld [vmem:[#allocation7 + $0x550] sm:$0xff]
    %v2128 = vld [vmem:[#allocation7 + $0x558] sm:$0xff]
    %v2129 = vld [vmem:[#allocation7 + $0x560] sm:$0xff]
    %v2130 = vld [vmem:[#allocation7 + $0x568] sm:$0xff]
    %v2131 = vld [vmem:[#allocation7 + $0x570] sm:$0xff]
    %v2132 = vld [vmem:[#allocation7 + $0x578] sm:$0xff]
    %v2133 = vld [vmem:[#allocation7 + $0x580] sm:$0xff]
    %v2134 = vld [vmem:[#allocation7 + $0x588] sm:$0xff]
    %v2135 = vld [vmem:[#allocation7 + $0x590] sm:$0xff]
    %v2136 = vld [vmem:[#allocation7 + $0x598] sm:$0xff]
    %v2137 = vld [vmem:[#allocation7 + $0x5a0] sm:$0xff]
    %v2138 = vld [vmem:[#allocation7 + $0x5a8] sm:$0xff]
    %v2139 = vld [vmem:[#allocation7 + $0x5b0] sm:$0xff]
    %v2140 = vld [vmem:[#allocation7 + $0x5b8] sm:$0xff]
    %v2141 = vld [vmem:[#allocation7 + $0x5c0] sm:$0xff]
    %v2142 = vld [vmem:[#allocation7 + $0x5c8] sm:$0xff]
    %v2143 = vld [vmem:[#allocation7 + $0x5d0] sm:$0xff]
    %v2144 = vld [vmem:[#allocation7 + $0x5d8] sm:$0xff]
    %v2145 = vld [vmem:[#allocation7 + $0x5e0] sm:$0xff]
    %v2146 = vld [vmem:[#allocation7 + $0x5e8] sm:$0xff]
    %v2147 = vld [vmem:[#allocation7 + $0x5f0] sm:$0xff]
    %v2148 = vld [vmem:[#allocation7 + $0x5f8] sm:$0xff]
    %v2149 = vld [vmem:[%s16] sm:$0x3]
    %v2151 = vlaneseq
    %v2152 = vshrl.u32 %v2151, 7
    %v2153 = vsub.s32 0, %v2152
    %v2154 = vrot.slane %v2149, %v2153
    %v2155 = vlaneseq
    %v2156 = vshrl.u32 %v2155, 7
    %v2157 = vsub.s32 1, %v2156
    %v2158 = vrot.slane %v2149, %v2157
    %2161 = vmatprep.subr.mxu0 %v1958
    %2162 = vmatpush1.msra.mxu0 %v1957
    %2163 = vmatprep.subr.mxu0 %v1960
    %2164 = vmatpush1.msra.mxu0 %v1959
    %2165 = vmatprep.subr.mxu0 %v1962
    %2166 = vmatpush1.msra.mxu0 %v1961
    %2167 = vmatprep.subr.mxu0 %v1964
    %2168 = vmatpush1.msra.mxu0 %v1963
    %2169 = vmatprep.subr.mxu0 %v1966
    %2170 = vmatpush1.msra.mxu0 %v1965
    %2171 = vmatprep.subr.mxu0 %v1968
    %2172 = vmatpush1.msra.mxu0 %v1967
    %2173 = vmatprep.subr.mxu0 %v1970
    %2174 = vmatpush1.msra.mxu0 %v1969
    %2175 = vmatprep.subr.mxu0 %v1972
    %2176 = vmatpush1.msra.mxu0 %v1971
    %2177 = vmatprep.subr.mxu0 %v1974
    %2178 = vmatpush1.msra.mxu0 %v1973
    %2179 = vmatprep.subr.mxu0 %v1976
    %2180 = vmatpush1.msra.mxu0 %v1975
    %2181 = vmatprep.subr.mxu0 %v1978
    %2182 = vmatpush1.msra.mxu0 %v1977
    %2183 = vmatprep.subr.mxu0 %v1980
    %2184 = vmatpush1.msra.mxu0 %v1979
    %2185 = vmatprep.subr.mxu0 %v1982
    %2186 = vmatpush1.msra.mxu0 %v1981
    %2187 = vmatprep.subr.mxu0 %v1984
    %2188 = vmatpush1.msra.mxu0 %v1983
    %2189 = vmatprep.subr.mxu0 %v1986
    %2190 = vmatpush1.msra.mxu0 %v1985
    %2191 = vmatprep.subr.mxu0 %v1988
    %2192 = vmatpush1.msra.mxu0 %v1987
    %2193 = vmatprep.subr.mxu0 %v1990
    %2194 = vmatpush1.msra.mxu0 %v1989
    %2195 = vmatprep.subr.mxu0 %v1992
    %2196 = vmatpush1.msra.mxu0 %v1991
    %2197 = vmatprep.subr.mxu0 %v1994
    %2198 = vmatpush1.msra.mxu0 %v1993
    %2199 = vmatprep.subr.mxu0 %v1996
    %2200 = vmatpush1.msra.mxu0 %v1995
    %2201 = vmatprep.subr.mxu0 %v1998
    %2202 = vmatpush1.msra.mxu0 %v1997
    %2203 = vmatprep.subr.mxu0 %v2000
    %2204 = vmatpush1.msra.mxu0 %v1999
    %2205 = vmatprep.subr.mxu0 %v2002
    %2206 = vmatpush1.msra.mxu0 %v2001
    %2207 = vmatprep.subr.mxu0 %v2004
    %2208 = vmatpush1.msra.mxu0 %v2003
    %2209 = vmatprep.subr.mxu0 %v2006
    %2210 = vmatpush1.msra.mxu0 %v2005
    %2211 = vmatprep.subr.mxu0 %v2008
    %2212 = vmatpush1.msra.mxu0 %v2007
    %2213 = vmatprep.subr.mxu0 %v2010
    %2214 = vmatpush1.msra.mxu0 %v2009
    %2215 = vmatprep.subr.mxu0 %v2012
    %2216 = vmatpush1.msra.mxu0 %v2011
    %2217 = vmatprep.subr.mxu0 %v2014
    %2218 = vmatpush1.msra.mxu0 %v2013
    %2219 = vmatprep.subr.mxu0 %v2016
    %2220 = vmatpush1.msra.mxu0 %v2015
    %2221 = vmatprep.subr.mxu0 %v2018
    %2222 = vmatpush1.msra.mxu0 %v2017
    %2223 = vmatprep.subr.mxu0 %v2020
    %2224 = vmatpush1.msra.mxu0 %v2019
    %2225 = vmatprep.mubr.f32.mxu0 0.0
    %2226 = vmatmul.mubr.f32.gmra.mrb[0].mxu0 0.0
    %v2227 = vpop.f32.mrb[0].mxu0
    %v2228 = vadd.f32 %v2154, %v2227
    %v2229 = vpop.f32.mrb[0].mxu0
    %v2230 = vadd.f32 %v2158, %v2229
    %2231 = vmatprep.mubr.f32.mxu0 %v1954
    %2232 = vmatmul.mubr.f32.gmra.mrb[0].mxu0 %v1953
    %v2233 = vpop.f32.mrb[0].mxu0
    %v2234 = vadd.f32 %v2154, %v2233
    %v2235 = vpop.f32.mrb[0].mxu0
    %v2236 = vadd.f32 %v2158, %v2235
    %2237 = vdwg.mxu0
    %2238 = vmatprep.subr.mxu0 %v2022
    %2239 = vmatpush1.msra.mxu0 %v2021
    %2240 = vmatprep.subr.mxu0 %v2024
    %2241 = vmatpush1.msra.mxu0 %v2023
    %2242 = vmatprep.subr.mxu0 %v2026
    %2243 = vmatpush1.msra.mxu0 %v2025
    %2244 = vmatprep.subr.mxu0 %v2028
    %2245 = vmatpush1.msra.mxu0 %v2027
    %2246 = vmatprep.subr.mxu0 %v2030
    %2247 = vmatpush1.msra.mxu0 %v2029
    %2248 = vmatprep.subr.mxu0 %v2032
    %2249 = vmatpush1.msra.mxu0 %v2031
    %2250 = vmatprep.subr.mxu0 %v2034
    %2251 = vmatpush1.msra.mxu0 %v2033
    %2252 = vmatprep.subr.mxu0 %v2036
    %2253 = vmatpush1.msra.mxu0 %v2035
    %2254 = vmatprep.subr.mxu0 %v2038
    %2255 = vmatpush1.msra.mxu0 %v2037
    %2256 = vmatprep.subr.mxu0 %v2040
    %2257 = vmatpush1.msra.mxu0 %v2039
    %2258 = vmatprep.subr.mxu0 %v2042
    %2259 = vmatpush1.msra.mxu0 %v2041
    %2260 = vmatprep.subr.mxu0 %v2044
    %2261 = vmatpush1.msra.mxu0 %v2043
    %2262 = vmatprep.subr.mxu0 %v2046
    %2263 = vmatpush1.msra.mxu0 %v2045
    %2264 = vmatprep.subr.mxu0 %v2048
    %2265 = vmatpush1.msra.mxu0 %v2047
    %2266 = vmatprep.subr.mxu0 %v2050
    %2267 = vmatpush1.msra.mxu0 %v2049
    %2268 = vmatprep.subr.mxu0 %v2052
    %2269 = vmatpush1.msra.mxu0 %v2051
    %2270 = vmatprep.subr.mxu0 %v2054
    %2271 = vmatpush1.msra.mxu0 %v2053
    %2272 = vmatprep.subr.mxu0 %v2056
    %2273 = vmatpush1.msra.mxu0 %v2055
    %2274 = vmatprep.subr.mxu0 %v2058
    %2275 = vmatpush1.msra.mxu0 %v2057
    %2276 = vmatprep.subr.mxu0 %v2060
    %2277 = vmatpush1.msra.mxu0 %v2059
    %2278 = vmatprep.subr.mxu0 %v2062
    %2279 = vmatpush1.msra.mxu0 %v2061
    %2280 = vmatprep.subr.mxu0 %v2064
    %2281 = vmatpush1.msra.mxu0 %v2063
    %2282 = vmatprep.subr.mxu0 %v2066
    %2283 = vmatpush1.msra.mxu0 %v2065
    %2284 = vmatprep.subr.mxu0 %v2068
    %2285 = vmatpush1.msra.mxu0 %v2067
    %2286 = vmatprep.subr.mxu0 %v2070
    %2287 = vmatpush1.msra.mxu0 %v2069
    %2288 = vmatprep.subr.mxu0 %v2072
    %2289 = vmatpush1.msra.mxu0 %v2071
    %2290 = vmatprep.subr.mxu0 %v2074
    %2291 = vmatpush1.msra.mxu0 %v2073
    %2292 = vmatprep.subr.mxu0 %v2076
    %2293 = vmatpush1.msra.mxu0 %v2075
    %2294 = vmatprep.subr.mxu0 %v2078
    %2295 = vmatpush1.msra.mxu0 %v2077
    %2296 = vmatprep.subr.mxu0 %v2080
    %2297 = vmatpush1.msra.mxu0 %v2079
    %2298 = vmatprep.subr.mxu0 %v2082
    %2299 = vmatpush1.msra.mxu0 %v2081
    %2300 = vmatprep.subr.mxu0 %v2084
    %2301 = vmatpush1.msra.mxu0 %v2083
    %2302 = vmatprep.mubr.f32.mxu0 %v1954
    %2303 = vmatmul.mubr.f32.gmra.mrb[0].mxu0 %v1953
    %v2304 = vpop.f32.mrb[0].mxu0
    %v2305 = vadd.f32 %v2228, %v2304
    %v2306 = vpop.f32.mrb[0].mxu0
    %v2307 = vadd.f32 %v2230, %v2306
    %2308 = vmatprep.mubr.f32.mxu0 %v1956
    %2309 = vmatmul.mubr.f32.gmra.mrb[0].mxu0 %v1955
    %v2310 = vpop.f32.mrb[0].mxu0
    %v2311 = vadd.f32 %v2234, %v2310
    %v2312 = vpop.f32.mrb[0].mxu0
    %v2313 = vadd.f32 %v2236, %v2312
    %2314 = vdwg.mxu0
    %2315 = vmatprep.subr.mxu0 %v2086
    %2316 = vmatpush1.msra.mxu0 %v2085
    %2317 = vmatprep.subr.mxu0 %v2088
    %2318 = vmatpush1.msra.mxu0 %v2087
    %2319 = vmatprep.subr.mxu0 %v2090
    %2320 = vmatpush1.msra.mxu0 %v2089
    %2321 = vmatprep.subr.mxu0 %v2092
    %2322 = vmatpush1.msra.mxu0 %v2091
    %2323 = vmatprep.subr.mxu0 %v2094
    %2324 = vmatpush1.msra.mxu0 %v2093
    %2325 = vmatprep.subr.mxu0 %v2096
    %2326 = vmatpush1.msra.mxu0 %v2095
    %2327 = vmatprep.subr.mxu0 %v2098
    %2328 = vmatpush1.msra.mxu0 %v2097
    %2329 = vmatprep.subr.mxu0 %v2100
    %2330 = vmatpush1.msra.mxu0 %v2099
    %2331 = vmatprep.subr.mxu0 %v2102
    %2332 = vmatpush1.msra.mxu0 %v2101
    %2333 = vmatprep.subr.mxu0 %v2104
    %2334 = vmatpush1.msra.mxu0 %v2103
    %2335 = vmatprep.subr.mxu0 %v2106
    %2336 = vmatpush1.msra.mxu0 %v2105
    %2337 = vmatprep.subr.mxu0 %v2108
    %2338 = vmatpush1.msra.mxu0 %v2107
    %2339 = vmatprep.subr.mxu0 %v2110
    %2340 = vmatpush1.msra.mxu0 %v2109
    %2341 = vmatprep.subr.mxu0 %v2112
    %2342 = vmatpush1.msra.mxu0 %v2111
    %2343 = vmatprep.subr.mxu0 %v2114
    %2344 = vmatpush1.msra.mxu0 %v2113
    %2345 = vmatprep.subr.mxu0 %v2116
    %2346 = vmatpush1.msra.mxu0 %v2115
    %2347 = vmatprep.subr.mxu0 %v2118
    %2348 = vmatpush1.msra.mxu0 %v2117
    %2349 = vmatprep.subr.mxu0 %v2120
    %2350 = vmatpush1.msra.mxu0 %v2119
    %2351 = vmatprep.subr.mxu0 %v2122
    %2352 = vmatpush1.msra.mxu0 %v2121
    %2353 = vmatprep.subr.mxu0 %v2124
    %2354 = vmatpush1.msra.mxu0 %v2123
    %2355 = vmatprep.subr.mxu0 %v2126
    %2356 = vmatpush1.msra.mxu0 %v2125
    %2357 = vmatprep.subr.mxu0 %v2128
    %2358 = vmatpush1.msra.mxu0 %v2127
    %2359 = vmatprep.subr.mxu0 %v2130
    %2360 = vmatpush1.msra.mxu0 %v2129
    %2361 = vmatprep.subr.mxu0 %v2132
    %2362 = vmatpush1.msra.mxu0 %v2131
    %2363 = vmatprep.subr.mxu0 %v2134
    %2364 = vmatpush1.msra.mxu0 %v2133
    %2365 = vmatprep.subr.mxu0 %v2136
    %2366 = vmatpush1.msra.mxu0 %v2135
    %2367 = vmatprep.subr.mxu0 %v2138
    %2368 = vmatpush1.msra.mxu0 %v2137
    %2369 = vmatprep.subr.mxu0 %v2140
    %2370 = vmatpush1.msra.mxu0 %v2139
    %2371 = vmatprep.subr.mxu0 %v2142
    %2372 = vmatpush1.msra.mxu0 %v2141
    %2373 = vmatprep.subr.mxu0 %v2144
    %2374 = vmatpush1.msra.mxu0 %v2143
    %2375 = vmatprep.subr.mxu0 %v2146
    %2376 = vmatpush1.msra.mxu0 %v2145
    %2377 = vmatprep.subr.mxu0 %v2148
    %2378 = vmatpush1.msra.mxu0 %v2147
    %2379 = vmatprep.mubr.f32.mxu0 %v1956
    %2380 = vmatmul.mubr.f32.gmra.mrb[0].mxu0 %v1955
    %v2381 = vpop.f32.mrb[0].mxu0
    %v2382 = vadd.f32 %v2305, %v2381
    %v2383 = vpop.f32.mrb[0].mxu0
    %v2384 = vadd.f32 %v2307, %v2383
    %2385 = vmatprep.mubr.f32.mxu0 0.0
    %2386 = vmatmul.mubr.f32.gmra.mrb[0].mxu0 0.0
    %v2387 = vpop.f32.mrb[0].mxu0
    %v2388 = vadd.f32 %v2311, %v2387
    %v2389 = vpop.f32.mrb[0].mxu0
    %v2390 = vadd.f32 %v2313, %v2389
    %2391 = vdwg.mxu0
    %v2392 = vadd.f32 %v2382, %v1681
    %v2393 = vadd.f32 %v2384, %v1683
    %v2394 = vadd.f32 %v2388, %v1687
    %v2395 = vadd.f32 %v2390, %v1689
    %v2396 = vmax.f32 %v2392, 0.0
    %v2397 = vmax.f32 %v2393, 0.0
    %v2398 = vmax.f32 %v2394, 0.0
    %v2399 = vmax.f32 %v2395, 0.0
    %v2400 = vadd.f32 %v2396, %v2398
    %v2401 = vadd.f32 %v2397, %v2399
    %v2402 = vrcp.pop 2.0
    %v2403 = vmul.f32 %v2400, %v2402
    %v2404 = vmul.f32 %v2401, %v2402
    %v2405 = vld [vmem:[#allocation9] sm:$0xff]
    %v2406 = vld [vmem:[#allocation9 + $0x8] sm:$0xff]
    %v2407 = vld [vmem:[#allocation9 + $0x10] sm:$0xff]
    %v2408 = vld [vmem:[#allocation9 + $0x18] sm:$0xff]
    %v2409 = vld [vmem:[#allocation9 + $0x20] sm:$0xff]
    %v2410 = vld [vmem:[#allocation9 + $0x28] sm:$0xff]
    %v2411 = vld [vmem:[#allocation9 + $0x30] sm:$0xff]
    %v2412 = vld [vmem:[#allocation9 + $0x38] sm:$0xff]
    %v2413 = vld [vmem:[#allocation9 + $0x40] sm:$0xff]
    %v2414 = vld [vmem:[#allocation9 + $0x48] sm:$0xff]
    %v2415 = vld [vmem:[#allocation9 + $0x50] sm:$0xff]
    %v2416 = vld [vmem:[#allocation9 + $0x58] sm:$0xff]
    %v2417 = vld [vmem:[#allocation9 + $0x60] sm:$0xff]
    %v2418 = vld [vmem:[#allocation9 + $0x68] sm:$0xff]
    %v2419 = vld [vmem:[#allocation9 + $0x70] sm:$0xff]
    %v2420 = vld [vmem:[#allocation9 + $0x78] sm:$0xff]
    %v2421 = vld [vmem:[#allocation9 + $0x80] sm:$0xff]
    %v2422 = vld [vmem:[#allocation9 + $0x88] sm:$0xff]
    %v2423 = vld [vmem:[#allocation9 + $0x90] sm:$0xff]
    %v2424 = vld [vmem:[#allocation9 + $0x98] sm:$0xff]
    %v2425 = vld [vmem:[#allocation9 + $0xa0] sm:$0xff]
    %v2426 = vld [vmem:[#allocation9 + $0xa8] sm:$0xff]
    %v2427 = vld [vmem:[#allocation9 + $0xb0] sm:$0xff]
    %v2428 = vld [vmem:[#allocation9 + $0xb8] sm:$0xff]
    %v2429 = vld [vmem:[#allocation9 + $0xc0] sm:$0xff]
    %v2430 = vld [vmem:[#allocation9 + $0xc8] sm:$0xff]
    %v2431 = vld [vmem:[#allocation9 + $0xd0] sm:$0xff]
    %v2432 = vld [vmem:[#allocation9 + $0xd8] sm:$0xff]
    %v2433 = vld [vmem:[#allocation9 + $0xe0] sm:$0xff]
    %v2434 = vld [vmem:[#allocation9 + $0xe8] sm:$0xff]
    %v2435 = vld [vmem:[#allocation9 + $0xf0] sm:$0xff]
    %v2436 = vld [vmem:[#allocation9 + $0xf8] sm:$0xff]
    %v2437 = vld [vmem:[%s20] sm:$0x1]
    %v2439 = vlaneseq
    %v2440 = vshrl.u32 %v2439, 7
    %v2441 = vsub.s32 0, %v2440
    %v2442 = vrot.slane %v2437, %v2441
    %2444 = vmatprep.subr.mxu0 0.0
    %2445 = vmatpush1.msra.mxu0 %v2405
    %2446 = vmatprep.subr.mxu0 0.0
    %2447 = vmatpush1.msra.mxu0 %v2406
    %2448 = vmatprep.subr.mxu0 0.0
    %2449 = vmatpush1.msra.mxu0 %v2407
    %2450 = vmatprep.subr.mxu0 0.0
    %2451 = vmatpush1.msra.mxu0 %v2408
    %2452 = vmatprep.subr.mxu0 0.0
    %2453 = vmatpush1.msra.mxu0 %v2409
    %2454 = vmatprep.subr.mxu0 0.0
    %2455 = vmatpush1.msra.mxu0 %v2410
    %2456 = vmatprep.subr.mxu0 0.0
    %2457 = vmatpush1.msra.mxu0 %v2411
    %2458 = vmatprep.subr.mxu0 0.0
    %2459 = vmatpush1.msra.mxu0 %v2412
    %2460 = vmatprep.subr.mxu0 0.0
    %2461 = vmatpush1.msra.mxu0 %v2413
    %2462 = vmatprep.subr.mxu0 0.0
    %2463 = vmatpush1.msra.mxu0 %v2414
    %2464 = vmatprep.subr.mxu0 0.0
    %2465 = vmatpush1.msra.mxu0 %v2415
    %2466 = vmatprep.subr.mxu0 0.0
    %2467 = vmatpush1.msra.mxu0 %v2416
    %2468 = vmatprep.subr.mxu0 0.0
    %2469 = vmatpush1.msra.mxu0 %v2417
    %2470 = vmatprep.subr.mxu0 0.0
    %2471 = vmatpush1.msra.mxu0 %v2418
    %2472 = vmatprep.subr.mxu0 0.0
    %2473 = vmatpush1.msra.mxu0 %v2419
    %2474 = vmatprep.subr.mxu0 0.0
    %2475 = vmatpush1.msra.mxu0 %v2420
    %2476 = vmatprep.subr.mxu0 0.0
    %2477 = vmatpush1.msra.mxu0 %v2421
    %2478 = vmatprep.subr.mxu0 0.0
    %2479 = vmatpush1.msra.mxu0 %v2422
    %2480 = vmatprep.subr.mxu0 0.0
    %2481 = vmatpush1.msra.mxu0 %v2423
    %2482 = vmatprep.subr.mxu0 0.0
    %2483 = vmatpush1.msra.mxu0 %v2424
    %2484 = vmatprep.subr.mxu0 0.0
    %2485 = vmatpush1.msra.mxu0 %v2425
    %2486 = vmatprep.subr.mxu0 0.0
    %2487 = vmatpush1.msra.mxu0 %v2426
    %2488 = vmatprep.subr.mxu0 0.0
    %2489 = vmatpush1.msra.mxu0 %v2427
    %2490 = vmatprep.subr.mxu0 0.0
    %2491 = vmatpush1.msra.mxu0 %v2428
    %2492 = vmatprep.subr.mxu0 0.0
    %2493 = vmatpush1.msra.mxu0 %v2429
    %2494 = vmatprep.subr.mxu0 0.0
    %2495 = vmatpush1.msra.mxu0 %v2430
    %2496 = vmatprep.subr.mxu0 0.0
    %2497 = vmatpush1.msra.mxu0 %v2431
    %2498 = vmatprep.subr.mxu0 0.0
    %2499 = vmatpush1.msra.mxu0 %v2432
    %2500 = vmatprep.subr.mxu0 0.0
    %2501 = vmatpush1.msra.mxu0 %v2433
    %2502 = vmatprep.subr.mxu0 0.0
    %2503 = vmatpush1.msra.mxu0 %v2434
    %2504 = vmatprep.subr.mxu0 0.0
    %2505 = vmatpush1.msra.mxu0 %v2435
    %2506 = vmatprep.subr.mxu0 0.0
    %2507 = vmatpush1.msra.mxu0 %v2436
    %2508 = vmatprep.mubr.f32.mxu0 %v2404
    %2509 = vmatmul.mubr.f32.gmra.mrb[0].mxu0 %v2403
    %v2510 = vpop.f32.mrb[0].mxu0
    %v2511 = vadd.f32 %v2442, %v2510
    %v2512 = vpop.f32.mrb[0].mxu0
    %2513 = vdwg.mxu0
    %2514 = vst [vmem:[%s21] sm:$0xff] %v2511
    // Predicated region
    $region106: #{resnet_forward.1} parent=1 // pred_check
      _
    $region107: #{resnet_forward.1} parent=1 // pred_check_branch
      %2516 = sbr.rel (0) target = $region109
    $region108: #{resnet_forward.1} parent=1 // pred_region
      _
    $region109: #{resnet_forward.1} parent=1 // pred_fallthru
      _
    // Predicated region
    $region110: #{resnet_forward.1} parent=1 // pred_check
      _
    $region111: #{resnet_forward.1} parent=1 // pred_check_branch
      %2518 = sbr.rel (0) target = $region113
    $region112: #{resnet_forward.1} parent=1 // pred_region
      _
    $region113: #{resnet_forward.1} parent=1 // pred_fallthru
      _
    %2519 = vsyncpa [#allocation3], 1
    %2520 = vsyncpa [#allocation5], 1
    %2521 = vsyncpa [#allocation8], 1

</llo_original>
